<compile_context>
chip_gen: v6e
topology: v6e:2x2x1
jax: 0.10.0
libtpu: 0.0.40
codegen_flags: <defaults>
</compile_context>

<pallas_src>
import functools
import math

import jax
import jax.numpy as jnp
from jax.experimental import pallas as pl
from jax.experimental.pallas import tpu as pltpu

# ----------------------------- model config (small) -----------------------------
B = 2            # batch
S = 8            # sequence length
H = 32           # hidden size (stands in for 768)
NH = 2           # attention heads
HD = H // NH     # head dim
F = 64           # FFN intermediate size (real)
FPAD = 128       # FFN intermediate size padded to lane width (exact zero-padding)
LAYERS = 2       # transformer layers
VOCAB = 50
MAX_POS = 16
NUM_CLASSES = 14
CPAD = 128       # classifier output padded to lane width
BS = B * S
LN_EPS = 1e-12
NEG_INF = -1e9


# ----------------------------- in-kernel helpers -----------------------------
def _layernorm(x, gamma, beta):
    # x: (rows, H); gamma/beta: (1, H)
    mu = jnp.mean(x, axis=-1, keepdims=True)
    xc = x - mu
    var = jnp.mean(xc * xc, axis=-1, keepdims=True)
    inv = jax.lax.rsqrt(var + LN_EPS)
    return xc * inv * gamma + beta


def _gelu(x):
    # TODO(synk): DistilBERT uses exact erf-GELU; tanh approximation used for
    # Mosaic-friendly lowering (matches to ~1e-3).  GELU(0)=0, so FPAD zero
    # padding stays exact.
    c = 0.7978845608028654  # sqrt(2/pi)
    return 0.5 * x * (1.0 + jnp.tanh(c * (x + 0.044715 * x * x * x)))


# ----------------------------- fused Pallas kernel -----------------------------
def bert_fused_kernel(
        x_ref, bias_ref, eg_ref, eb_ref,
        wq_ref, bq_ref, wk_ref, bk_ref, wv_ref, bv_ref,
        wo_ref, bo_ref, g1_ref, t1_ref,
        w1_ref, c1_ref, w2_ref, c2_ref, g2_ref, t2_ref,
        fcw_ref, fcb_ref,
        logits_ref):
    f32 = jnp.float32
    scale = 1.0 / math.sqrt(HD)

    bias = bias_ref[...]                                     # (BS, BS) additive mask
    x = _layernorm(x_ref[...], eg_ref[...], eb_ref[...])     # (BS, H) embedding LN

    for l in range(LAYERS):          # static unroll; all weights stay VMEM-resident
        # ---- multi-head self-attention (heads statically unrolled; per-head
        #      weights were pre-split wrapper-side -> only plain 2-D matmuls) ----
        attn = jnp.zeros((BS, H), f32)
        for n in range(NH):
            q = jnp.dot(x, wq_ref[l, n], preferred_element_type=f32) + bq_ref[l, n]
            k = jnp.dot(x, wk_ref[l, n], preferred_element_type=f32) + bk_ref[l, n]
            v = jnp.dot(x, wv_ref[l, n], preferred_element_type=f32) + bv_ref[l, n]
            s = jnp.dot(q, k.T, preferred_element_type=f32) * scale + bias  # (BS,BS)
            m = jnp.max(s, axis=-1, keepdims=True)
            p = jnp.exp(s - m)
            p = p * pl.reciprocal(jnp.sum(p, axis=-1, keepdims=True), approx=True)
            ctx = jnp.dot(p, v, preferred_element_type=f32)                 # (BS,HD)
            # accumulate through the per-head slice of the output projection
            # (replaces the lane-axis concatenate of head contexts)
            attn = attn + jnp.dot(ctx, wo_ref[l, n], preferred_element_type=f32)
        attn = attn + bo_ref[l]
        x = _layernorm(attn + x, g1_ref[l], t1_ref[l])

        # ---- FFN (F zero-padded to 128 lanes; exact) ----
        h1 = jnp.dot(x, w1_ref[l], preferred_element_type=f32) + c1_ref[l]
        h1 = _gelu(h1)
        ffn = jnp.dot(h1, w2_ref[l], preferred_element_type=f32) + c2_ref[l]
        x = _layernorm(ffn + x, g2_ref[l], t2_ref[l])

    # ---- classification head, fused; computed for all rows so the store is a
    #      full lane-dense (BS, 128) tile.  CLS rows are selected wrapper-side. ----
    logits_ref[...] = (jnp.dot(x, fcw_ref[...], preferred_element_type=f32)
                       + fcb_ref[...])


# ----------------------------- wrapper -----------------------------
def fused_forward(x0, attn_bias, p):
    args = (x0, attn_bias, p["emb_ln_g"], p["emb_ln_b"],
            p["wq_h"], p["bq_h"], p["wk_h"], p["bk_h"], p["wv_h"], p["bv_h"],
            p["wo_h"], p["bo"], p["ln1_g"], p["ln1_b"],
            p["w1"], p["c1"], p["w2"], p["c2"], p["ln2_g"], p["ln2_b"],
            p["fc_w"], p["fc_b"])
    vmem = lambda: pl.BlockSpec(memory_space=pltpu.MemorySpace.VMEM)
    return pl.pallas_call(
        bert_fused_kernel,
        out_shape=jax.ShapeDtypeStruct((BS, CPAD), jnp.float32),
        in_specs=[vmem() for _ in args],
        out_specs=vmem(),
    )(*args)


# ----------------------------- parameter init -----------------------------
def init_params(key):
    keys = iter(jax.random.split(key, 32))

    def lin(shape):
        return 0.02 * jax.random.normal(next(keys), shape, jnp.float32)

    def split_heads_qkv(w):   # (H, H) -> (NH, H, HD): head n uses output cols n*HD:
        return w.reshape(H, NH, HD).transpose(1, 0, 2)

    names = ("wq_h", "bq_h", "wk_h", "bk_h", "wv_h", "bv_h",
             "wo_h", "bo", "ln1_g", "ln1_b",
             "w1", "c1", "w2", "c2", "ln2_g", "ln2_b")
    layers = {n: [] for n in names}
    head_bias0 = jnp.zeros((NH, 1, HD), jnp.float32)
    for _ in range(LAYERS):
        layers["wq_h"].append(split_heads_qkv(lin((H, H))))
        layers["bq_h"].append(head_bias0)
        layers["wk_h"].append(split_heads_qkv(lin((H, H))))
        layers["bk_h"].append(head_bias0)
        layers["wv_h"].append(split_heads_qkv(lin((H, H))))
        layers["bv_h"].append(head_bias0)
        layers["wo_h"].append(lin((H, H)).reshape(NH, HD, H))   # head n = rows n*HD:
        layers["bo"].append(jnp.zeros((1, H), jnp.float32))
        layers["ln1_g"].append(jnp.ones((1, H), jnp.float32))
        layers["ln1_b"].append(jnp.zeros((1, H), jnp.float32))
        layers["w1"].append(
            jnp.zeros((H, FPAD), jnp.float32).at[:, :F].set(lin((H, F))))
        layers["c1"].append(jnp.zeros((1, FPAD), jnp.float32))
        layers["w2"].append(
            jnp.zeros((FPAD, H), jnp.float32).at[:F, :].set(lin((F, H))))
        layers["c2"].append(jnp.zeros((1, H), jnp.float32))
        layers["ln2_g"].append(jnp.ones((1, H), jnp.float32))
        layers["ln2_b"].append(jnp.zeros((1, H), jnp.float32))

    params = {
        "word_emb": lin((VOCAB, H)),
        "pos_emb": lin((MAX_POS, H)),
        "emb_ln_g": jnp.ones((1, H), jnp.float32),
        "emb_ln_b": jnp.zeros((1, H), jnp.float32),
        "fc_w": jnp.zeros((H, CPAD), jnp.float32)
                   .at[:, :NUM_CLASSES].set(lin((H, NUM_CLASSES))),
        "fc_b": jnp.zeros((1, CPAD), jnp.float32),
    }
    for k, v in layers.items():
        params[k] = jnp.stack(v)      # leading LAYERS axis; static-indexed in kernel
    return params


# ----------------------------- forward -----------------------------
@jax.jit
def bert_classification_forward(params, input_ids, attention_mask):
    # Embedding lookup (glue, plain JAX): word + position embeddings.
    word = jnp.take(params["word_emb"], input_ids, axis=0)          # (B, S, H)
    pos = params["pos_emb"][:S][None, :, :]                         # (1, S, H)
    x0 = (word + pos).reshape(BS, H).astype(jnp.float32)            # batch folded

    # Additive block-diagonal attention bias (0 / -1e9), built once in XLA:
    # query row i may only attend key row j if same example AND key j is valid.
    ex_ids = jnp.repeat(jnp.arange(B, dtype=jnp.int32), S)          # (BS,)
    key_valid = attention_mask.reshape(BS) > 0                      # (BS,)
    same_ex = ex_ids[:, None] == ex_ids[None, :]                    # (BS, BS)
    attn_bias = jnp.where(same_ex & key_valid[None, :],
                          0.0, NEG_INF).astype(jnp.float32)

    logits_all = fused_forward(x0, attn_bias, params)               # (BS, CPAD) Pallas
    # CLS rows (token 0 of each example) and un-pad the class dimension.
    return logits_all.reshape(B, S, CPAD)[:, 0, :NUM_CLASSES]


# ----------------------------- main -----------------------------
if __name__ == "__main__":
    key = jax.random.PRNGKey(0)
    k_ids, k_params = jax.random.split(key)

    # TODO(synk): DistilBertTokenizer / pretrained checkpoint have no Pallas/JAX
    # equivalent; synthetic token ids and deterministic random weights are used.
    input_ids = jax.random.randint(k_ids, (B, S), 0, VOCAB, dtype=jnp.int32)
    attention_mask = jnp.ones((B, S), jnp.int32)
    attention_mask = attention_mask.at[1, S - 2:].set(0)   # pad tail of 2nd example

    params = init_params(k_params)
    logits = bert_classification_forward(params, input_ids, attention_mask)
    logits = jax.block_until_ready(logits)

    assert logits.shape == (B, NUM_CLASSES) and logits.dtype == jnp.float32
    assert bool(jnp.all(jnp.isfinite(logits)))
    print("KERNEL_OK")
</pallas_src>

<mosaic_0001>
module attributes {stable_mosaic.version = 11 : i64} {
  func.func @bert_fused_kernel(%arg0: memref<16x32xf32, #tpu.memory_space<vmem>>, %arg1: memref<16x16xf32, #tpu.memory_space<vmem>>, %arg2: memref<1x32xf32, #tpu.memory_space<vmem>>, %arg3: memref<1x32xf32, #tpu.memory_space<vmem>>, %arg4: memref<2x2x32x16xf32, #tpu.memory_space<vmem>>, %arg5: memref<2x2x1x16xf32, #tpu.memory_space<vmem>>, %arg6: memref<2x2x32x16xf32, #tpu.memory_space<vmem>>, %arg7: memref<2x2x1x16xf32, #tpu.memory_space<vmem>>, %arg8: memref<2x2x32x16xf32, #tpu.memory_space<vmem>>, %arg9: memref<2x2x1x16xf32, #tpu.memory_space<vmem>>, %arg10: memref<2x2x16x32xf32, #tpu.memory_space<vmem>>, %arg11: memref<2x1x32xf32, #tpu.memory_space<vmem>>, %arg12: memref<2x1x32xf32, #tpu.memory_space<vmem>>, %arg13: memref<2x1x32xf32, #tpu.memory_space<vmem>>, %arg14: memref<2x32x128xf32, #tpu.memory_space<vmem>>, %arg15: memref<2x1x128xf32, #tpu.memory_space<vmem>>, %arg16: memref<2x128x32xf32, #tpu.memory_space<vmem>>, %arg17: memref<2x1x32xf32, #tpu.memory_space<vmem>>, %arg18: memref<2x1x32xf32, #tpu.memory_space<vmem>>, %arg19: memref<2x1x32xf32, #tpu.memory_space<vmem>>, %arg20: memref<32x128xf32, #tpu.memory_space<vmem>>, %arg21: memref<1x128xf32, #tpu.memory_space<vmem>>, %arg22: memref<16x128xf32, #tpu.memory_space<vmem>>) attributes {dimension_semantics = [], scalar_prefetch = 0 : i64, scratch_operands = 0 : i64, tpu.core_type = #tpu.core_type<tc>} {
    %c0 = arith.constant 0 : index
    %c0_0 = arith.constant 0 : index
    %0 = vector.load %arg1[%c0, %c0_0] : memref<16x16xf32, #tpu.memory_space<vmem>>, vector<16x16xf32>
    %c0_1 = arith.constant 0 : index
    %c0_2 = arith.constant 0 : index
    %1 = vector.load %arg0[%c0_1, %c0_2] : memref<16x32xf32, #tpu.memory_space<vmem>>, vector<16x32xf32>
    %c0_3 = arith.constant 0 : index
    %c0_4 = arith.constant 0 : index
    %2 = vector.load %arg2[%c0_3, %c0_4] : memref<1x32xf32, #tpu.memory_space<vmem>>, vector<1x32xf32>
    %c0_5 = arith.constant 0 : index
    %c0_6 = arith.constant 0 : index
    %3 = vector.load %arg3[%c0_5, %c0_6] : memref<1x32xf32, #tpu.memory_space<vmem>>, vector<1x32xf32>
    %cst = arith.constant dense<0.000000e+00> : vector<16xf32>
    %4 = vector.multi_reduction <add>, %1, %cst [1] : vector<16x32xf32> to vector<16xf32>
    %5 = vector.shape_cast %4 : vector<16xf32> to vector<16x1xf32>
    %cst_7 = arith.constant 3.200000e+01 : f32
    %6 = vector.broadcast %cst_7 : f32 to vector<16x1xf32>
    %7 = arith.divf %5, %6 : vector<16x1xf32>
    %8 = vector.broadcast %7 : vector<16x1xf32> to vector<16x32xf32>
    %9 = arith.subf %1, %8 : vector<16x32xf32>
    %10 = arith.mulf %9, %9 : vector<16x32xf32>
    %cst_8 = arith.constant dense<0.000000e+00> : vector<16xf32>
    %11 = vector.multi_reduction <add>, %10, %cst_8 [1] : vector<16x32xf32> to vector<16xf32>
    %12 = vector.shape_cast %11 : vector<16xf32> to vector<16x1xf32>
    %cst_9 = arith.constant 3.200000e+01 : f32
    %13 = vector.broadcast %cst_9 : f32 to vector<16x1xf32>
    %14 = arith.divf %12, %13 : vector<16x1xf32>
    %cst_10 = arith.constant 9.99999996E-13 : f32
    %15 = vector.broadcast %cst_10 : f32 to vector<16x1xf32>
    %16 = arith.addf %14, %15 : vector<16x1xf32>
    %17 = math.rsqrt %16 : vector<16x1xf32>
    %18 = vector.broadcast %17 : vector<16x1xf32> to vector<16x32xf32>
    %19 = arith.mulf %9, %18 : vector<16x32xf32>
    %20 = vector.broadcast %2 : vector<1x32xf32> to vector<16x32xf32>
    %21 = arith.mulf %19, %20 : vector<16x32xf32>
    %22 = vector.broadcast %3 : vector<1x32xf32> to vector<16x32xf32>
    %23 = arith.addf %21, %22 : vector<16x32xf32>
    %cst_11 = arith.constant 0.000000e+00 : f32
    %24 = vector.broadcast %cst_11 : f32 to vector<16x32xf32>
    %c0_12 = arith.constant 0 : index
    %c0_13 = arith.constant 0 : index
    %c0_14 = arith.constant 0 : index
    %c0_15 = arith.constant 0 : index
    %25 = vector.load %arg4[%c0_12, %c0_13, %c0_14, %c0_15] : memref<2x2x32x16xf32, #tpu.memory_space<vmem>>, vector<1x1x32x16xf32>
    %26 = vector.shape_cast %25 : vector<1x1x32x16xf32> to vector<32x16xf32>
    %cst_16 = arith.constant dense<0.000000e+00> : vector<16x16xf32>
    %27 = tpu.matmul %23, %26, %cst_16 {dimension_numbers = #tpu.dot_dimension_numbers<[1], [0], [0], [1], [0, 0, 1, 1], [], []>} : vector<16x32xf32>, vector<32x16xf32>, vector<16x16xf32> -> vector<16x16xf32>
    %c0_17 = arith.constant 0 : index
    %c0_18 = arith.constant 0 : index
    %c0_19 = arith.constant 0 : index
    %c0_20 = arith.constant 0 : index
    %28 = vector.load %arg5[%c0_17, %c0_18, %c0_19, %c0_20] : memref<2x2x1x16xf32, #tpu.memory_space<vmem>>, vector<1x1x1x16xf32>
    %29 = vector.shape_cast %28 : vector<1x1x1x16xf32> to vector<1x16xf32>
    %30 = vector.broadcast %29 : vector<1x16xf32> to vector<16x16xf32>
    %31 = arith.addf %27, %30 : vector<16x16xf32>
    %c0_21 = arith.constant 0 : index
    %c0_22 = arith.constant 0 : index
    %c0_23 = arith.constant 0 : index
    %c0_24 = arith.constant 0 : index
    %32 = vector.load %arg6[%c0_21, %c0_22, %c0_23, %c0_24] : memref<2x2x32x16xf32, #tpu.memory_space<vmem>>, vector<1x1x32x16xf32>
    %33 = vector.shape_cast %32 : vector<1x1x32x16xf32> to vector<32x16xf32>
    %cst_25 = arith.constant dense<0.000000e+00> : vector<16x16xf32>
    %34 = tpu.matmul %23, %33, %cst_25 {dimension_numbers = #tpu.dot_dimension_numbers<[1], [0], [0], [1], [0, 0, 1, 1], [], []>} : vector<16x32xf32>, vector<32x16xf32>, vector<16x16xf32> -> vector<16x16xf32>
    %c0_26 = arith.constant 0 : index
    %c0_27 = arith.constant 0 : index
    %c0_28 = arith.constant 0 : index
    %c0_29 = arith.constant 0 : index
    %35 = vector.load %arg7[%c0_26, %c0_27, %c0_28, %c0_29] : memref<2x2x1x16xf32, #tpu.memory_space<vmem>>, vector<1x1x1x16xf32>
    %36 = vector.shape_cast %35 : vector<1x1x1x16xf32> to vector<1x16xf32>
    %37 = vector.broadcast %36 : vector<1x16xf32> to vector<16x16xf32>
    %38 = arith.addf %34, %37 : vector<16x16xf32>
    %c0_30 = arith.constant 0 : index
    %c0_31 = arith.constant 0 : index
    %c0_32 = arith.constant 0 : index
    %c0_33 = arith.constant 0 : index
    %39 = vector.load %arg8[%c0_30, %c0_31, %c0_32, %c0_33] : memref<2x2x32x16xf32, #tpu.memory_space<vmem>>, vector<1x1x32x16xf32>
    %40 = vector.shape_cast %39 : vector<1x1x32x16xf32> to vector<32x16xf32>
    %cst_34 = arith.constant dense<0.000000e+00> : vector<16x16xf32>
    %41 = tpu.matmul %23, %40, %cst_34 {dimension_numbers = #tpu.dot_dimension_numbers<[1], [0], [0], [1], [0, 0, 1, 1], [], []>} : vector<16x32xf32>, vector<32x16xf32>, vector<16x16xf32> -> vector<16x16xf32>
    %c0_35 = arith.constant 0 : index
    %c0_36 = arith.constant 0 : index
    %c0_37 = arith.constant 0 : index
    %c0_38 = arith.constant 0 : index
    %42 = vector.load %arg9[%c0_35, %c0_36, %c0_37, %c0_38] : memref<2x2x1x16xf32, #tpu.memory_space<vmem>>, vector<1x1x1x16xf32>
    %43 = vector.shape_cast %42 : vector<1x1x1x16xf32> to vector<1x16xf32>
    %44 = vector.broadcast %43 : vector<1x16xf32> to vector<16x16xf32>
    %45 = arith.addf %41, %44 : vector<16x16xf32>
    %46 = tpu.transpose %38, [1, 0] : vector<16x16xf32> -> vector<16x16xf32>
    %cst_39 = arith.constant dense<0.000000e+00> : vector<16x16xf32>
    %47 = tpu.matmul %31, %46, %cst_39 {dimension_numbers = #tpu.dot_dimension_numbers<[1], [0], [0], [1], [0, 0, 1, 1], [], []>} : vector<16x16xf32>, vector<16x16xf32>, vector<16x16xf32> -> vector<16x16xf32>
    %cst_40 = arith.constant 2.500000e-01 : f32
    %48 = vector.broadcast %cst_40 : f32 to vector<16x16xf32>
    %49 = arith.mulf %47, %48 : vector<16x16xf32>
    %50 = arith.addf %49, %0 : vector<16x16xf32>
    %cst_41 = arith.constant dense<0xFF800000> : vector<16xf32>
    %51 = vector.multi_reduction <maximumf>, %50, %cst_41 [1] : vector<16x16xf32> to vector<16xf32>
    %52 = vector.shape_cast %51 : vector<16xf32> to vector<16x1xf32>
    %53 = vector.broadcast %52 : vector<16x1xf32> to vector<16x16xf32>
    %54 = arith.subf %50, %53 : vector<16x16xf32>
    %55 = math.exp %54 : vector<16x16xf32>
    %cst_42 = arith.constant dense<0.000000e+00> : vector<16xf32>
    %56 = vector.multi_reduction <add>, %55, %cst_42 [1] : vector<16x16xf32> to vector<16xf32>
    %57 = vector.shape_cast %56 : vector<16xf32> to vector<16x1xf32>
    %58 = tpu.reciprocal %57 {approx = true} : vector<16x1xf32> -> vector<16x1xf32>
    %59 = vector.broadcast %58 : vector<16x1xf32> to vector<16x16xf32>
    %60 = arith.mulf %55, %59 : vector<16x16xf32>
    %cst_43 = arith.constant dense<0.000000e+00> : vector<16x16xf32>
    %61 = tpu.matmul %60, %45, %cst_43 {dimension_numbers = #tpu.dot_dimension_numbers<[1], [0], [0], [1], [0, 0, 1, 1], [], []>} : vector<16x16xf32>, vector<16x16xf32>, vector<16x16xf32> -> vector<16x16xf32>
    %c0_44 = arith.constant 0 : index
    %c0_45 = arith.constant 0 : index
    %c0_46 = arith.constant 0 : index
    %c0_47 = arith.constant 0 : index
    %62 = vector.load %arg10[%c0_44, %c0_45, %c0_46, %c0_47] : memref<2x2x16x32xf32, #tpu.memory_space<vmem>>, vector<1x1x16x32xf32>
    %63 = vector.shape_cast %62 : vector<1x1x16x32xf32> to vector<16x32xf32>
    %cst_48 = arith.constant dense<0.000000e+00> : vector<16x32xf32>
    %64 = tpu.matmul %61, %63, %cst_48 {dimension_numbers = #tpu.dot_dimension_numbers<[1], [0], [0], [1], [0, 0, 1, 1], [], []>} : vector<16x16xf32>, vector<16x32xf32>, vector<16x32xf32> -> vector<16x32xf32>
    %65 = arith.addf %24, %64 : vector<16x32xf32>
    %c0_49 = arith.constant 0 : index
    %c1 = arith.constant 1 : index
    %c0_50 = arith.constant 0 : index
    %c0_51 = arith.constant 0 : index
    %66 = vector.load %arg4[%c0_49, %c1, %c0_50, %c0_51] : memref<2x2x32x16xf32, #tpu.memory_space<vmem>>, vector<1x1x32x16xf32>
    %67 = vector.shape_cast %66 : vector<1x1x32x16xf32> to vector<32x16xf32>
    %cst_52 = arith.constant dense<0.000000e+00> : vector<16x16xf32>
    %68 = tpu.matmul %23, %67, %cst_52 {dimension_numbers = #tpu.dot_dimension_numbers<[1], [0], [0], [1], [0, 0, 1, 1], [], []>} : vector<16x32xf32>, vector<32x16xf32>, vector<16x16xf32> -> vector<16x16xf32>
    %c0_53 = arith.constant 0 : index
    %c1_54 = arith.constant 1 : index
    %c0_55 = arith.constant 0 : index
    %c0_56 = arith.constant 0 : index
    %69 = vector.load %arg5[%c0_53, %c1_54, %c0_55, %c0_56] : memref<2x2x1x16xf32, #tpu.memory_space<vmem>>, vector<1x1x1x16xf32>
    %70 = vector.shape_cast %69 : vector<1x1x1x16xf32> to vector<1x16xf32>
    %71 = vector.broadcast %70 : vector<1x16xf32> to vector<16x16xf32>
    %72 = arith.addf %68, %71 : vector<16x16xf32>
    %c0_57 = arith.constant 0 : index
    %c1_58 = arith.constant 1 : index
    %c0_59 = arith.constant 0 : index
    %c0_60 = arith.constant 0 : index
    %73 = vector.load %arg6[%c0_57, %c1_58, %c0_59, %c0_60] : memref<2x2x32x16xf32, #tpu.memory_space<vmem>>, vector<1x1x32x16xf32>
    %74 = vector.shape_cast %73 : vector<1x1x32x16xf32> to vector<32x16xf32>
    %cst_61 = arith.constant dense<0.000000e+00> : vector<16x16xf32>
    %75 = tpu.matmul %23, %74, %cst_61 {dimension_numbers = #tpu.dot_dimension_numbers<[1], [0], [0], [1], [0, 0, 1, 1], [], []>} : vector<16x32xf32>, vector<32x16xf32>, vector<16x16xf32> -> vector<16x16xf32>
    %c0_62 = arith.constant 0 : index
    %c1_63 = arith.constant 1 : index
    %c0_64 = arith.constant 0 : index
    %c0_65 = arith.constant 0 : index
    %76 = vector.load %arg7[%c0_62, %c1_63, %c0_64, %c0_65] : memref<2x2x1x16xf32, #tpu.memory_space<vmem>>, vector<1x1x1x16xf32>
    %77 = vector.shape_cast %76 : vector<1x1x1x16xf32> to vector<1x16xf32>
    %78 = vector.broadcast %77 : vector<1x16xf32> to vector<16x16xf32>
    %79 = arith.addf %75, %78 : vector<16x16xf32>
    %c0_66 = arith.constant 0 : index
    %c1_67 = arith.constant 1 : index
    %c0_68 = arith.constant 0 : index
    %c0_69 = arith.constant 0 : index
    %80 = vector.load %arg8[%c0_66, %c1_67, %c0_68, %c0_69] : memref<2x2x32x16xf32, #tpu.memory_space<vmem>>, vector<1x1x32x16xf32>
    %81 = vector.shape_cast %80 : vector<1x1x32x16xf32> to vector<32x16xf32>
    %cst_70 = arith.constant dense<0.000000e+00> : vector<16x16xf32>
    %82 = tpu.matmul %23, %81, %cst_70 {dimension_numbers = #tpu.dot_dimension_numbers<[1], [0], [0], [1], [0, 0, 1, 1], [], []>} : vector<16x32xf32>, vector<32x16xf32>, vector<16x16xf32> -> vector<16x16xf32>
    %c0_71 = arith.constant 0 : index
    %c1_72 = arith.constant 1 : index
    %c0_73 = arith.constant 0 : index
    %c0_74 = arith.constant 0 : index
    %83 = vector.load %arg9[%c0_71, %c1_72, %c0_73, %c0_74] : memref<2x2x1x16xf32, #tpu.memory_space<vmem>>, vector<1x1x1x16xf32>
    %84 = vector.shape_cast %83 : vector<1x1x1x16xf32> to vector<1x16xf32>
    %85 = vector.broadcast %84 : vector<1x16xf32> to vector<16x16xf32>
    %86 = arith.addf %82, %85 : vector<16x16xf32>
    %87 = tpu.transpose %79, [1, 0] : vector<16x16xf32> -> vector<16x16xf32>
    %cst_75 = arith.constant dense<0.000000e+00> : vector<16x16xf32>
    %88 = tpu.matmul %72, %87, %cst_75 {dimension_numbers = #tpu.dot_dimension_numbers<[1], [0], [0], [1], [0, 0, 1, 1], [], []>} : vector<16x16xf32>, vector<16x16xf32>, vector<16x16xf32> -> vector<16x16xf32>
    %cst_76 = arith.constant 2.500000e-01 : f32
    %89 = vector.broadcast %cst_76 : f32 to vector<16x16xf32>
    %90 = arith.mulf %88, %89 : vector<16x16xf32>
    %91 = arith.addf %90, %0 : vector<16x16xf32>
    %cst_77 = arith.constant dense<0xFF800000> : vector<16xf32>
    %92 = vector.multi_reduction <maximumf>, %91, %cst_77 [1] : vector<16x16xf32> to vector<16xf32>
    %93 = vector.shape_cast %92 : vector<16xf32> to vector<16x1xf32>
    %94 = vector.broadcast %93 : vector<16x1xf32> to vector<16x16xf32>
    %95 = arith.subf %91, %94 : vector<16x16xf32>
    %96 = math.exp %95 : vector<16x16xf32>
    %cst_78 = arith.constant dense<0.000000e+00> : vector<16xf32>
    %97 = vector.multi_reduction <add>, %96, %cst_78 [1] : vector<16x16xf32> to vector<16xf32>
    %98 = vector.shape_cast %97 : vector<16xf32> to vector<16x1xf32>
    %99 = tpu.reciprocal %98 {approx = true} : vector<16x1xf32> -> vector<16x1xf32>
    %100 = vector.broadcast %99 : vector<16x1xf32> to vector<16x16xf32>
    %101 = arith.mulf %96, %100 : vector<16x16xf32>
    %cst_79 = arith.constant dense<0.000000e+00> : vector<16x16xf32>
    %102 = tpu.matmul %101, %86, %cst_79 {dimension_numbers = #tpu.dot_dimension_numbers<[1], [0], [0], [1], [0, 0, 1, 1], [], []>} : vector<16x16xf32>, vector<16x16xf32>, vector<16x16xf32> -> vector<16x16xf32>
    %c0_80 = arith.constant 0 : index
    %c1_81 = arith.constant 1 : index
    %c0_82 = arith.constant 0 : index
    %c0_83 = arith.constant 0 : index
    %103 = vector.load %arg10[%c0_80, %c1_81, %c0_82, %c0_83] : memref<2x2x16x32xf32, #tpu.memory_space<vmem>>, vector<1x1x16x32xf32>
    %104 = vector.shape_cast %103 : vector<1x1x16x32xf32> to vector<16x32xf32>
    %cst_84 = arith.constant dense<0.000000e+00> : vector<16x32xf32>
    %105 = tpu.matmul %102, %104, %cst_84 {dimension_numbers = #tpu.dot_dimension_numbers<[1], [0], [0], [1], [0, 0, 1, 1], [], []>} : vector<16x16xf32>, vector<16x32xf32>, vector<16x32xf32> -> vector<16x32xf32>
    %106 = arith.addf %65, %105 : vector<16x32xf32>
    %c0_85 = arith.constant 0 : index
    %c0_86 = arith.constant 0 : index
    %c0_87 = arith.constant 0 : index
    %107 = vector.load %arg11[%c0_85, %c0_86, %c0_87] : memref<2x1x32xf32, #tpu.memory_space<vmem>>, vector<1x1x32xf32>
    %108 = vector.shape_cast %107 : vector<1x1x32xf32> to vector<1x32xf32>
    %109 = vector.broadcast %108 : vector<1x32xf32> to vector<16x32xf32>
    %110 = arith.addf %106, %109 : vector<16x32xf32>
    %111 = arith.addf %110, %23 : vector<16x32xf32>
    %c0_88 = arith.constant 0 : index
    %c0_89 = arith.constant 0 : index
    %c0_90 = arith.constant 0 : index
    %112 = vector.load %arg12[%c0_88, %c0_89, %c0_90] : memref<2x1x32xf32, #tpu.memory_space<vmem>>, vector<1x1x32xf32>
    %113 = vector.shape_cast %112 : vector<1x1x32xf32> to vector<1x32xf32>
    %c0_91 = arith.constant 0 : index
    %c0_92 = arith.constant 0 : index
    %c0_93 = arith.constant 0 : index
    %114 = vector.load %arg13[%c0_91, %c0_92, %c0_93] : memref<2x1x32xf32, #tpu.memory_space<vmem>>, vector<1x1x32xf32>
    %115 = vector.shape_cast %114 : vector<1x1x32xf32> to vector<1x32xf32>
    %cst_94 = arith.constant dense<0.000000e+00> : vector<16xf32>
    %116 = vector.multi_reduction <add>, %111, %cst_94 [1] : vector<16x32xf32> to vector<16xf32>
    %117 = vector.shape_cast %116 : vector<16xf32> to vector<16x1xf32>
    %cst_95 = arith.constant 3.200000e+01 : f32
    %118 = vector.broadcast %cst_95 : f32 to vector<16x1xf32>
    %119 = arith.divf %117, %118 : vector<16x1xf32>
    %120 = vector.broadcast %119 : vector<16x1xf32> to vector<16x32xf32>
    %121 = arith.subf %111, %120 : vector<16x32xf32>
    %122 = arith.mulf %121, %121 : vector<16x32xf32>
    %cst_96 = arith.constant dense<0.000000e+00> : vector<16xf32>
    %123 = vector.multi_reduction <add>, %122, %cst_96 [1] : vector<16x32xf32> to vector<16xf32>
    %124 = vector.shape_cast %123 : vector<16xf32> to vector<16x1xf32>
    %cst_97 = arith.constant 3.200000e+01 : f32
    %125 = vector.broadcast %cst_97 : f32 to vector<16x1xf32>
    %126 = arith.divf %124, %125 : vector<16x1xf32>
    %cst_98 = arith.constant 9.99999996E-13 : f32
    %127 = vector.broadcast %cst_98 : f32 to vector<16x1xf32>
    %128 = arith.addf %126, %127 : vector<16x1xf32>
    %129 = math.rsqrt %128 : vector<16x1xf32>
    %130 = vector.broadcast %129 : vector<16x1xf32> to vector<16x32xf32>
    %131 = arith.mulf %121, %130 : vector<16x32xf32>
    %132 = vector.broadcast %113 : vector<1x32xf32> to vector<16x32xf32>
    %133 = arith.mulf %131, %132 : vector<16x32xf32>
    %134 = vector.broadcast %115 : vector<1x32xf32> to vector<16x32xf32>
    %135 = arith.addf %133, %134 : vector<16x32xf32>
    %c0_99 = arith.constant 0 : index
    %c0_100 = arith.constant 0 : index
    %c0_101 = arith.constant 0 : index
    %136 = vector.load %arg14[%c0_99, %c0_100, %c0_101] : memref<2x32x128xf32, #tpu.memory_space<vmem>>, vector<1x32x128xf32>
    %137 = vector.shape_cast %136 : vector<1x32x128xf32> to vector<32x128xf32>
    %cst_102 = arith.constant dense<0.000000e+00> : vector<16x128xf32>
    %138 = tpu.matmul %135, %137, %cst_102 {dimension_numbers = #tpu.dot_dimension_numbers<[1], [0], [0], [1], [0, 0, 1, 1], [], []>} : vector<16x32xf32>, vector<32x128xf32>, vector<16x128xf32> -> vector<16x128xf32>
    %c0_103 = arith.constant 0 : index
    %c0_104 = arith.constant 0 : index
    %c0_105 = arith.constant 0 : index
    %139 = vector.load %arg15[%c0_103, %c0_104, %c0_105] : memref<2x1x128xf32, #tpu.memory_space<vmem>>, vector<1x1x128xf32>
    %140 = vector.shape_cast %139 : vector<1x1x128xf32> to vector<1x128xf32>
    %141 = vector.broadcast %140 : vector<1x128xf32> to vector<16x128xf32>
    %142 = arith.addf %138, %141 : vector<16x128xf32>
    %cst_106 = arith.constant 5.000000e-01 : f32
    %143 = vector.broadcast %cst_106 : f32 to vector<16x128xf32>
    %144 = arith.mulf %143, %142 : vector<16x128xf32>
    %cst_107 = arith.constant 4.471500e-02 : f32
    %145 = vector.broadcast %cst_107 : f32 to vector<16x128xf32>
    %146 = arith.mulf %145, %142 : vector<16x128xf32>
    %147 = arith.mulf %146, %142 : vector<16x128xf32>
    %148 = arith.mulf %147, %142 : vector<16x128xf32>
    %149 = arith.addf %142, %148 : vector<16x128xf32>
    %cst_108 = arith.constant 0.797884583 : f32
    %150 = vector.broadcast %cst_108 : f32 to vector<16x128xf32>
    %151 = arith.mulf %150, %149 : vector<16x128xf32>
    %152 = math.tanh %151 : vector<16x128xf32>
    %cst_109 = arith.constant 1.000000e+00 : f32
    %153 = vector.broadcast %cst_109 : f32 to vector<16x128xf32>
    %154 = arith.addf %153, %152 : vector<16x128xf32>
    %155 = arith.mulf %144, %154 : vector<16x128xf32>
    %c0_110 = arith.constant 0 : index
    %c0_111 = arith.constant 0 : index
    %c0_112 = arith.constant 0 : index
    %156 = vector.load %arg16[%c0_110, %c0_111, %c0_112] : memref<2x128x32xf32, #tpu.memory_space<vmem>>, vector<1x128x32xf32>
    %157 = vector.shape_cast %156 : vector<1x128x32xf32> to vector<128x32xf32>
    %cst_113 = arith.constant dense<0.000000e+00> : vector<16x32xf32>
    %158 = tpu.matmul %155, %157, %cst_113 {dimension_numbers = #tpu.dot_dimension_numbers<[1], [0], [0], [1], [0, 0, 1, 1], [], []>} : vector<16x128xf32>, vector<128x32xf32>, vector<16x32xf32> -> vector<16x32xf32>
    %c0_114 = arith.constant 0 : index
    %c0_115 = arith.constant 0 : index
    %c0_116 = arith.constant 0 : index
    %159 = vector.load %arg17[%c0_114, %c0_115, %c0_116] : memref<2x1x32xf32, #tpu.memory_space<vmem>>, vector<1x1x32xf32>
    %160 = vector.shape_cast %159 : vector<1x1x32xf32> to vector<1x32xf32>
    %161 = vector.broadcast %160 : vector<1x32xf32> to vector<16x32xf32>
    %162 = arith.addf %158, %161 : vector<16x32xf32>
    %163 = arith.addf %162, %135 : vector<16x32xf32>
    %c0_117 = arith.constant 0 : index
    %c0_118 = arith.constant 0 : index
    %c0_119 = arith.constant 0 : index
    %164 = vector.load %arg18[%c0_117, %c0_118, %c0_119] : memref<2x1x32xf32, #tpu.memory_space<vmem>>, vector<1x1x32xf32>
    %165 = vector.shape_cast %164 : vector<1x1x32xf32> to vector<1x32xf32>
    %c0_120 = arith.constant 0 : index
    %c0_121 = arith.constant 0 : index
    %c0_122 = arith.constant 0 : index
    %166 = vector.load %arg19[%c0_120, %c0_121, %c0_122] : memref<2x1x32xf32, #tpu.memory_space<vmem>>, vector<1x1x32xf32>
    %167 = vector.shape_cast %166 : vector<1x1x32xf32> to vector<1x32xf32>
    %cst_123 = arith.constant dense<0.000000e+00> : vector<16xf32>
    %168 = vector.multi_reduction <add>, %163, %cst_123 [1] : vector<16x32xf32> to vector<16xf32>
    %169 = vector.shape_cast %168 : vector<16xf32> to vector<16x1xf32>
    %cst_124 = arith.constant 3.200000e+01 : f32
    %170 = vector.broadcast %cst_124 : f32 to vector<16x1xf32>
    %171 = arith.divf %169, %170 : vector<16x1xf32>
    %172 = vector.broadcast %171 : vector<16x1xf32> to vector<16x32xf32>
    %173 = arith.subf %163, %172 : vector<16x32xf32>
    %174 = arith.mulf %173, %173 : vector<16x32xf32>
    %cst_125 = arith.constant dense<0.000000e+00> : vector<16xf32>
    %175 = vector.multi_reduction <add>, %174, %cst_125 [1] : vector<16x32xf32> to vector<16xf32>
    %176 = vector.shape_cast %175 : vector<16xf32> to vector<16x1xf32>
    %cst_126 = arith.constant 3.200000e+01 : f32
    %177 = vector.broadcast %cst_126 : f32 to vector<16x1xf32>
    %178 = arith.divf %176, %177 : vector<16x1xf32>
    %cst_127 = arith.constant 9.99999996E-13 : f32
    %179 = vector.broadcast %cst_127 : f32 to vector<16x1xf32>
    %180 = arith.addf %178, %179 : vector<16x1xf32>
    %181 = math.rsqrt %180 : vector<16x1xf32>
    %182 = vector.broadcast %181 : vector<16x1xf32> to vector<16x32xf32>
    %183 = arith.mulf %173, %182 : vector<16x32xf32>
    %184 = vector.broadcast %165 : vector<1x32xf32> to vector<16x32xf32>
    %185 = arith.mulf %183, %184 : vector<16x32xf32>
    %186 = vector.broadcast %167 : vector<1x32xf32> to vector<16x32xf32>
    %187 = arith.addf %185, %186 : vector<16x32xf32>
    %cst_128 = arith.constant 0.000000e+00 : f32
    %188 = vector.broadcast %cst_128 : f32 to vector<16x32xf32>
    %c1_129 = arith.constant 1 : index
    %c0_130 = arith.constant 0 : index
    %c0_131 = arith.constant 0 : index
    %c0_132 = arith.constant 0 : index
    %189 = vector.load %arg4[%c1_129, %c0_130, %c0_131, %c0_132] : memref<2x2x32x16xf32, #tpu.memory_space<vmem>>, vector<1x1x32x16xf32>
    %190 = vector.shape_cast %189 : vector<1x1x32x16xf32> to vector<32x16xf32>
    %cst_133 = arith.constant dense<0.000000e+00> : vector<16x16xf32>
    %191 = tpu.matmul %187, %190, %cst_133 {dimension_numbers = #tpu.dot_dimension_numbers<[1], [0], [0], [1], [0, 0, 1, 1], [], []>} : vector<16x32xf32>, vector<32x16xf32>, vector<16x16xf32> -> vector<16x16xf32>
    %c1_134 = arith.constant 1 : index
    %c0_135 = arith.constant 0 : index
    %c0_136 = arith.constant 0 : index
    %c0_137 = arith.constant 0 : index
    %192 = vector.load %arg5[%c1_134, %c0_135, %c0_136, %c0_137] : memref<2x2x1x16xf32, #tpu.memory_space<vmem>>, vector<1x1x1x16xf32>
    %193 = vector.shape_cast %192 : vector<1x1x1x16xf32> to vector<1x16xf32>
    %194 = vector.broadcast %193 : vector<1x16xf32> to vector<16x16xf32>
    %195 = arith.addf %191, %194 : vector<16x16xf32>
    %c1_138 = arith.constant 1 : index
    %c0_139 = arith.constant 0 : index
    %c0_140 = arith.constant 0 : index
    %c0_141 = arith.constant 0 : index
    %196 = vector.load %arg6[%c1_138, %c0_139, %c0_140, %c0_141] : memref<2x2x32x16xf32, #tpu.memory_space<vmem>>, vector<1x1x32x16xf32>
    %197 = vector.shape_cast %196 : vector<1x1x32x16xf32> to vector<32x16xf32>
    %cst_142 = arith.constant dense<0.000000e+00> : vector<16x16xf32>
    %198 = tpu.matmul %187, %197, %cst_142 {dimension_numbers = #tpu.dot_dimension_numbers<[1], [0], [0], [1], [0, 0, 1, 1], [], []>} : vector<16x32xf32>, vector<32x16xf32>, vector<16x16xf32> -> vector<16x16xf32>
    %c1_143 = arith.constant 1 : index
    %c0_144 = arith.constant 0 : index
    %c0_145 = arith.constant 0 : index
    %c0_146 = arith.constant 0 : index
    %199 = vector.load %arg7[%c1_143, %c0_144, %c0_145, %c0_146] : memref<2x2x1x16xf32, #tpu.memory_space<vmem>>, vector<1x1x1x16xf32>
    %200 = vector.shape_cast %199 : vector<1x1x1x16xf32> to vector<1x16xf32>
    %201 = vector.broadcast %200 : vector<1x16xf32> to vector<16x16xf32>
    %202 = arith.addf %198, %201 : vector<16x16xf32>
    %c1_147 = arith.constant 1 : index
    %c0_148 = arith.constant 0 : index
    %c0_149 = arith.constant 0 : index
    %c0_150 = arith.constant 0 : index
    %203 = vector.load %arg8[%c1_147, %c0_148, %c0_149, %c0_150] : memref<2x2x32x16xf32, #tpu.memory_space<vmem>>, vector<1x1x32x16xf32>
    %204 = vector.shape_cast %203 : vector<1x1x32x16xf32> to vector<32x16xf32>
    %cst_151 = arith.constant dense<0.000000e+00> : vector<16x16xf32>
    %205 = tpu.matmul %187, %204, %cst_151 {dimension_numbers = #tpu.dot_dimension_numbers<[1], [0], [0], [1], [0, 0, 1, 1], [], []>} : vector<16x32xf32>, vector<32x16xf32>, vector<16x16xf32> -> vector<16x16xf32>
    %c1_152 = arith.constant 1 : index
    %c0_153 = arith.constant 0 : index
    %c0_154 = arith.constant 0 : index
    %c0_155 = arith.constant 0 : index
    %206 = vector.load %arg9[%c1_152, %c0_153, %c0_154, %c0_155] : memref<2x2x1x16xf32, #tpu.memory_space<vmem>>, vector<1x1x1x16xf32>
    %207 = vector.shape_cast %206 : vector<1x1x1x16xf32> to vector<1x16xf32>
    %208 = vector.broadcast %207 : vector<1x16xf32> to vector<16x16xf32>
    %209 = arith.addf %205, %208 : vector<16x16xf32>
    %210 = tpu.transpose %202, [1, 0] : vector<16x16xf32> -> vector<16x16xf32>
    %cst_156 = arith.constant dense<0.000000e+00> : vector<16x16xf32>
    %211 = tpu.matmul %195, %210, %cst_156 {dimension_numbers = #tpu.dot_dimension_numbers<[1], [0], [0], [1], [0, 0, 1, 1], [], []>} : vector<16x16xf32>, vector<16x16xf32>, vector<16x16xf32> -> vector<16x16xf32>
    %cst_157 = arith.constant 2.500000e-01 : f32
    %212 = vector.broadcast %cst_157 : f32 to vector<16x16xf32>
    %213 = arith.mulf %211, %212 : vector<16x16xf32>
    %214 = arith.addf %213, %0 : vector<16x16xf32>
    %cst_158 = arith.constant dense<0xFF800000> : vector<16xf32>
    %215 = vector.multi_reduction <maximumf>, %214, %cst_158 [1] : vector<16x16xf32> to vector<16xf32>
    %216 = vector.shape_cast %215 : vector<16xf32> to vector<16x1xf32>
    %217 = vector.broadcast %216 : vector<16x1xf32> to vector<16x16xf32>
    %218 = arith.subf %214, %217 : vector<16x16xf32>
    %219 = math.exp %218 : vector<16x16xf32>
    %cst_159 = arith.constant dense<0.000000e+00> : vector<16xf32>
    %220 = vector.multi_reduction <add>, %219, %cst_159 [1] : vector<16x16xf32> to vector<16xf32>
    %221 = vector.shape_cast %220 : vector<16xf32> to vector<16x1xf32>
    %222 = tpu.reciprocal %221 {approx = true} : vector<16x1xf32> -> vector<16x1xf32>
    %223 = vector.broadcast %222 : vector<16x1xf32> to vector<16x16xf32>
    %224 = arith.mulf %219, %223 : vector<16x16xf32>
    %cst_160 = arith.constant dense<0.000000e+00> : vector<16x16xf32>
    %225 = tpu.matmul %224, %209, %cst_160 {dimension_numbers = #tpu.dot_dimension_numbers<[1], [0], [0], [1], [0, 0, 1, 1], [], []>} : vector<16x16xf32>, vector<16x16xf32>, vector<16x16xf32> -> vector<16x16xf32>
    %c1_161 = arith.constant 1 : index
    %c0_162 = arith.constant 0 : index
    %c0_163 = arith.constant 0 : index
    %c0_164 = arith.constant 0 : index
    %226 = vector.load %arg10[%c1_161, %c0_162, %c0_163, %c0_164] : memref<2x2x16x32xf32, #tpu.memory_space<vmem>>, vector<1x1x16x32xf32>
    %227 = vector.shape_cast %226 : vector<1x1x16x32xf32> to vector<16x32xf32>
    %cst_165 = arith.constant dense<0.000000e+00> : vector<16x32xf32>
    %228 = tpu.matmul %225, %227, %cst_165 {dimension_numbers = #tpu.dot_dimension_numbers<[1], [0], [0], [1], [0, 0, 1, 1], [], []>} : vector<16x16xf32>, vector<16x32xf32>, vector<16x32xf32> -> vector<16x32xf32>
    %229 = arith.addf %188, %228 : vector<16x32xf32>
    %c1_166 = arith.constant 1 : index
    %c1_167 = arith.constant 1 : index
    %c0_168 = arith.constant 0 : index
    %c0_169 = arith.constant 0 : index
    %230 = vector.load %arg4[%c1_166, %c1_167, %c0_168, %c0_169] : memref<2x2x32x16xf32, #tpu.memory_space<vmem>>, vector<1x1x32x16xf32>
    %231 = vector.shape_cast %230 : vector<1x1x32x16xf32> to vector<32x16xf32>
    %cst_170 = arith.constant dense<0.000000e+00> : vector<16x16xf32>
    %232 = tpu.matmul %187, %231, %cst_170 {dimension_numbers = #tpu.dot_dimension_numbers<[1], [0], [0], [1], [0, 0, 1, 1], [], []>} : vector<16x32xf32>, vector<32x16xf32>, vector<16x16xf32> -> vector<16x16xf32>
    %c1_171 = arith.constant 1 : index
    %c1_172 = arith.constant 1 : index
    %c0_173 = arith.constant 0 : index
    %c0_174 = arith.constant 0 : index
    %233 = vector.load %arg5[%c1_171, %c1_172, %c0_173, %c0_174] : memref<2x2x1x16xf32, #tpu.memory_space<vmem>>, vector<1x1x1x16xf32>
    %234 = vector.shape_cast %233 : vector<1x1x1x16xf32> to vector<1x16xf32>
    %235 = vector.broadcast %234 : vector<1x16xf32> to vector<16x16xf32>
    %236 = arith.addf %232, %235 : vector<16x16xf32>
    %c1_175 = arith.constant 1 : index
    %c1_176 = arith.constant 1 : index
    %c0_177 = arith.constant 0 : index
    %c0_178 = arith.constant 0 : index
    %237 = vector.load %arg6[%c1_175, %c1_176, %c0_177, %c0_178] : memref<2x2x32x16xf32, #tpu.memory_space<vmem>>, vector<1x1x32x16xf32>
    %238 = vector.shape_cast %237 : vector<1x1x32x16xf32> to vector<32x16xf32>
    %cst_179 = arith.constant dense<0.000000e+00> : vector<16x16xf32>
    %239 = tpu.matmul %187, %238, %cst_179 {dimension_numbers = #tpu.dot_dimension_numbers<[1], [0], [0], [1], [0, 0, 1, 1], [], []>} : vector<16x32xf32>, vector<32x16xf32>, vector<16x16xf32> -> vector<16x16xf32>
    %c1_180 = arith.constant 1 : index
    %c1_181 = arith.constant 1 : index
    %c0_182 = arith.constant 0 : index
    %c0_183 = arith.constant 0 : index
    %240 = vector.load %arg7[%c1_180, %c1_181, %c0_182, %c0_183] : memref<2x2x1x16xf32, #tpu.memory_space<vmem>>, vector<1x1x1x16xf32>
    %241 = vector.shape_cast %240 : vector<1x1x1x16xf32> to vector<1x16xf32>
    %242 = vector.broadcast %241 : vector<1x16xf32> to vector<16x16xf32>
    %243 = arith.addf %239, %242 : vector<16x16xf32>
    %c1_184 = arith.constant 1 : index
    %c1_185 = arith.constant 1 : index
    %c0_186 = arith.constant 0 : index
    %c0_187 = arith.constant 0 : index
    %244 = vector.load %arg8[%c1_184, %c1_185, %c0_186, %c0_187] : memref<2x2x32x16xf32, #tpu.memory_space<vmem>>, vector<1x1x32x16xf32>
    %245 = vector.shape_cast %244 : vector<1x1x32x16xf32> to vector<32x16xf32>
    %cst_188 = arith.constant dense<0.000000e+00> : vector<16x16xf32>
    %246 = tpu.matmul %187, %245, %cst_188 {dimension_numbers = #tpu.dot_dimension_numbers<[1], [0], [0], [1], [0, 0, 1, 1], [], []>} : vector<16x32xf32>, vector<32x16xf32>, vector<16x16xf32> -> vector<16x16xf32>
    %c1_189 = arith.constant 1 : index
    %c1_190 = arith.constant 1 : index
    %c0_191 = arith.constant 0 : index
    %c0_192 = arith.constant 0 : index
    %247 = vector.load %arg9[%c1_189, %c1_190, %c0_191, %c0_192] : memref<2x2x1x16xf32, #tpu.memory_space<vmem>>, vector<1x1x1x16xf32>
    %248 = vector.shape_cast %247 : vector<1x1x1x16xf32> to vector<1x16xf32>
    %249 = vector.broadcast %248 : vector<1x16xf32> to vector<16x16xf32>
    %250 = arith.addf %246, %249 : vector<16x16xf32>
    %251 = tpu.transpose %243, [1, 0] : vector<16x16xf32> -> vector<16x16xf32>
    %cst_193 = arith.constant dense<0.000000e+00> : vector<16x16xf32>
    %252 = tpu.matmul %236, %251, %cst_193 {dimension_numbers = #tpu.dot_dimension_numbers<[1], [0], [0], [1], [0, 0, 1, 1], [], []>} : vector<16x16xf32>, vector<16x16xf32>, vector<16x16xf32> -> vector<16x16xf32>
    %cst_194 = arith.constant 2.500000e-01 : f32
    %253 = vector.broadcast %cst_194 : f32 to vector<16x16xf32>
    %254 = arith.mulf %252, %253 : vector<16x16xf32>
    %255 = arith.addf %254, %0 : vector<16x16xf32>
    %cst_195 = arith.constant dense<0xFF800000> : vector<16xf32>
    %256 = vector.multi_reduction <maximumf>, %255, %cst_195 [1] : vector<16x16xf32> to vector<16xf32>
    %257 = vector.shape_cast %256 : vector<16xf32> to vector<16x1xf32>
    %258 = vector.broadcast %257 : vector<16x1xf32> to vector<16x16xf32>
    %259 = arith.subf %255, %258 : vector<16x16xf32>
    %260 = math.exp %259 : vector<16x16xf32>
    %cst_196 = arith.constant dense<0.000000e+00> : vector<16xf32>
    %261 = vector.multi_reduction <add>, %260, %cst_196 [1] : vector<16x16xf32> to vector<16xf32>
    %262 = vector.shape_cast %261 : vector<16xf32> to vector<16x1xf32>
    %263 = tpu.reciprocal %262 {approx = true} : vector<16x1xf32> -> vector<16x1xf32>
    %264 = vector.broadcast %263 : vector<16x1xf32> to vector<16x16xf32>
    %265 = arith.mulf %260, %264 : vector<16x16xf32>
    %cst_197 = arith.constant dense<0.000000e+00> : vector<16x16xf32>
    %266 = tpu.matmul %265, %250, %cst_197 {dimension_numbers = #tpu.dot_dimension_numbers<[1], [0], [0], [1], [0, 0, 1, 1], [], []>} : vector<16x16xf32>, vector<16x16xf32>, vector<16x16xf32> -> vector<16x16xf32>
    %c1_198 = arith.constant 1 : index
    %c1_199 = arith.constant 1 : index
    %c0_200 = arith.constant 0 : index
    %c0_201 = arith.constant 0 : index
    %267 = vector.load %arg10[%c1_198, %c1_199, %c0_200, %c0_201] : memref<2x2x16x32xf32, #tpu.memory_space<vmem>>, vector<1x1x16x32xf32>
    %268 = vector.shape_cast %267 : vector<1x1x16x32xf32> to vector<16x32xf32>
    %cst_202 = arith.constant dense<0.000000e+00> : vector<16x32xf32>
    %269 = tpu.matmul %266, %268, %cst_202 {dimension_numbers = #tpu.dot_dimension_numbers<[1], [0], [0], [1], [0, 0, 1, 1], [], []>} : vector<16x16xf32>, vector<16x32xf32>, vector<16x32xf32> -> vector<16x32xf32>
    %270 = arith.addf %229, %269 : vector<16x32xf32>
    %c1_203 = arith.constant 1 : index
    %c0_204 = arith.constant 0 : index
    %c0_205 = arith.constant 0 : index
    %271 = vector.load %arg11[%c1_203, %c0_204, %c0_205] : memref<2x1x32xf32, #tpu.memory_space<vmem>>, vector<1x1x32xf32>
    %272 = vector.shape_cast %271 : vector<1x1x32xf32> to vector<1x32xf32>
    %273 = vector.broadcast %272 : vector<1x32xf32> to vector<16x32xf32>
    %274 = arith.addf %270, %273 : vector<16x32xf32>
    %275 = arith.addf %274, %187 : vector<16x32xf32>
    %c1_206 = arith.constant 1 : index
    %c0_207 = arith.constant 0 : index
    %c0_208 = arith.constant 0 : index
    %276 = vector.load %arg12[%c1_206, %c0_207, %c0_208] : memref<2x1x32xf32, #tpu.memory_space<vmem>>, vector<1x1x32xf32>
    %277 = vector.shape_cast %276 : vector<1x1x32xf32> to vector<1x32xf32>
    %c1_209 = arith.constant 1 : index
    %c0_210 = arith.constant 0 : index
    %c0_211 = arith.constant 0 : index
    %278 = vector.load %arg13[%c1_209, %c0_210, %c0_211] : memref<2x1x32xf32, #tpu.memory_space<vmem>>, vector<1x1x32xf32>
    %279 = vector.shape_cast %278 : vector<1x1x32xf32> to vector<1x32xf32>
    %cst_212 = arith.constant dense<0.000000e+00> : vector<16xf32>
    %280 = vector.multi_reduction <add>, %275, %cst_212 [1] : vector<16x32xf32> to vector<16xf32>
    %281 = vector.shape_cast %280 : vector<16xf32> to vector<16x1xf32>
    %cst_213 = arith.constant 3.200000e+01 : f32
    %282 = vector.broadcast %cst_213 : f32 to vector<16x1xf32>
    %283 = arith.divf %281, %282 : vector<16x1xf32>
    %284 = vector.broadcast %283 : vector<16x1xf32> to vector<16x32xf32>
    %285 = arith.subf %275, %284 : vector<16x32xf32>
    %286 = arith.mulf %285, %285 : vector<16x32xf32>
    %cst_214 = arith.constant dense<0.000000e+00> : vector<16xf32>
    %287 = vector.multi_reduction <add>, %286, %cst_214 [1] : vector<16x32xf32> to vector<16xf32>
    %288 = vector.shape_cast %287 : vector<16xf32> to vector<16x1xf32>
    %cst_215 = arith.constant 3.200000e+01 : f32
    %289 = vector.broadcast %cst_215 : f32 to vector<16x1xf32>
    %290 = arith.divf %288, %289 : vector<16x1xf32>
    %cst_216 = arith.constant 9.99999996E-13 : f32
    %291 = vector.broadcast %cst_216 : f32 to vector<16x1xf32>
    %292 = arith.addf %290, %291 : vector<16x1xf32>
    %293 = math.rsqrt %292 : vector<16x1xf32>
    %294 = vector.broadcast %293 : vector<16x1xf32> to vector<16x32xf32>
    %295 = arith.mulf %285, %294 : vector<16x32xf32>
    %296 = vector.broadcast %277 : vector<1x32xf32> to vector<16x32xf32>
    %297 = arith.mulf %295, %296 : vector<16x32xf32>
    %298 = vector.broadcast %279 : vector<1x32xf32> to vector<16x32xf32>
    %299 = arith.addf %297, %298 : vector<16x32xf32>
    %c1_217 = arith.constant 1 : index
    %c0_218 = arith.constant 0 : index
    %c0_219 = arith.constant 0 : index
    %300 = vector.load %arg14[%c1_217, %c0_218, %c0_219] : memref<2x32x128xf32, #tpu.memory_space<vmem>>, vector<1x32x128xf32>
    %301 = vector.shape_cast %300 : vector<1x32x128xf32> to vector<32x128xf32>
    %cst_220 = arith.constant dense<0.000000e+00> : vector<16x128xf32>
    %302 = tpu.matmul %299, %301, %cst_220 {dimension_numbers = #tpu.dot_dimension_numbers<[1], [0], [0], [1], [0, 0, 1, 1], [], []>} : vector<16x32xf32>, vector<32x128xf32>, vector<16x128xf32> -> vector<16x128xf32>
    %c1_221 = arith.constant 1 : index
    %c0_222 = arith.constant 0 : index
    %c0_223 = arith.constant 0 : index
    %303 = vector.load %arg15[%c1_221, %c0_222, %c0_223] : memref<2x1x128xf32, #tpu.memory_space<vmem>>, vector<1x1x128xf32>
    %304 = vector.shape_cast %303 : vector<1x1x128xf32> to vector<1x128xf32>
    %305 = vector.broadcast %304 : vector<1x128xf32> to vector<16x128xf32>
    %306 = arith.addf %302, %305 : vector<16x128xf32>
    %cst_224 = arith.constant 5.000000e-01 : f32
    %307 = vector.broadcast %cst_224 : f32 to vector<16x128xf32>
    %308 = arith.mulf %307, %306 : vector<16x128xf32>
    %cst_225 = arith.constant 4.471500e-02 : f32
    %309 = vector.broadcast %cst_225 : f32 to vector<16x128xf32>
    %310 = arith.mulf %309, %306 : vector<16x128xf32>
    %311 = arith.mulf %310, %306 : vector<16x128xf32>
    %312 = arith.mulf %311, %306 : vector<16x128xf32>
    %313 = arith.addf %306, %312 : vector<16x128xf32>
    %cst_226 = arith.constant 0.797884583 : f32
    %314 = vector.broadcast %cst_226 : f32 to vector<16x128xf32>
    %315 = arith.mulf %314, %313 : vector<16x128xf32>
    %316 = math.tanh %315 : vector<16x128xf32>
    %cst_227 = arith.constant 1.000000e+00 : f32
    %317 = vector.broadcast %cst_227 : f32 to vector<16x128xf32>
    %318 = arith.addf %317, %316 : vector<16x128xf32>
    %319 = arith.mulf %308, %318 : vector<16x128xf32>
    %c1_228 = arith.constant 1 : index
    %c0_229 = arith.constant 0 : index
    %c0_230 = arith.constant 0 : index
    %320 = vector.load %arg16[%c1_228, %c0_229, %c0_230] : memref<2x128x32xf32, #tpu.memory_space<vmem>>, vector<1x128x32xf32>
    %321 = vector.shape_cast %320 : vector<1x128x32xf32> to vector<128x32xf32>
    %cst_231 = arith.constant dense<0.000000e+00> : vector<16x32xf32>
    %322 = tpu.matmul %319, %321, %cst_231 {dimension_numbers = #tpu.dot_dimension_numbers<[1], [0], [0], [1], [0, 0, 1, 1], [], []>} : vector<16x128xf32>, vector<128x32xf32>, vector<16x32xf32> -> vector<16x32xf32>
    %c1_232 = arith.constant 1 : index
    %c0_233 = arith.constant 0 : index
    %c0_234 = arith.constant 0 : index
    %323 = vector.load %arg17[%c1_232, %c0_233, %c0_234] : memref<2x1x32xf32, #tpu.memory_space<vmem>>, vector<1x1x32xf32>
    %324 = vector.shape_cast %323 : vector<1x1x32xf32> to vector<1x32xf32>
    %325 = vector.broadcast %324 : vector<1x32xf32> to vector<16x32xf32>
    %326 = arith.addf %322, %325 : vector<16x32xf32>
    %327 = arith.addf %326, %299 : vector<16x32xf32>
    %c1_235 = arith.constant 1 : index
    %c0_236 = arith.constant 0 : index
    %c0_237 = arith.constant 0 : index
    %328 = vector.load %arg18[%c1_235, %c0_236, %c0_237] : memref<2x1x32xf32, #tpu.memory_space<vmem>>, vector<1x1x32xf32>
    %329 = vector.shape_cast %328 : vector<1x1x32xf32> to vector<1x32xf32>
    %c1_238 = arith.constant 1 : index
    %c0_239 = arith.constant 0 : index
    %c0_240 = arith.constant 0 : index
    %330 = vector.load %arg19[%c1_238, %c0_239, %c0_240] : memref<2x1x32xf32, #tpu.memory_space<vmem>>, vector<1x1x32xf32>
    %331 = vector.shape_cast %330 : vector<1x1x32xf32> to vector<1x32xf32>
    %cst_241 = arith.constant dense<0.000000e+00> : vector<16xf32>
    %332 = vector.multi_reduction <add>, %327, %cst_241 [1] : vector<16x32xf32> to vector<16xf32>
    %333 = vector.shape_cast %332 : vector<16xf32> to vector<16x1xf32>
    %cst_242 = arith.constant 3.200000e+01 : f32
    %334 = vector.broadcast %cst_242 : f32 to vector<16x1xf32>
    %335 = arith.divf %333, %334 : vector<16x1xf32>
    %336 = vector.broadcast %335 : vector<16x1xf32> to vector<16x32xf32>
    %337 = arith.subf %327, %336 : vector<16x32xf32>
    %338 = arith.mulf %337, %337 : vector<16x32xf32>
    %cst_243 = arith.constant dense<0.000000e+00> : vector<16xf32>
    %339 = vector.multi_reduction <add>, %338, %cst_243 [1] : vector<16x32xf32> to vector<16xf32>
    %340 = vector.shape_cast %339 : vector<16xf32> to vector<16x1xf32>
    %cst_244 = arith.constant 3.200000e+01 : f32
    %341 = vector.broadcast %cst_244 : f32 to vector<16x1xf32>
    %342 = arith.divf %340, %341 : vector<16x1xf32>
    %cst_245 = arith.constant 9.99999996E-13 : f32
    %343 = vector.broadcast %cst_245 : f32 to vector<16x1xf32>
    %344 = arith.addf %342, %343 : vector<16x1xf32>
    %345 = math.rsqrt %344 : vector<16x1xf32>
    %346 = vector.broadcast %345 : vector<16x1xf32> to vector<16x32xf32>
    %347 = arith.mulf %337, %346 : vector<16x32xf32>
    %348 = vector.broadcast %329 : vector<1x32xf32> to vector<16x32xf32>
    %349 = arith.mulf %347, %348 : vector<16x32xf32>
    %350 = vector.broadcast %331 : vector<1x32xf32> to vector<16x32xf32>
    %351 = arith.addf %349, %350 : vector<16x32xf32>
    %c0_246 = arith.constant 0 : index
    %c0_247 = arith.constant 0 : index
    %352 = vector.load %arg20[%c0_246, %c0_247] : memref<32x128xf32, #tpu.memory_space<vmem>>, vector<32x128xf32>
    %cst_248 = arith.constant dense<0.000000e+00> : vector<16x128xf32>
    %353 = tpu.matmul %351, %352, %cst_248 {dimension_numbers = #tpu.dot_dimension_numbers<[1], [0], [0], [1], [0, 0, 1, 1], [], []>} : vector<16x32xf32>, vector<32x128xf32>, vector<16x128xf32> -> vector<16x128xf32>
    %c0_249 = arith.constant 0 : index
    %c0_250 = arith.constant 0 : index
    %354 = vector.load %arg21[%c0_249, %c0_250] : memref<1x128xf32, #tpu.memory_space<vmem>>, vector<1x128xf32>
    %355 = vector.broadcast %354 : vector<1x128xf32> to vector<16x128xf32>
    %356 = arith.addf %353, %355 : vector<16x128xf32>
    %c0_251 = arith.constant 0 : index
    %c0_252 = arith.constant 0 : index
    %357 = vector.load %arg22[%c0_251, %c0_252] : memref<16x128xf32, #tpu.memory_space<vmem>>, vector<16x128xf32>
    tpu.vector_store %arg22[%c0_251, %c0_252], %356 {strides = array<i32>} : memref<16x128xf32, #tpu.memory_space<vmem>>, vector<16x128xf32>,
    return
  }
}

</mosaic_0001>

<llo_original>
// kernel: bert_classification_forward.1
$region0: #{bert_classification_forward.1}
  #allocation0 [shape = 'u32[]', space=smem, size = 0x4, offset = 0x4, fixed_abs, tag = 'smem constant byte address 0x4 - core index']
  #allocation1 [shape = 'u32[144,128]{1,0:T(1,128)}', space=vmem, size = 0x12000, scoped, tag = 'internal scratch']
  %s0 = inlined_call_operand.vmem [shape: f32[16,32], index: 0, kind: input, shape index: {}]
  %s1 = inlined_call_operand.vmem [shape: f32[16,16], index: 1, kind: input, shape index: {}]
  %s2 = inlined_call_operand.vmem [shape: f32[1,32], index: 2, kind: input, shape index: {}]
  %s3 = inlined_call_operand.vmem [shape: f32[1,32], index: 3, kind: input, shape index: {}]
  %s4 = inlined_call_operand.vmem [shape: f32[2,2,32,16], index: 4, kind: input, shape index: {}]
  %s5 = inlined_call_operand.vmem [shape: f32[2,2,1,16], index: 5, kind: input, shape index: {}]
  %s6 = inlined_call_operand.vmem [shape: f32[2,2,32,16], index: 6, kind: input, shape index: {}]
  %s7 = inlined_call_operand.vmem [shape: f32[2,2,1,16], index: 7, kind: input, shape index: {}]
  %s8 = inlined_call_operand.vmem [shape: f32[2,2,32,16], index: 8, kind: input, shape index: {}]
  %s9 = inlined_call_operand.vmem [shape: f32[2,2,1,16], index: 9, kind: input, shape index: {}]
  %s10 = inlined_call_operand.vmem [shape: f32[2,2,16,32], index: 10, kind: input, shape index: {}]
  %s11 = inlined_call_operand.vmem [shape: f32[2,1,32], index: 11, kind: input, shape index: {}]
  %s12 = inlined_call_operand.vmem [shape: f32[2,1,32], index: 12, kind: input, shape index: {}]
  %s13 = inlined_call_operand.vmem [shape: f32[2,1,32], index: 13, kind: input, shape index: {}]
  %s14 = inlined_call_operand.vmem [shape: f32[2,32,128], index: 14, kind: input, shape index: {}]
  %s15 = inlined_call_operand.vmem [shape: f32[2,1,128], index: 15, kind: input, shape index: {}]
  %s16 = inlined_call_operand.vmem [shape: f32[2,128,32], index: 16, kind: input, shape index: {}]
  %s17 = inlined_call_operand.vmem [shape: f32[2,1,32], index: 17, kind: input, shape index: {}]
  %s18 = inlined_call_operand.vmem [shape: f32[2,1,32], index: 18, kind: input, shape index: {}]
  %s19 = inlined_call_operand.vmem [shape: f32[2,1,32], index: 19, kind: input, shape index: {}]
  %s20 = inlined_call_operand.vmem [shape: f32[32,128], index: 20, kind: input, shape index: {}]
  %s21 = inlined_call_operand.vmem [shape: f32[1,128], index: 21, kind: input, shape index: {}]
  %s22 = inlined_call_operand.vmem [shape: f32[16,128], index: 22, kind: output, shape index: {}]
  %s23 = sld [smem:[#allocation0]]
  $region98: #{bert_classification_forward.1} parent=0
    _
  %s25 = ssub.s32 1, %s23
  %s26 = scalar_select 0, %s25, %s23
  // Predicated region
  $region2: #{bert_classification_forward.1} parent=0 // pred_check
    _
  $region3: #{bert_classification_forward.1} parent=0 // pred_check_branch
    %28 = sbr.rel (0) target = $region5
  $region4: #{bert_classification_forward.1} parent=0 // pred_region
    _
  $region5: #{bert_classification_forward.1} parent=0 // pred_fallthru
    _
  // Predicated region
  $region6: #{bert_classification_forward.1} parent=0 // pred_check
    _
  $region7: #{bert_classification_forward.1} parent=0 // pred_check_branch
    %30 = sbr.rel (0) target = $region9
  $region8: #{bert_classification_forward.1} parent=0 // pred_region
    _
  $region9: #{bert_classification_forward.1} parent=0 // pred_fallthru
    _
  // Predicated region
  $region10: #{bert_classification_forward.1} parent=0 // pred_check
    _
  $region11: #{bert_classification_forward.1} parent=0 // pred_check_branch
    %32 = sbr.rel (0) target = $region13
  $region12: #{bert_classification_forward.1} parent=0 // pred_region
    _
  $region13: #{bert_classification_forward.1} parent=0 // pred_fallthru
    _
  // Predicated region
  $region14: #{bert_classification_forward.1} parent=0 // pred_check
    _
  $region15: #{bert_classification_forward.1} parent=0 // pred_check_branch
    %34 = sbr.rel (0) target = $region17
  $region16: #{bert_classification_forward.1} parent=0 // pred_region
    _
  $region17: #{bert_classification_forward.1} parent=0 // pred_fallthru
    _
  // Predicated region
  $region18: #{bert_classification_forward.1} parent=0 // pred_check
    _
  $region19: #{bert_classification_forward.1} parent=0 // pred_check_branch
    %36 = sbr.rel (0) target = $region21
  $region20: #{bert_classification_forward.1} parent=0 // pred_region
    _
  $region21: #{bert_classification_forward.1} parent=0 // pred_fallthru
    _
  // Predicated region
  $region22: #{bert_classification_forward.1} parent=0 // pred_check
    _
  $region23: #{bert_classification_forward.1} parent=0 // pred_check_branch
    %38 = sbr.rel (0) target = $region25
  $region24: #{bert_classification_forward.1} parent=0 // pred_region
    _
  $region25: #{bert_classification_forward.1} parent=0 // pred_fallthru
    _
  // Predicated region
  $region26: #{bert_classification_forward.1} parent=0 // pred_check
    _
  $region27: #{bert_classification_forward.1} parent=0 // pred_check_branch
    %40 = sbr.rel (0) target = $region29
  $region28: #{bert_classification_forward.1} parent=0 // pred_region
    _
  $region29: #{bert_classification_forward.1} parent=0 // pred_fallthru
    _
  // Predicated region
  $region30: #{bert_classification_forward.1} parent=0 // pred_check
    _
  $region31: #{bert_classification_forward.1} parent=0 // pred_check_branch
    %42 = sbr.rel (0) target = $region33
  $region32: #{bert_classification_forward.1} parent=0 // pred_region
    _
  $region33: #{bert_classification_forward.1} parent=0 // pred_fallthru
    _
  // Predicated region
  $region34: #{bert_classification_forward.1} parent=0 // pred_check
    _
  $region35: #{bert_classification_forward.1} parent=0 // pred_check_branch
    %44 = sbr.rel (0) target = $region37
  $region36: #{bert_classification_forward.1} parent=0 // pred_region
    _
  $region37: #{bert_classification_forward.1} parent=0 // pred_fallthru
    _
  // Predicated region
  $region38: #{bert_classification_forward.1} parent=0 // pred_check
    _
  $region39: #{bert_classification_forward.1} parent=0 // pred_check_branch
    %46 = sbr.rel (0) target = $region41
  $region40: #{bert_classification_forward.1} parent=0 // pred_region
    _
  $region41: #{bert_classification_forward.1} parent=0 // pred_fallthru
    _
  // Predicated region
  $region42: #{bert_classification_forward.1} parent=0 // pred_check
    _
  $region43: #{bert_classification_forward.1} parent=0 // pred_check_branch
    %48 = sbr.rel (0) target = $region45
  $region44: #{bert_classification_forward.1} parent=0 // pred_region
    _
  $region45: #{bert_classification_forward.1} parent=0 // pred_fallthru
    _
  // Predicated region
  $region46: #{bert_classification_forward.1} parent=0 // pred_check
    _
  $region47: #{bert_classification_forward.1} parent=0 // pred_check_branch
    %50 = sbr.rel (0) target = $region49
  $region48: #{bert_classification_forward.1} parent=0 // pred_region
    _
  $region49: #{bert_classification_forward.1} parent=0 // pred_fallthru
    _
  // Predicated region
  $region50: #{bert_classification_forward.1} parent=0 // pred_check
    _
  $region51: #{bert_classification_forward.1} parent=0 // pred_check_branch
    %52 = sbr.rel (0) target = $region53
  $region52: #{bert_classification_forward.1} parent=0 // pred_region
    _
  $region53: #{bert_classification_forward.1} parent=0 // pred_fallthru
    _
  // Predicated region
  $region54: #{bert_classification_forward.1} parent=0 // pred_check
    _
  $region55: #{bert_classification_forward.1} parent=0 // pred_check_branch
    %54 = sbr.rel (0) target = $region57
  $region56: #{bert_classification_forward.1} parent=0 // pred_region
    _
  $region57: #{bert_classification_forward.1} parent=0 // pred_fallthru
    _
  // Predicated region
  $region58: #{bert_classification_forward.1} parent=0 // pred_check
    _
  $region59: #{bert_classification_forward.1} parent=0 // pred_check_branch
    %56 = sbr.rel (0) target = $region61
  $region60: #{bert_classification_forward.1} parent=0 // pred_region
    _
  $region61: #{bert_classification_forward.1} parent=0 // pred_fallthru
    _
  // Predicated region
  $region62: #{bert_classification_forward.1} parent=0 // pred_check
    _
  $region63: #{bert_classification_forward.1} parent=0 // pred_check_branch
    %58 = sbr.rel (0) target = $region65
  $region64: #{bert_classification_forward.1} parent=0 // pred_region
    _
  $region65: #{bert_classification_forward.1} parent=0 // pred_fallthru
    _
  // Predicated region
  $region66: #{bert_classification_forward.1} parent=0 // pred_check
    _
  $region67: #{bert_classification_forward.1} parent=0 // pred_check_branch
    %60 = sbr.rel (0) target = $region69
  $region68: #{bert_classification_forward.1} parent=0 // pred_region
    _
  $region69: #{bert_classification_forward.1} parent=0 // pred_fallthru
    _
  // Predicated region
  $region70: #{bert_classification_forward.1} parent=0 // pred_check
    _
  $region71: #{bert_classification_forward.1} parent=0 // pred_check_branch
    %62 = sbr.rel (0) target = $region73
  $region72: #{bert_classification_forward.1} parent=0 // pred_region
    _
  $region73: #{bert_classification_forward.1} parent=0 // pred_fallthru
    _
  // Predicated region
  $region74: #{bert_classification_forward.1} parent=0 // pred_check
    _
  $region75: #{bert_classification_forward.1} parent=0 // pred_check_branch
    %64 = sbr.rel (0) target = $region77
  $region76: #{bert_classification_forward.1} parent=0 // pred_region
    _
  $region77: #{bert_classification_forward.1} parent=0 // pred_fallthru
    _
  // Predicated region
  $region78: #{bert_classification_forward.1} parent=0 // pred_check
    _
  $region79: #{bert_classification_forward.1} parent=0 // pred_check_branch
    %66 = sbr.rel (0) target = $region81
  $region80: #{bert_classification_forward.1} parent=0 // pred_region
    _
  $region81: #{bert_classification_forward.1} parent=0 // pred_fallthru
    _
  // Predicated region
  $region82: #{bert_classification_forward.1} parent=0 // pred_check
    _
  $region83: #{bert_classification_forward.1} parent=0 // pred_check_branch
    %68 = sbr.rel (0) target = $region85
  $region84: #{bert_classification_forward.1} parent=0 // pred_region
    _
  $region85: #{bert_classification_forward.1} parent=0 // pred_fallthru
    _
  // Predicated region
  $region86: #{bert_classification_forward.1} parent=0 // pred_check
    _
  $region87: #{bert_classification_forward.1} parent=0 // pred_check_branch
    %70 = sbr.rel (0) target = $region89
  $region88: #{bert_classification_forward.1} parent=0 // pred_region
    _
  $region89: #{bert_classification_forward.1} parent=0 // pred_fallthru
    _
  %v71 = vld [vmem:[%s1] sm:$0xff]
  %v72 = vld [vmem:[%s1 + $0x8] sm:$0xff]
  %v73 = vld [vmem:[%s0] sm:$0xff]
  %v74 = vld [vmem:[%s0 + $0x8] sm:$0xff]
  %v75 = vld [vmem:[%s2] sm:$0x1]
  %v76 = vld [vmem:[%s3] sm:$0x1]
  %vm77 = vcmask 261120
  %v78 = vsel %vm77, %v73, 0.0
  %79 = vadd.xlane.f32.xlu0 %v78
  %v80 = vpop.xlane.xlu0 %79
  %v81 = vsel %vm77, %v74, 0.0
  %82 = vadd.xlane.f32.xlu0 %v81
  %v83 = vpop.xlane.xlu0 %82
  %v84 = vrcp.pop 32.0
  %v85 = vmul.f32 %v80, %v84
  %v86 = vmul.f32 %v83, %v84
  %v87 = vsub.f32 %v73, %v85
  %v88 = vsub.f32 %v74, %v86
  %v89 = vmul.f32 %v87, %v87
  %v90 = vmul.f32 %v88, %v88
  %v91 = vsel %vm77, %v89, 0.0
  %92 = vadd.xlane.f32.xlu0 %v91
  %v93 = vpop.xlane.xlu0 %92
  %v94 = vsel %vm77, %v90, 0.0
  %95 = vadd.xlane.f32.xlu0 %v94
  %v96 = vpop.xlane.xlu0 %95
  %v97 = vmul.f32 %v93, %v84
  %v98 = vmul.f32 %v96, %v84
  %v99 = vadd.f32 %v97, 1e-12
  %v100 = vadd.f32 %v98, 1e-12
  %v101 = vrsqrt.pop %v99
  %v102 = vrsqrt.pop %v100
  %v103 = vmul.f32 %v87, %v101
  %v104 = vmul.f32 %v88, %v102
  %v106 = vlaneseq
  %v107 = vshrl.u32 %v106, 7
  %v108 = vsub.s32 0, %v107
  %v109 = vrot.slane %v75, %v108
  %v111 = vmul.f32 %v103, %v109
  %v112 = vmul.f32 %v104, %v109
  %v114 = vlaneseq
  %v115 = vshrl.u32 %v114, 7
  %v116 = vsub.s32 0, %v115
  %v117 = vrot.slane %v76, %v116
  %v119 = vadd.f32 %v111, %v117
  %v120 = vadd.f32 %v112, %v117
  %v121 = vld [vmem:[%s4] sm:$0xff]
  %v122 = vld [vmem:[%s4 + $0x8] sm:$0xff]
  %v123 = vld [vmem:[%s4 + $0x10] sm:$0xff]
  %v124 = vld [vmem:[%s4 + $0x18] sm:$0xff]
  %v125 = vld [vmem:[%s5] sm:$0x1]
  %v127 = vlaneseq
  %v128 = vshrl.u32 %v127, 7
  %v129 = vsub.s32 0, %v128
  %v130 = vrot.slane %v125, %v129
  %v133 = vsel %vm77, %v119, 0
  %v136 = vsel %vm77, %v120, 0
  %138 = vmatprep.subr.mxu0 0.0
  %139 = vmatpush1.msra.mxu0 0.0
  %140 = vmatprep.subr.mxu0 0.0
  %141 = vmatpush1.msra.mxu0 0.0
  %142 = vmatprep.subr.mxu0 0.0
  %143 = vmatpush1.msra.mxu0 0.0
  %144 = vmatprep.subr.mxu0 0.0
  %145 = vmatpush1.msra.mxu0 0.0
  %146 = vmatprep.subr.mxu0 0.0
  %147 = vmatpush1.msra.mxu0 0.0
  %148 = vmatprep.subr.mxu0 0.0
  %149 = vmatpush1.msra.mxu0 0.0
  %150 = vmatprep.subr.mxu0 0.0
  %151 = vmatpush1.msra.mxu0 0.0
  %152 = vmatprep.subr.mxu0 0.0
  %153 = vmatpush1.msra.mxu0 0.0
  %154 = vmatprep.subr.mxu0 0.0
  %155 = vmatpush1.msra.mxu0 0.0
  %156 = vmatprep.subr.mxu0 0.0
  %157 = vmatpush1.msra.mxu0 0.0
  %158 = vmatprep.subr.mxu0 0.0
  %159 = vmatpush1.msra.mxu0 0.0
  %160 = vmatprep.subr.mxu0 0.0
  %161 = vmatpush1.msra.mxu0 0.0
  %162 = vmatprep.subr.mxu0 0.0
  %163 = vmatpush1.msra.mxu0 %v124
  %164 = vmatprep.subr.mxu0 0.0
  %165 = vmatpush1.msra.mxu0 %v123
  %166 = vmatprep.subr.mxu0 0.0
  %167 = vmatpush1.msra.mxu0 %v122
  %168 = vmatprep.subr.mxu0 0.0
  %169 = vmatpush1.msra.mxu0 %v121
  %170 = vmatprep.subr.mxu0 0.0
  %171 = vmatpush2.msra.mxu0 0.0
  %172 = vmatprep.subr.mxu0 0.0
  %173 = vmatpush2.msra.mxu0 0.0
  %174 = vmatprep.subr.mxu0 0.0
  %175 = vmatpush2.msra.mxu0 0.0
  %176 = vmatprep.subr.mxu0 0.0
  %177 = vmatpush2.msra.mxu0 0.0
  %178 = vmatprep.subr.mxu0 0.0
  %179 = vmatpush2.msra.mxu0 0.0
  %180 = vmatprep.subr.mxu0 0.0
  %181 = vmatpush2.msra.mxu0 0.0
  %182 = vmatprep.subr.mxu0 0.0
  %183 = vmatpush2.msra.mxu0 0.0
  %184 = vmatprep.subr.mxu0 0.0
  %185 = vmatpush2.msra.mxu0 0.0
  %186 = vmatprep.subr.mxu0 0.0
  %187 = vmatpush2.msra.mxu0 0.0
  %188 = vmatprep.subr.mxu0 0.0
  %189 = vmatpush2.msra.mxu0 0.0
  %190 = vmatprep.subr.mxu0 0.0
  %191 = vmatpush2.msra.mxu0 0.0
  %192 = vmatprep.subr.mxu0 0.0
  %193 = vmatpush2.msra.mxu0 0.0
  %194 = vmatprep.subr.mxu0 0.0
  %195 = vmatpush2.msra.mxu0 0.0
  %196 = vmatprep.subr.mxu0 0.0
  %197 = vmatpush2.msra.mxu0 0.0
  %198 = vmatprep.subr.mxu0 0.0
  %199 = vmatpush2.msra.mxu0 0.0
  %200 = vmatprep.subr.mxu0 0.0
  %201 = vmatpush2.msra.mxu0 0.0
  %202 = vmatprep.mubr.f32.mxu0 0.0
  %203 = vmatmul.mubr.f32.gmra.mxu0 %v133
  %v204 = vpop.f32.mrf.mxu0
  %v205 = vadd.f32 %v130, %v204
  %v206 = vpop.f32.mrf.mxu0
  %207 = vmatprep.mubr.f32.mxu0 0.0
  %208 = vmatmul.mubr.f32.gmra.mxu0 %v136
  %v209 = vpop.f32.mrf.mxu0
  %v210 = vadd.f32 %v130, %v209
  %v211 = vpop.f32.mrf.mxu0
  %212 = vdwg.mxu0
  %v213 = vld [vmem:[%s6] sm:$0xff]
  %v214 = vld [vmem:[%s6 + $0x8] sm:$0xff]
  %v215 = vld [vmem:[%s6 + $0x10] sm:$0xff]
  %v216 = vld [vmem:[%s6 + $0x18] sm:$0xff]
  %v217 = vld [vmem:[%s7] sm:$0x1]
  %v219 = vlaneseq
  %v220 = vshrl.u32 %v219, 7
  %v221 = vsub.s32 0, %v220
  %v222 = vrot.slane %v217, %v221
  %224 = vmatprep.subr.mxu0 0.0
  %225 = vmatpush1.msra.mxu0 0.0
  %226 = vmatprep.subr.mxu0 0.0
  %227 = vmatpush1.msra.mxu0 0.0
  %228 = vmatprep.subr.mxu0 0.0
  %229 = vmatpush1.msra.mxu0 0.0
  %230 = vmatprep.subr.mxu0 0.0
  %231 = vmatpush1.msra.mxu0 0.0
  %232 = vmatprep.subr.mxu0 0.0
  %233 = vmatpush1.msra.mxu0 0.0
  %234 = vmatprep.subr.mxu0 0.0
  %235 = vmatpush1.msra.mxu0 0.0
  %236 = vmatprep.subr.mxu0 0.0
  %237 = vmatpush1.msra.mxu0 0.0
  %238 = vmatprep.subr.mxu0 0.0
  %239 = vmatpush1.msra.mxu0 0.0
  %240 = vmatprep.subr.mxu0 0.0
  %241 = vmatpush1.msra.mxu0 0.0
  %242 = vmatprep.subr.mxu0 0.0
  %243 = vmatpush1.msra.mxu0 0.0
  %244 = vmatprep.subr.mxu0 0.0
  %245 = vmatpush1.msra.mxu0 0.0
  %246 = vmatprep.subr.mxu0 0.0
  %247 = vmatpush1.msra.mxu0 0.0
  %248 = vmatprep.subr.mxu0 0.0
  %249 = vmatpush1.msra.mxu0 %v216
  %250 = vmatprep.subr.mxu0 0.0
  %251 = vmatpush1.msra.mxu0 %v215
  %252 = vmatprep.subr.mxu0 0.0
  %253 = vmatpush1.msra.mxu0 %v214
  %254 = vmatprep.subr.mxu0 0.0
  %255 = vmatpush1.msra.mxu0 %v213
  %256 = vmatprep.subr.mxu0 0.0
  %257 = vmatpush2.msra.mxu0 0.0
  %258 = vmatprep.subr.mxu0 0.0
  %259 = vmatpush2.msra.mxu0 0.0
  %260 = vmatprep.subr.mxu0 0.0
  %261 = vmatpush2.msra.mxu0 0.0
  %262 = vmatprep.subr.mxu0 0.0
  %263 = vmatpush2.msra.mxu0 0.0
  %264 = vmatprep.subr.mxu0 0.0
  %265 = vmatpush2.msra.mxu0 0.0
  %266 = vmatprep.subr.mxu0 0.0
  %267 = vmatpush2.msra.mxu0 0.0
  %268 = vmatprep.subr.mxu0 0.0
  %269 = vmatpush2.msra.mxu0 0.0
  %270 = vmatprep.subr.mxu0 0.0
  %271 = vmatpush2.msra.mxu0 0.0
  %272 = vmatprep.subr.mxu0 0.0
  %273 = vmatpush2.msra.mxu0 0.0
  %274 = vmatprep.subr.mxu0 0.0
  %275 = vmatpush2.msra.mxu0 0.0
  %276 = vmatprep.subr.mxu0 0.0
  %277 = vmatpush2.msra.mxu0 0.0
  %278 = vmatprep.subr.mxu0 0.0
  %279 = vmatpush2.msra.mxu0 0.0
  %280 = vmatprep.subr.mxu0 0.0
  %281 = vmatpush2.msra.mxu0 0.0
  %282 = vmatprep.subr.mxu0 0.0
  %283 = vmatpush2.msra.mxu0 0.0
  %284 = vmatprep.subr.mxu0 0.0
  %285 = vmatpush2.msra.mxu0 0.0
  %286 = vmatprep.subr.mxu0 0.0
  %287 = vmatpush2.msra.mxu0 0.0
  %288 = vmatprep.mubr.f32.mxu0 0.0
  %289 = vmatmul.mubr.f32.gmra.mxu0 %v133
  %v290 = vpop.f32.mrf.mxu0
  %v291 = vadd.f32 %v222, %v290
  %v292 = vpop.f32.mrf.mxu0
  %293 = vmatprep.mubr.f32.mxu0 0.0
  %294 = vmatmul.mubr.f32.gmra.mxu0 %v136
  %v295 = vpop.f32.mrf.mxu0
  %v296 = vadd.f32 %v222, %v295
  %v297 = vpop.f32.mrf.mxu0
  %298 = vdwg.mxu0
  %v299 = vld [vmem:[%s8] sm:$0xff]
  %v300 = vld [vmem:[%s8 + $0x8] sm:$0xff]
  %v301 = vld [vmem:[%s8 + $0x10] sm:$0xff]
  %v302 = vld [vmem:[%s8 + $0x18] sm:$0xff]
  %v303 = vld [vmem:[%s9] sm:$0x1]
  %v305 = vlaneseq
  %v306 = vshrl.u32 %v305, 7
  %v307 = vsub.s32 0, %v306
  %v308 = vrot.slane %v303, %v307
  %310 = vmatprep.subr.mxu0 0.0
  %311 = vmatpush1.msra.mxu0 0.0
  %312 = vmatprep.subr.mxu0 0.0
  %313 = vmatpush1.msra.mxu0 0.0
  %314 = vmatprep.subr.mxu0 0.0
  %315 = vmatpush1.msra.mxu0 0.0
  %316 = vmatprep.subr.mxu0 0.0
  %317 = vmatpush1.msra.mxu0 0.0
  %318 = vmatprep.subr.mxu0 0.0
  %319 = vmatpush1.msra.mxu0 0.0
  %320 = vmatprep.subr.mxu0 0.0
  %321 = vmatpush1.msra.mxu0 0.0
  %322 = vmatprep.subr.mxu0 0.0
  %323 = vmatpush1.msra.mxu0 0.0
  %324 = vmatprep.subr.mxu0 0.0
  %325 = vmatpush1.msra.mxu0 0.0
  %326 = vmatprep.subr.mxu0 0.0
  %327 = vmatpush1.msra.mxu0 0.0
  %328 = vmatprep.subr.mxu0 0.0
  %329 = vmatpush1.msra.mxu0 0.0
  %330 = vmatprep.subr.mxu0 0.0
  %331 = vmatpush1.msra.mxu0 0.0
  %332 = vmatprep.subr.mxu0 0.0
  %333 = vmatpush1.msra.mxu0 0.0
  %334 = vmatprep.subr.mxu0 0.0
  %335 = vmatpush1.msra.mxu0 %v302
  %336 = vmatprep.subr.mxu0 0.0
  %337 = vmatpush1.msra.mxu0 %v301
  %338 = vmatprep.subr.mxu0 0.0
  %339 = vmatpush1.msra.mxu0 %v300
  %340 = vmatprep.subr.mxu0 0.0
  %341 = vmatpush1.msra.mxu0 %v299
  %342 = vmatprep.subr.mxu0 0.0
  %343 = vmatpush2.msra.mxu0 0.0
  %344 = vmatprep.subr.mxu0 0.0
  %345 = vmatpush2.msra.mxu0 0.0
  %346 = vmatprep.subr.mxu0 0.0
  %347 = vmatpush2.msra.mxu0 0.0
  %348 = vmatprep.subr.mxu0 0.0
  %349 = vmatpush2.msra.mxu0 0.0
  %350 = vmatprep.subr.mxu0 0.0
  %351 = vmatpush2.msra.mxu0 0.0
  %352 = vmatprep.subr.mxu0 0.0
  %353 = vmatpush2.msra.mxu0 0.0
  %354 = vmatprep.subr.mxu0 0.0
  %355 = vmatpush2.msra.mxu0 0.0
  %356 = vmatprep.subr.mxu0 0.0
  %357 = vmatpush2.msra.mxu0 0.0
  %358 = vmatprep.subr.mxu0 0.0
  %359 = vmatpush2.msra.mxu0 0.0
  %360 = vmatprep.subr.mxu0 0.0
  %361 = vmatpush2.msra.mxu0 0.0
  %362 = vmatprep.subr.mxu0 0.0
  %363 = vmatpush2.msra.mxu0 0.0
  %364 = vmatprep.subr.mxu0 0.0
  %365 = vmatpush2.msra.mxu0 0.0
  %366 = vmatprep.subr.mxu0 0.0
  %367 = vmatpush2.msra.mxu0 0.0
  %368 = vmatprep.subr.mxu0 0.0
  %369 = vmatpush2.msra.mxu0 0.0
  %370 = vmatprep.subr.mxu0 0.0
  %371 = vmatpush2.msra.mxu0 0.0
  %372 = vmatprep.subr.mxu0 0.0
  %373 = vmatpush2.msra.mxu0 0.0
  %374 = vmatprep.mubr.f32.mxu0 0.0
  %375 = vmatmul.mubr.f32.gmra.mxu0 %v133
  %v376 = vpop.f32.mrf.mxu0
  %v377 = vadd.f32 %v308, %v376
  %v378 = vpop.f32.mrf.mxu0
  %379 = vmatprep.mubr.f32.mxu0 0.0
  %380 = vmatmul.mubr.f32.gmra.mxu0 %v136
  %v381 = vpop.f32.mrf.mxu0
  %v382 = vadd.f32 %v308, %v381
  %v383 = vpop.f32.mrf.mxu0
  %384 = vdwg.mxu0
  %vm385 = vcmask 130048
  %v387 = vsel %vm385, %v205, 0
  %v390 = vsel %vm385, %v210, 0
  %v393 = vsel %vm385, %v291, 0
  %v396 = vsel %vm385, %v296, 0
  %398 = vmatprep.subr.mxu0 0.0
  %399 = vmatpush1.xpose.msra.mxu0 0.0
  %400 = vmatprep.subr.mxu0 0.0
  %401 = vmatpush1.xpose.msra.mxu0 0.0
  %402 = vmatprep.subr.mxu0 0.0
  %403 = vmatpush1.xpose.msra.mxu0 0.0
  %404 = vmatprep.subr.mxu0 0.0
  %405 = vmatpush1.xpose.msra.mxu0 0.0
  %406 = vmatprep.subr.mxu0 0.0
  %407 = vmatpush1.xpose.msra.mxu0 0.0
  %408 = vmatprep.subr.mxu0 0.0
  %409 = vmatpush1.xpose.msra.mxu0 0.0
  %410 = vmatprep.subr.mxu0 0.0
  %411 = vmatpush1.xpose.msra.mxu0 0.0
  %412 = vmatprep.subr.mxu0 0.0
  %413 = vmatpush1.xpose.msra.mxu0 0.0
  %414 = vmatprep.subr.mxu0 0.0
  %415 = vmatpush1.xpose.msra.mxu0 0.0
  %416 = vmatprep.subr.mxu0 0.0
  %417 = vmatpush1.xpose.msra.mxu0 0.0
  %418 = vmatprep.subr.mxu0 0.0
  %419 = vmatpush1.xpose.msra.mxu0 0.0
  %420 = vmatprep.subr.mxu0 0.0
  %421 = vmatpush1.xpose.msra.mxu0 0.0
  %422 = vmatprep.subr.mxu0 0.0
  %423 = vmatpush1.xpose.msra.mxu0 0.0
  %424 = vmatprep.subr.mxu0 0.0
  %425 = vmatpush1.xpose.msra.mxu0 0.0
  %426 = vmatprep.subr.mxu0 0.0
  %427 = vmatpush1.xpose.msra.mxu0 %v396
  %428 = vmatprep.subr.mxu0 0.0
  %429 = vmatpush1.xpose.msra.mxu0 %v393
  %430 = vmatprep.subr.mxu0 0.0
  %431 = vmatpush2.xpose.msra.mxu0 0.0
  %432 = vmatprep.subr.mxu0 0.0
  %433 = vmatpush2.xpose.msra.mxu0 0.0
  %434 = vmatprep.subr.mxu0 0.0
  %435 = vmatpush2.xpose.msra.mxu0 0.0
  %436 = vmatprep.subr.mxu0 0.0
  %437 = vmatpush2.xpose.msra.mxu0 0.0
  %438 = vmatprep.subr.mxu0 0.0
  %439 = vmatpush2.xpose.msra.mxu0 0.0
  %440 = vmatprep.subr.mxu0 0.0
  %441 = vmatpush2.xpose.msra.mxu0 0.0
  %442 = vmatprep.subr.mxu0 0.0
  %443 = vmatpush2.xpose.msra.mxu0 0.0
  %444 = vmatprep.subr.mxu0 0.0
  %445 = vmatpush2.xpose.msra.mxu0 0.0
  %446 = vmatprep.subr.mxu0 0.0
  %447 = vmatpush2.xpose.msra.mxu0 0.0
  %448 = vmatprep.subr.mxu0 0.0
  %449 = vmatpush2.xpose.msra.mxu0 0.0
  %450 = vmatprep.subr.mxu0 0.0
  %451 = vmatpush2.xpose.msra.mxu0 0.0
  %452 = vmatprep.subr.mxu0 0.0
  %453 = vmatpush2.xpose.msra.mxu0 0.0
  %454 = vmatprep.subr.mxu0 0.0
  %455 = vmatpush2.xpose.msra.mxu0 0.0
  %456 = vmatprep.subr.mxu0 0.0
  %457 = vmatpush2.xpose.msra.mxu0 0.0
  %458 = vmatprep.subr.mxu0 0.0
  %459 = vmatpush2.xpose.msra.mxu0 0.0
  %460 = vmatprep.subr.mxu0 0.0
  %461 = vmatpush2.xpose.msra.mxu0 0.0
  %462 = vmatprep.mubr.f32.mxu0 0.0
  %463 = vmatmul.mubr.f32.gmra.mxu0 %v387
  %v464 = vpop.f32.mrf.mxu0
  %v465 = vadd.f32 0.0, %v464
  %v466 = vpop.f32.mrf.mxu0
  %467 = vmatprep.mubr.f32.mxu0 0.0
  %468 = vmatmul.mubr.f32.gmra.mxu0 %v390
  %v469 = vpop.f32.mrf.mxu0
  %v470 = vadd.f32 0.0, %v469
  %v471 = vpop.f32.mrf.mxu0
  %472 = vdwg.mxu0
  %v473 = vmul.f32 %v465, 0.25
  %v474 = vmul.f32 %v470, 0.25
  %v475 = vadd.f32 %v473, %v71
  %v476 = vadd.f32 %v474, %v72
  %v477 = vsel %vm385, %v475, -inf
  %478 = vmax.xlane.f32.xlu0 %v477
  %v479 = vpop.xlane.xlu0 %478
  %v480 = vsel %vm385, %v476, -inf
  %481 = vmax.xlane.f32.xlu0 %v480
  %v482 = vpop.xlane.xlu0 %481
  %v483 = vsub.f32 %v475, %v479
  %v484 = vsub.f32 %v476, %v482
  %v485 = vmul.f32 %v483, 1.442695
  %v486 = vpow.pop %v485
  %v487 = vmul.f32 %v484, 1.442695
  %v488 = vpow.pop %v487
  %v489 = vsel %vm385, %v486, 0.0
  %490 = vadd.xlane.f32.xlu0 %v489
  %v491 = vpop.xlane.xlu0 %490
  %v492 = vsel %vm385, %v488, 0.0
  %493 = vadd.xlane.f32.xlu0 %v492
  %v494 = vpop.xlane.xlu0 %493
  %v495 = vrcp.pop %v491
  %v496 = vrcp.pop %v494
  %v497 = vmul.f32 %v486, %v495
  %v498 = vmul.f32 %v488, %v496
  %v500 = vsel %vm385, %v497, 0
  %v503 = vsel %vm385, %v498, 0
  %505 = vmatprep.subr.mxu0 0.0
  %506 = vmatpush1.msra.mxu0 0.0
  %507 = vmatprep.subr.mxu0 0.0
  %508 = vmatpush1.msra.mxu0 0.0
  %509 = vmatprep.subr.mxu0 0.0
  %510 = vmatpush1.msra.mxu0 0.0
  %511 = vmatprep.subr.mxu0 0.0
  %512 = vmatpush1.msra.mxu0 0.0
  %513 = vmatprep.subr.mxu0 0.0
  %514 = vmatpush1.msra.mxu0 0.0
  %515 = vmatprep.subr.mxu0 0.0
  %516 = vmatpush1.msra.mxu0 0.0
  %517 = vmatprep.subr.mxu0 0.0
  %518 = vmatpush1.msra.mxu0 0.0
  %519 = vmatprep.subr.mxu0 0.0
  %520 = vmatpush1.msra.mxu0 0.0
  %521 = vmatprep.subr.mxu0 0.0
  %522 = vmatpush1.msra.mxu0 0.0
  %523 = vmatprep.subr.mxu0 0.0
  %524 = vmatpush1.msra.mxu0 0.0
  %525 = vmatprep.subr.mxu0 0.0
  %526 = vmatpush1.msra.mxu0 0.0
  %527 = vmatprep.subr.mxu0 0.0
  %528 = vmatpush1.msra.mxu0 0.0
  %529 = vmatprep.subr.mxu0 0.0
  %530 = vmatpush1.msra.mxu0 0.0
  %531 = vmatprep.subr.mxu0 0.0
  %532 = vmatpush1.msra.mxu0 0.0
  %533 = vmatprep.subr.mxu0 0.0
  %534 = vmatpush1.msra.mxu0 %v382
  %535 = vmatprep.subr.mxu0 0.0
  %536 = vmatpush1.msra.mxu0 %v377
  %537 = vmatprep.subr.mxu0 0.0
  %538 = vmatpush2.msra.mxu0 0.0
  %539 = vmatprep.subr.mxu0 0.0
  %540 = vmatpush2.msra.mxu0 0.0
  %541 = vmatprep.subr.mxu0 0.0
  %542 = vmatpush2.msra.mxu0 0.0
  %543 = vmatprep.subr.mxu0 0.0
  %544 = vmatpush2.msra.mxu0 0.0
  %545 = vmatprep.subr.mxu0 0.0
  %546 = vmatpush2.msra.mxu0 0.0
  %547 = vmatprep.subr.mxu0 0.0
  %548 = vmatpush2.msra.mxu0 0.0
  %549 = vmatprep.subr.mxu0 0.0
  %550 = vmatpush2.msra.mxu0 0.0
  %551 = vmatprep.subr.mxu0 0.0
  %552 = vmatpush2.msra.mxu0 0.0
  %553 = vmatprep.subr.mxu0 0.0
  %554 = vmatpush2.msra.mxu0 0.0
  %555 = vmatprep.subr.mxu0 0.0
  %556 = vmatpush2.msra.mxu0 0.0
  %557 = vmatprep.subr.mxu0 0.0
  %558 = vmatpush2.msra.mxu0 0.0
  %559 = vmatprep.subr.mxu0 0.0
  %560 = vmatpush2.msra.mxu0 0.0
  %561 = vmatprep.subr.mxu0 0.0
  %562 = vmatpush2.msra.mxu0 0.0
  %563 = vmatprep.subr.mxu0 0.0
  %564 = vmatpush2.msra.mxu0 0.0
  %565 = vmatprep.subr.mxu0 0.0
  %566 = vmatpush2.msra.mxu0 0.0
  %567 = vmatprep.subr.mxu0 0.0
  %568 = vmatpush2.msra.mxu0 0.0
  %569 = vmatprep.mubr.f32.mxu0 0.0
  %570 = vmatmul.mubr.f32.gmra.mxu0 %v500
  %v571 = vpop.f32.mrf.mxu0
  %v572 = vadd.f32 0.0, %v571
  %v573 = vpop.f32.mrf.mxu0
  %574 = vmatprep.mubr.f32.mxu0 0.0
  %575 = vmatmul.mubr.f32.gmra.mxu0 %v503
  %v576 = vpop.f32.mrf.mxu0
  %v577 = vadd.f32 0.0, %v576
  %v578 = vpop.f32.mrf.mxu0
  %579 = vdwg.mxu0
  %v580 = vld [vmem:[%s10] sm:$0xff]
  %v581 = vld [vmem:[%s10 + $0x8] sm:$0xff]
  %s582 = scalar_lea.vmem %s4, 32
  %v583 = vld [vmem:[%s582] sm:$0xff]
  %v584 = vld [vmem:[%s582 + $0x8] sm:$0xff]
  %v585 = vld [vmem:[%s582 + $0x10] sm:$0xff]
  %v586 = vld [vmem:[%s582 + $0x18] sm:$0xff]
  %s587 = scalar_lea.vmem %s5, 1
  %v588 = vld [vmem:[%s587] sm:$0x1]
  %v590 = vlaneseq
  %v591 = vshrl.u32 %v590, 7
  %v592 = vsub.s32 0, %v591
  %v593 = vrot.slane %v588, %v592
  %595 = vmatprep.subr.mxu0 0.0
  %596 = vmatpush1.msra.mxu0 0.0
  %597 = vmatprep.subr.mxu0 0.0
  %598 = vmatpush1.msra.mxu0 0.0
  %599 = vmatprep.subr.mxu0 0.0
  %600 = vmatpush1.msra.mxu0 0.0
  %601 = vmatprep.subr.mxu0 0.0
  %602 = vmatpush1.msra.mxu0 0.0
  %603 = vmatprep.subr.mxu0 0.0
  %604 = vmatpush1.msra.mxu0 0.0
  %605 = vmatprep.subr.mxu0 0.0
  %606 = vmatpush1.msra.mxu0 0.0
  %607 = vmatprep.subr.mxu0 0.0
  %608 = vmatpush1.msra.mxu0 0.0
  %609 = vmatprep.subr.mxu0 0.0
  %610 = vmatpush1.msra.mxu0 0.0
  %611 = vmatprep.subr.mxu0 0.0
  %612 = vmatpush1.msra.mxu0 0.0
  %613 = vmatprep.subr.mxu0 0.0
  %614 = vmatpush1.msra.mxu0 0.0
  %615 = vmatprep.subr.mxu0 0.0
  %616 = vmatpush1.msra.mxu0 0.0
  %617 = vmatprep.subr.mxu0 0.0
  %618 = vmatpush1.msra.mxu0 0.0
  %619 = vmatprep.subr.mxu0 0.0
  %620 = vmatpush1.msra.mxu0 %v586
  %621 = vmatprep.subr.mxu0 0.0
  %622 = vmatpush1.msra.mxu0 %v585
  %623 = vmatprep.subr.mxu0 0.0
  %624 = vmatpush1.msra.mxu0 %v584
  %625 = vmatprep.subr.mxu0 0.0
  %626 = vmatpush1.msra.mxu0 %v583
  %627 = vmatprep.subr.mxu0 0.0
  %628 = vmatpush2.msra.mxu0 0.0
  %629 = vmatprep.subr.mxu0 0.0
  %630 = vmatpush2.msra.mxu0 0.0
  %631 = vmatprep.subr.mxu0 0.0
  %632 = vmatpush2.msra.mxu0 0.0
  %633 = vmatprep.subr.mxu0 0.0
  %634 = vmatpush2.msra.mxu0 0.0
  %635 = vmatprep.subr.mxu0 0.0
  %636 = vmatpush2.msra.mxu0 0.0
  %637 = vmatprep.subr.mxu0 0.0
  %638 = vmatpush2.msra.mxu0 0.0
  %639 = vmatprep.subr.mxu0 0.0
  %640 = vmatpush2.msra.mxu0 0.0
  %641 = vmatprep.subr.mxu0 0.0
  %642 = vmatpush2.msra.mxu0 0.0
  %643 = vmatprep.subr.mxu0 0.0
  %644 = vmatpush2.msra.mxu0 0.0
  %645 = vmatprep.subr.mxu0 0.0
  %646 = vmatpush2.msra.mxu0 0.0
  %647 = vmatprep.subr.mxu0 0.0
  %648 = vmatpush2.msra.mxu0 0.0
  %649 = vmatprep.subr.mxu0 0.0
  %650 = vmatpush2.msra.mxu0 0.0
  %651 = vmatprep.subr.mxu0 0.0
  %652 = vmatpush2.msra.mxu0 0.0
  %653 = vmatprep.subr.mxu0 0.0
  %654 = vmatpush2.msra.mxu0 0.0
  %655 = vmatprep.subr.mxu0 0.0
  %656 = vmatpush2.msra.mxu0 0.0
  %657 = vmatprep.subr.mxu0 0.0
  %658 = vmatpush2.msra.mxu0 0.0
  %659 = vmatprep.mubr.f32.mxu0 0.0
  %660 = vmatmul.mubr.f32.gmra.mxu0 %v133
  %v661 = vpop.f32.mrf.mxu0
  %v662 = vadd.f32 %v593, %v661
  %v663 = vpop.f32.mrf.mxu0
  %664 = vmatprep.mubr.f32.mxu0 0.0
  %665 = vmatmul.mubr.f32.gmra.mxu0 %v136
  %v666 = vpop.f32.mrf.mxu0
  %v667 = vadd.f32 %v593, %v666
  %v668 = vpop.f32.mrf.mxu0
  %669 = vdwg.mxu0
  %s670 = scalar_lea.vmem %s6, 32
  %v671 = vld [vmem:[%s670] sm:$0xff]
  %v672 = vld [vmem:[%s670 + $0x8] sm:$0xff]
  %v673 = vld [vmem:[%s670 + $0x10] sm:$0xff]
  %v674 = vld [vmem:[%s670 + $0x18] sm:$0xff]
  %s675 = scalar_lea.vmem %s7, 1
  %v676 = vld [vmem:[%s675] sm:$0x1]
  %v678 = vlaneseq
  %v679 = vshrl.u32 %v678, 7
  %v680 = vsub.s32 0, %v679
  %v681 = vrot.slane %v676, %v680
  %683 = vmatprep.subr.mxu0 0.0
  %684 = vmatpush1.msra.mxu0 0.0
  %685 = vmatprep.subr.mxu0 0.0
  %686 = vmatpush1.msra.mxu0 0.0
  %687 = vmatprep.subr.mxu0 0.0
  %688 = vmatpush1.msra.mxu0 0.0
  %689 = vmatprep.subr.mxu0 0.0
  %690 = vmatpush1.msra.mxu0 0.0
  %691 = vmatprep.subr.mxu0 0.0
  %692 = vmatpush1.msra.mxu0 0.0
  %693 = vmatprep.subr.mxu0 0.0
  %694 = vmatpush1.msra.mxu0 0.0
  %695 = vmatprep.subr.mxu0 0.0
  %696 = vmatpush1.msra.mxu0 0.0
  %697 = vmatprep.subr.mxu0 0.0
  %698 = vmatpush1.msra.mxu0 0.0
  %699 = vmatprep.subr.mxu0 0.0
  %700 = vmatpush1.msra.mxu0 0.0
  %701 = vmatprep.subr.mxu0 0.0
  %702 = vmatpush1.msra.mxu0 0.0
  %703 = vmatprep.subr.mxu0 0.0
  %704 = vmatpush1.msra.mxu0 0.0
  %705 = vmatprep.subr.mxu0 0.0
  %706 = vmatpush1.msra.mxu0 0.0
  %707 = vmatprep.subr.mxu0 0.0
  %708 = vmatpush1.msra.mxu0 %v674
  %709 = vmatprep.subr.mxu0 0.0
  %710 = vmatpush1.msra.mxu0 %v673
  %711 = vmatprep.subr.mxu0 0.0
  %712 = vmatpush1.msra.mxu0 %v672
  %713 = vmatprep.subr.mxu0 0.0
  %714 = vmatpush1.msra.mxu0 %v671
  %715 = vmatprep.subr.mxu0 0.0
  %716 = vmatpush2.msra.mxu0 0.0
  %717 = vmatprep.subr.mxu0 0.0
  %718 = vmatpush2.msra.mxu0 0.0
  %719 = vmatprep.subr.mxu0 0.0
  %720 = vmatpush2.msra.mxu0 0.0
  %721 = vmatprep.subr.mxu0 0.0
  %722 = vmatpush2.msra.mxu0 0.0
  %723 = vmatprep.subr.mxu0 0.0
  %724 = vmatpush2.msra.mxu0 0.0
  %725 = vmatprep.subr.mxu0 0.0
  %726 = vmatpush2.msra.mxu0 0.0
  %727 = vmatprep.subr.mxu0 0.0
  %728 = vmatpush2.msra.mxu0 0.0
  %729 = vmatprep.subr.mxu0 0.0
  %730 = vmatpush2.msra.mxu0 0.0
  %731 = vmatprep.subr.mxu0 0.0
  %732 = vmatpush2.msra.mxu0 0.0
  %733 = vmatprep.subr.mxu0 0.0
  %734 = vmatpush2.msra.mxu0 0.0
  %735 = vmatprep.subr.mxu0 0.0
  %736 = vmatpush2.msra.mxu0 0.0
  %737 = vmatprep.subr.mxu0 0.0
  %738 = vmatpush2.msra.mxu0 0.0
  %739 = vmatprep.subr.mxu0 0.0
  %740 = vmatpush2.msra.mxu0 0.0
  %741 = vmatprep.subr.mxu0 0.0
  %742 = vmatpush2.msra.mxu0 0.0
  %743 = vmatprep.subr.mxu0 0.0
  %744 = vmatpush2.msra.mxu0 0.0
  %745 = vmatprep.subr.mxu0 0.0
  %746 = vmatpush2.msra.mxu0 0.0
  %747 = vmatprep.mubr.f32.mxu0 0.0
  %748 = vmatmul.mubr.f32.gmra.mxu0 %v133
  %v749 = vpop.f32.mrf.mxu0
  %v750 = vadd.f32 %v681, %v749
  %v751 = vpop.f32.mrf.mxu0
  %752 = vmatprep.mubr.f32.mxu0 0.0
  %753 = vmatmul.mubr.f32.gmra.mxu0 %v136
  %v754 = vpop.f32.mrf.mxu0
  %v755 = vadd.f32 %v681, %v754
  %v756 = vpop.f32.mrf.mxu0
  %757 = vdwg.mxu0
  %s758 = scalar_lea.vmem %s8, 32
  %v759 = vld [vmem:[%s758] sm:$0xff]
  %v760 = vld [vmem:[%s758 + $0x8] sm:$0xff]
  %v761 = vld [vmem:[%s758 + $0x10] sm:$0xff]
  %v762 = vld [vmem:[%s758 + $0x18] sm:$0xff]
  %s763 = scalar_lea.vmem %s9, 1
  %v764 = vld [vmem:[%s763] sm:$0x1]
  %v766 = vlaneseq
  %v767 = vshrl.u32 %v766, 7
  %v768 = vsub.s32 0, %v767
  %v769 = vrot.slane %v764, %v768
  %771 = vmatprep.subr.mxu0 0.0
  %772 = vmatpush1.msra.mxu0 0.0
  %773 = vmatprep.subr.mxu0 0.0
  %774 = vmatpush1.msra.mxu0 0.0
  %775 = vmatprep.subr.mxu0 0.0
  %776 = vmatpush1.msra.mxu0 0.0
  %777 = vmatprep.subr.mxu0 0.0
  %778 = vmatpush1.msra.mxu0 0.0
  %779 = vmatprep.subr.mxu0 0.0
  %780 = vmatpush1.msra.mxu0 0.0
  %781 = vmatprep.subr.mxu0 0.0
  %782 = vmatpush1.msra.mxu0 0.0
  %783 = vmatprep.subr.mxu0 0.0
  %784 = vmatpush1.msra.mxu0 0.0
  %785 = vmatprep.subr.mxu0 0.0
  %786 = vmatpush1.msra.mxu0 0.0
  %787 = vmatprep.subr.mxu0 0.0
  %788 = vmatpush1.msra.mxu0 0.0
  %789 = vmatprep.subr.mxu0 0.0
  %790 = vmatpush1.msra.mxu0 0.0
  %791 = vmatprep.subr.mxu0 0.0
  %792 = vmatpush1.msra.mxu0 0.0
  %793 = vmatprep.subr.mxu0 0.0
  %794 = vmatpush1.msra.mxu0 0.0
  %795 = vmatprep.subr.mxu0 0.0
  %796 = vmatpush1.msra.mxu0 %v762
  %797 = vmatprep.subr.mxu0 0.0
  %798 = vmatpush1.msra.mxu0 %v761
  %799 = vmatprep.subr.mxu0 0.0
  %800 = vmatpush1.msra.mxu0 %v760
  %801 = vmatprep.subr.mxu0 0.0
  %802 = vmatpush1.msra.mxu0 %v759
  %803 = vmatprep.subr.mxu0 0.0
  %804 = vmatpush2.msra.mxu0 0.0
  %805 = vmatprep.subr.mxu0 0.0
  %806 = vmatpush2.msra.mxu0 0.0
  %807 = vmatprep.subr.mxu0 0.0
  %808 = vmatpush2.msra.mxu0 0.0
  %809 = vmatprep.subr.mxu0 0.0
  %810 = vmatpush2.msra.mxu0 0.0
  %811 = vmatprep.subr.mxu0 0.0
  %812 = vmatpush2.msra.mxu0 0.0
  %813 = vmatprep.subr.mxu0 0.0
  %814 = vmatpush2.msra.mxu0 0.0
  %815 = vmatprep.subr.mxu0 0.0
  %816 = vmatpush2.msra.mxu0 0.0
  %817 = vmatprep.subr.mxu0 0.0
  %818 = vmatpush2.msra.mxu0 0.0
  %819 = vmatprep.subr.mxu0 0.0
  %820 = vmatpush2.msra.mxu0 0.0
  %821 = vmatprep.subr.mxu0 0.0
  %822 = vmatpush2.msra.mxu0 0.0
  %823 = vmatprep.subr.mxu0 0.0
  %824 = vmatpush2.msra.mxu0 0.0
  %825 = vmatprep.subr.mxu0 0.0
  %826 = vmatpush2.msra.mxu0 0.0
  %827 = vmatprep.subr.mxu0 0.0
  %828 = vmatpush2.msra.mxu0 0.0
  %829 = vmatprep.subr.mxu0 0.0
  %830 = vmatpush2.msra.mxu0 0.0
  %831 = vmatprep.subr.mxu0 0.0
  %832 = vmatpush2.msra.mxu0 0.0
  %833 = vmatprep.subr.mxu0 0.0
  %834 = vmatpush2.msra.mxu0 0.0
  %835 = vmatprep.mubr.f32.mxu0 0.0
  %836 = vmatmul.mubr.f32.gmra.mxu0 %v133
  %v837 = vpop.f32.mrf.mxu0
  %v838 = vadd.f32 %v769, %v837
  %v839 = vpop.f32.mrf.mxu0
  %840 = vmatprep.mubr.f32.mxu0 0.0
  %841 = vmatmul.mubr.f32.gmra.mxu0 %v136
  %v842 = vpop.f32.mrf.mxu0
  %v843 = vadd.f32 %v769, %v842
  %v844 = vpop.f32.mrf.mxu0
  %845 = vdwg.mxu0
  %v847 = vsel %vm385, %v662, 0
  %v850 = vsel %vm385, %v667, 0
  %v853 = vsel %vm385, %v750, 0
  %v856 = vsel %vm385, %v755, 0
  %858 = vmatprep.subr.mxu0 0.0
  %859 = vmatpush1.xpose.msra.mxu0 0.0
  %860 = vmatprep.subr.mxu0 0.0
  %861 = vmatpush1.xpose.msra.mxu0 0.0
  %862 = vmatprep.subr.mxu0 0.0
  %863 = vmatpush1.xpose.msra.mxu0 0.0
  %864 = vmatprep.subr.mxu0 0.0
  %865 = vmatpush1.xpose.msra.mxu0 0.0
  %866 = vmatprep.subr.mxu0 0.0
  %867 = vmatpush1.xpose.msra.mxu0 0.0
  %868 = vmatprep.subr.mxu0 0.0
  %869 = vmatpush1.xpose.msra.mxu0 0.0
  %870 = vmatprep.subr.mxu0 0.0
  %871 = vmatpush1.xpose.msra.mxu0 0.0
  %872 = vmatprep.subr.mxu0 0.0
  %873 = vmatpush1.xpose.msra.mxu0 0.0
  %874 = vmatprep.subr.mxu0 0.0
  %875 = vmatpush1.xpose.msra.mxu0 0.0
  %876 = vmatprep.subr.mxu0 0.0
  %877 = vmatpush1.xpose.msra.mxu0 0.0
  %878 = vmatprep.subr.mxu0 0.0
  %879 = vmatpush1.xpose.msra.mxu0 0.0
  %880 = vmatprep.subr.mxu0 0.0
  %881 = vmatpush1.xpose.msra.mxu0 0.0
  %882 = vmatprep.subr.mxu0 0.0
  %883 = vmatpush1.xpose.msra.mxu0 0.0
  %884 = vmatprep.subr.mxu0 0.0
  %885 = vmatpush1.xpose.msra.mxu0 0.0
  %886 = vmatprep.subr.mxu0 0.0
  %887 = vmatpush1.xpose.msra.mxu0 %v856
  %888 = vmatprep.subr.mxu0 0.0
  %889 = vmatpush1.xpose.msra.mxu0 %v853
  %890 = vmatprep.subr.mxu0 0.0
  %891 = vmatpush2.xpose.msra.mxu0 0.0
  %892 = vmatprep.subr.mxu0 0.0
  %893 = vmatpush2.xpose.msra.mxu0 0.0
  %894 = vmatprep.subr.mxu0 0.0
  %895 = vmatpush2.xpose.msra.mxu0 0.0
  %896 = vmatprep.subr.mxu0 0.0
  %897 = vmatpush2.xpose.msra.mxu0 0.0
  %898 = vmatprep.subr.mxu0 0.0
  %899 = vmatpush2.xpose.msra.mxu0 0.0
  %900 = vmatprep.subr.mxu0 0.0
  %901 = vmatpush2.xpose.msra.mxu0 0.0
  %902 = vmatprep.subr.mxu0 0.0
  %903 = vmatpush2.xpose.msra.mxu0 0.0
  %904 = vmatprep.subr.mxu0 0.0
  %905 = vmatpush2.xpose.msra.mxu0 0.0
  %906 = vmatprep.subr.mxu0 0.0
  %907 = vmatpush2.xpose.msra.mxu0 0.0
  %908 = vmatprep.subr.mxu0 0.0
  %909 = vmatpush2.xpose.msra.mxu0 0.0
  %910 = vmatprep.subr.mxu0 0.0
  %911 = vmatpush2.xpose.msra.mxu0 0.0
  %912 = vmatprep.subr.mxu0 0.0
  %913 = vmatpush2.xpose.msra.mxu0 0.0
  %914 = vmatprep.subr.mxu0 0.0
  %915 = vmatpush2.xpose.msra.mxu0 0.0
  %916 = vmatprep.subr.mxu0 0.0
  %917 = vmatpush2.xpose.msra.mxu0 0.0
  %918 = vmatprep.subr.mxu0 0.0
  %919 = vmatpush2.xpose.msra.mxu0 0.0
  %920 = vmatprep.subr.mxu0 0.0
  %921 = vmatpush2.xpose.msra.mxu0 0.0
  %922 = vmatprep.mubr.f32.mxu0 0.0
  %923 = vmatmul.mubr.f32.gmra.mxu0 %v847
  %v924 = vpop.f32.mrf.mxu0
  %v925 = vadd.f32 0.0, %v924
  %v926 = vpop.f32.mrf.mxu0
  %927 = vmatprep.mubr.f32.mxu0 0.0
  %928 = vmatmul.mubr.f32.gmra.mxu0 %v850
  %v929 = vpop.f32.mrf.mxu0
  %v930 = vadd.f32 0.0, %v929
  %v931 = vpop.f32.mrf.mxu0
  %932 = vdwg.mxu0
  %v933 = vmul.f32 %v925, 0.25
  %v934 = vmul.f32 %v930, 0.25
  %v935 = vadd.f32 %v933, %v71
  %v936 = vadd.f32 %v934, %v72
  %v937 = vsel %vm385, %v935, -inf
  %938 = vmax.xlane.f32.xlu0 %v937
  %v939 = vpop.xlane.xlu0 %938
  %v940 = vsel %vm385, %v936, -inf
  %941 = vmax.xlane.f32.xlu0 %v940
  %v942 = vpop.xlane.xlu0 %941
  %v943 = vsub.f32 %v935, %v939
  %v944 = vsub.f32 %v936, %v942
  %v945 = vmul.f32 %v943, 1.442695
  %v946 = vpow.pop %v945
  %v947 = vmul.f32 %v944, 1.442695
  %v948 = vpow.pop %v947
  %v949 = vsel %vm385, %v946, 0.0
  %950 = vadd.xlane.f32.xlu0 %v949
  %v951 = vpop.xlane.xlu0 %950
  %v952 = vsel %vm385, %v948, 0.0
  %953 = vadd.xlane.f32.xlu0 %v952
  %v954 = vpop.xlane.xlu0 %953
  %v955 = vrcp.pop %v951
  %v956 = vrcp.pop %v954
  %v957 = vmul.f32 %v946, %v955
  %v958 = vmul.f32 %v948, %v956
  %v960 = vsel %vm385, %v957, 0
  %v963 = vsel %vm385, %v958, 0
  %965 = vmatprep.subr.mxu0 0.0
  %966 = vmatpush1.msra.mxu0 0.0
  %967 = vmatprep.subr.mxu0 0.0
  %968 = vmatpush1.msra.mxu0 0.0
  %969 = vmatprep.subr.mxu0 0.0
  %970 = vmatpush1.msra.mxu0 0.0
  %971 = vmatprep.subr.mxu0 0.0
  %972 = vmatpush1.msra.mxu0 0.0
  %973 = vmatprep.subr.mxu0 0.0
  %974 = vmatpush1.msra.mxu0 0.0
  %975 = vmatprep.subr.mxu0 0.0
  %976 = vmatpush1.msra.mxu0 0.0
  %977 = vmatprep.subr.mxu0 0.0
  %978 = vmatpush1.msra.mxu0 0.0
  %979 = vmatprep.subr.mxu0 0.0
  %980 = vmatpush1.msra.mxu0 0.0
  %981 = vmatprep.subr.mxu0 0.0
  %982 = vmatpush1.msra.mxu0 0.0
  %983 = vmatprep.subr.mxu0 0.0
  %984 = vmatpush1.msra.mxu0 0.0
  %985 = vmatprep.subr.mxu0 0.0
  %986 = vmatpush1.msra.mxu0 0.0
  %987 = vmatprep.subr.mxu0 0.0
  %988 = vmatpush1.msra.mxu0 0.0
  %989 = vmatprep.subr.mxu0 0.0
  %990 = vmatpush1.msra.mxu0 0.0
  %991 = vmatprep.subr.mxu0 0.0
  %992 = vmatpush1.msra.mxu0 0.0
  %993 = vmatprep.subr.mxu0 0.0
  %994 = vmatpush1.msra.mxu0 %v843
  %995 = vmatprep.subr.mxu0 0.0
  %996 = vmatpush1.msra.mxu0 %v838
  %997 = vmatprep.subr.mxu0 0.0
  %998 = vmatpush2.msra.mxu0 0.0
  %999 = vmatprep.subr.mxu0 0.0
  %1000 = vmatpush2.msra.mxu0 0.0
  %1001 = vmatprep.subr.mxu0 0.0
  %1002 = vmatpush2.msra.mxu0 0.0
  %1003 = vmatprep.subr.mxu0 0.0
  %1004 = vmatpush2.msra.mxu0 0.0
  %1005 = vmatprep.subr.mxu0 0.0
  %1006 = vmatpush2.msra.mxu0 0.0
  %1007 = vmatprep.subr.mxu0 0.0
  %1008 = vmatpush2.msra.mxu0 0.0
  %1009 = vmatprep.subr.mxu0 0.0
  %1010 = vmatpush2.msra.mxu0 0.0
  %1011 = vmatprep.subr.mxu0 0.0
  %1012 = vmatpush2.msra.mxu0 0.0
  %1013 = vmatprep.subr.mxu0 0.0
  %1014 = vmatpush2.msra.mxu0 0.0
  %1015 = vmatprep.subr.mxu0 0.0
  %1016 = vmatpush2.msra.mxu0 0.0
  %1017 = vmatprep.subr.mxu0 0.0
  %1018 = vmatpush2.msra.mxu0 0.0
  %1019 = vmatprep.subr.mxu0 0.0
  %1020 = vmatpush2.msra.mxu0 0.0
  %1021 = vmatprep.subr.mxu0 0.0
  %1022 = vmatpush2.msra.mxu0 0.0
  %1023 = vmatprep.subr.mxu0 0.0
  %1024 = vmatpush2.msra.mxu0 0.0
  %1025 = vmatprep.subr.mxu0 0.0
  %1026 = vmatpush2.msra.mxu0 0.0
  %1027 = vmatprep.subr.mxu0 0.0
  %1028 = vmatpush2.msra.mxu0 0.0
  %1029 = vmatprep.mubr.f32.mxu0 0.0
  %1030 = vmatmul.mubr.f32.gmra.mxu0 %v960
  %v1031 = vpop.f32.mrf.mxu0
  %v1032 = vadd.f32 0.0, %v1031
  %v1033 = vpop.f32.mrf.mxu0
  %1034 = vmatprep.mubr.f32.mxu0 0.0
  %1035 = vmatmul.mubr.f32.gmra.mxu0 %v963
  %v1036 = vpop.f32.mrf.mxu0
  %v1037 = vadd.f32 0.0, %v1036
  %v1038 = vpop.f32.mrf.mxu0
  %1039 = vdwg.mxu0
  %s1040 = scalar_lea.vmem %s10, 16
  %v1041 = vld [vmem:[%s1040] sm:$0xff]
  %v1042 = vld [vmem:[%s1040 + $0x8] sm:$0xff]
  %v1044 = vsel %vm385, %v1032, 0
  %v1047 = vsel %vm385, %v1037, 0
  %1049 = vmatprep.subr.mxu0 0.0
  %1050 = vmatpush1.msra.mxu0 0.0
  %1051 = vmatprep.subr.mxu0 0.0
  %1052 = vmatpush1.msra.mxu0 0.0
  %1053 = vmatprep.subr.mxu0 0.0
  %1054 = vmatpush1.msra.mxu0 0.0
  %1055 = vmatprep.subr.mxu0 0.0
  %1056 = vmatpush1.msra.mxu0 0.0
  %1057 = vmatprep.subr.mxu0 0.0
  %1058 = vmatpush1.msra.mxu0 0.0
  %1059 = vmatprep.subr.mxu0 0.0
  %1060 = vmatpush1.msra.mxu0 0.0
  %1061 = vmatprep.subr.mxu0 0.0
  %1062 = vmatpush1.msra.mxu0 0.0
  %1063 = vmatprep.subr.mxu0 0.0
  %1064 = vmatpush1.msra.mxu0 0.0
  %1065 = vmatprep.subr.mxu0 0.0
  %1066 = vmatpush1.msra.mxu0 0.0
  %1067 = vmatprep.subr.mxu0 0.0
  %1068 = vmatpush1.msra.mxu0 0.0
  %1069 = vmatprep.subr.mxu0 0.0
  %1070 = vmatpush1.msra.mxu0 0.0
  %1071 = vmatprep.subr.mxu0 0.0
  %1072 = vmatpush1.msra.mxu0 0.0
  %1073 = vmatprep.subr.mxu0 0.0
  %1074 = vmatpush1.msra.mxu0 0.0
  %1075 = vmatprep.subr.mxu0 0.0
  %1076 = vmatpush1.msra.mxu0 0.0
  %1077 = vmatprep.subr.mxu0 0.0
  %1078 = vmatpush1.msra.mxu0 %v1042
  %1079 = vmatprep.subr.mxu0 0.0
  %1080 = vmatpush1.msra.mxu0 %v1041
  %1081 = vmatprep.subr.mxu0 0.0
  %1082 = vmatpush2.msra.mxu0 0.0
  %1083 = vmatprep.subr.mxu0 0.0
  %1084 = vmatpush2.msra.mxu0 0.0
  %1085 = vmatprep.subr.mxu0 0.0
  %1086 = vmatpush2.msra.mxu0 0.0
  %1087 = vmatprep.subr.mxu0 0.0
  %1088 = vmatpush2.msra.mxu0 0.0
  %1089 = vmatprep.subr.mxu0 0.0
  %1090 = vmatpush2.msra.mxu0 0.0
  %1091 = vmatprep.subr.mxu0 0.0
  %1092 = vmatpush2.msra.mxu0 0.0
  %1093 = vmatprep.subr.mxu0 0.0
  %1094 = vmatpush2.msra.mxu0 0.0
  %1095 = vmatprep.subr.mxu0 0.0
  %1096 = vmatpush2.msra.mxu0 0.0
  %1097 = vmatprep.subr.mxu0 0.0
  %1098 = vmatpush2.msra.mxu0 0.0
  %1099 = vmatprep.subr.mxu0 0.0
  %1100 = vmatpush2.msra.mxu0 0.0
  %1101 = vmatprep.subr.mxu0 0.0
  %1102 = vmatpush2.msra.mxu0 0.0
  %1103 = vmatprep.subr.mxu0 0.0
  %1104 = vmatpush2.msra.mxu0 0.0
  %1105 = vmatprep.subr.mxu0 0.0
  %1106 = vmatpush2.msra.mxu0 0.0
  %1107 = vmatprep.subr.mxu0 0.0
  %1108 = vmatpush2.msra.mxu0 0.0
  %1109 = vmatprep.subr.mxu0 0.0
  %1110 = vmatpush2.msra.mxu0 0.0
  %1111 = vmatprep.subr.mxu0 0.0
  %1112 = vmatpush2.msra.mxu0 0.0
  %1113 = vmatprep.mubr.f32.mxu0 0.0
  %1114 = vmatmul.mubr.f32.gmra.mxu0 %v1044
  %v1115 = vpop.f32.mrf.mxu0
  %v1116 = vadd.f32 0.0, %v1115
  %v1117 = vpop.f32.mrf.mxu0
  %1118 = vmatprep.mubr.f32.mxu0 0.0
  %1119 = vmatmul.mubr.f32.gmra.mxu0 %v1047
  %v1120 = vpop.f32.mrf.mxu0
  %v1121 = vadd.f32 0.0, %v1120
  %v1122 = vpop.f32.mrf.mxu0
  %1123 = vdwg.mxu0
  %v1125 = vsel %vm385, %v572, 0
  %v1128 = vsel %vm385, %v577, 0
  %1130 = vmatprep.subr.mxu0 0.0
  %1131 = vmatpush1.msra.mxu0 0.0
  %1132 = vmatprep.subr.mxu0 0.0
  %1133 = vmatpush1.msra.mxu0 0.0
  %1134 = vmatprep.subr.mxu0 0.0
  %1135 = vmatpush1.msra.mxu0 0.0
  %1136 = vmatprep.subr.mxu0 0.0
  %1137 = vmatpush1.msra.mxu0 0.0
  %1138 = vmatprep.subr.mxu0 0.0
  %1139 = vmatpush1.msra.mxu0 0.0
  %1140 = vmatprep.subr.mxu0 0.0
  %1141 = vmatpush1.msra.mxu0 0.0
  %1142 = vmatprep.subr.mxu0 0.0
  %1143 = vmatpush1.msra.mxu0 0.0
  %1144 = vmatprep.subr.mxu0 0.0
  %1145 = vmatpush1.msra.mxu0 0.0
  %1146 = vmatprep.subr.mxu0 0.0
  %1147 = vmatpush1.msra.mxu0 0.0
  %1148 = vmatprep.subr.mxu0 0.0
  %1149 = vmatpush1.msra.mxu0 0.0
  %1150 = vmatprep.subr.mxu0 0.0
  %1151 = vmatpush1.msra.mxu0 0.0
  %1152 = vmatprep.subr.mxu0 0.0
  %1153 = vmatpush1.msra.mxu0 0.0
  %1154 = vmatprep.subr.mxu0 0.0
  %1155 = vmatpush1.msra.mxu0 0.0
  %1156 = vmatprep.subr.mxu0 0.0
  %1157 = vmatpush1.msra.mxu0 0.0
  %1158 = vmatprep.subr.mxu0 0.0
  %1159 = vmatpush1.msra.mxu0 %v581
  %1160 = vmatprep.subr.mxu0 0.0
  %1161 = vmatpush1.msra.mxu0 %v580
  %1162 = vmatprep.subr.mxu0 0.0
  %1163 = vmatpush2.msra.mxu0 0.0
  %1164 = vmatprep.subr.mxu0 0.0
  %1165 = vmatpush2.msra.mxu0 0.0
  %1166 = vmatprep.subr.mxu0 0.0
  %1167 = vmatpush2.msra.mxu0 0.0
  %1168 = vmatprep.subr.mxu0 0.0
  %1169 = vmatpush2.msra.mxu0 0.0
  %1170 = vmatprep.subr.mxu0 0.0
  %1171 = vmatpush2.msra.mxu0 0.0
  %1172 = vmatprep.subr.mxu0 0.0
  %1173 = vmatpush2.msra.mxu0 0.0
  %1174 = vmatprep.subr.mxu0 0.0
  %1175 = vmatpush2.msra.mxu0 0.0
  %1176 = vmatprep.subr.mxu0 0.0
  %1177 = vmatpush2.msra.mxu0 0.0
  %1178 = vmatprep.subr.mxu0 0.0
  %1179 = vmatpush2.msra.mxu0 0.0
  %1180 = vmatprep.subr.mxu0 0.0
  %1181 = vmatpush2.msra.mxu0 0.0
  %1182 = vmatprep.subr.mxu0 0.0
  %1183 = vmatpush2.msra.mxu0 0.0
  %1184 = vmatprep.subr.mxu0 0.0
  %1185 = vmatpush2.msra.mxu0 0.0
  %1186 = vmatprep.subr.mxu0 0.0
  %1187 = vmatpush2.msra.mxu0 0.0
  %1188 = vmatprep.subr.mxu0 0.0
  %1189 = vmatpush2.msra.mxu0 0.0
  %1190 = vmatprep.subr.mxu0 0.0
  %1191 = vmatpush2.msra.mxu0 0.0
  %1192 = vmatprep.subr.mxu0 0.0
  %1193 = vmatpush2.msra.mxu0 0.0
  %1194 = vmatprep.mubr.f32.mxu0 0.0
  %1195 = vmatmul.mubr.f32.gmra.mxu0 %v1125
  %v1196 = vpop.f32.mrf.mxu0
  %v1197 = vadd.f32 %v1116, %v1196
  %v1198 = vpop.f32.mrf.mxu0
  %1199 = vmatprep.mubr.f32.mxu0 0.0
  %1200 = vmatmul.mubr.f32.gmra.mxu0 %v1128
  %v1201 = vpop.f32.mrf.mxu0
  %v1202 = vadd.f32 %v1121, %v1201
  %v1203 = vpop.f32.mrf.mxu0
  %1204 = vdwg.mxu0
  %v1205 = vld [vmem:[%s11] sm:$0x1]
  %v1207 = vlaneseq
  %v1208 = vshrl.u32 %v1207, 7
  %v1209 = vsub.s32 0, %v1208
  %v1210 = vrot.slane %v1205, %v1209
  %v1212 = vadd.f32 %v1197, %v1210
  %v1213 = vadd.f32 %v1202, %v1210
  %v1214 = vadd.f32 %v1212, %v119
  %v1215 = vadd.f32 %v1213, %v120
  %v1216 = vld [vmem:[%s12] sm:$0x1]
  %v1217 = vld [vmem:[%s13] sm:$0x1]
  %v1218 = vsel %vm77, %v1214, 0.0
  %1219 = vadd.xlane.f32.xlu0 %v1218
  %v1220 = vpop.xlane.xlu0 %1219
  %v1221 = vsel %vm77, %v1215, 0.0
  %1222 = vadd.xlane.f32.xlu0 %v1221
  %v1223 = vpop.xlane.xlu0 %1222
  %v1224 = vmul.f32 %v1220, %v84
  %v1225 = vmul.f32 %v1223, %v84
  %v1226 = vsub.f32 %v1214, %v1224
  %v1227 = vsub.f32 %v1215, %v1225
  %v1228 = vmul.f32 %v1226, %v1226
  %v1229 = vmul.f32 %v1227, %v1227
  %v1230 = vsel %vm77, %v1228, 0.0
  %1231 = vadd.xlane.f32.xlu0 %v1230
  %v1232 = vpop.xlane.xlu0 %1231
  %v1233 = vsel %vm77, %v1229, 0.0
  %1234 = vadd.xlane.f32.xlu0 %v1233
  %v1235 = vpop.xlane.xlu0 %1234
  %v1236 = vmul.f32 %v1232, %v84
  %v1237 = vmul.f32 %v1235, %v84
  %v1238 = vadd.f32 %v1236, 1e-12
  %v1239 = vadd.f32 %v1237, 1e-12
  %v1240 = vrsqrt.pop %v1238
  %v1241 = vrsqrt.pop %v1239
  %v1242 = vmul.f32 %v1226, %v1240
  %v1243 = vmul.f32 %v1227, %v1241
  %v1245 = vlaneseq
  %v1246 = vshrl.u32 %v1245, 7
  %v1247 = vsub.s32 0, %v1246
  %v1248 = vrot.slane %v1216, %v1247
  %v1250 = vmul.f32 %v1242, %v1248
  %v1251 = vmul.f32 %v1243, %v1248
  %v1253 = vlaneseq
  %v1254 = vshrl.u32 %v1253, 7
  %v1255 = vsub.s32 0, %v1254
  %v1256 = vrot.slane %v1217, %v1255
  %v1258 = vadd.f32 %v1250, %v1256
  %v1259 = vadd.f32 %v1251, %v1256
  %v1260 = vld [vmem:[%s14] sm:$0xff]
  %v1261 = vld [vmem:[%s14 + $0x8] sm:$0xff]
  %v1262 = vld [vmem:[%s14 + $0x10] sm:$0xff]
  %v1263 = vld [vmem:[%s14 + $0x18] sm:$0xff]
  %v1264 = vld [vmem:[%s15] sm:$0x1]
  %v1266 = vlaneseq
  %v1267 = vshrl.u32 %v1266, 7
  %v1268 = vsub.s32 0, %v1267
  %v1269 = vrot.slane %v1264, %v1268
  %v1272 = vsel %vm77, %v1258, 0
  %v1275 = vsel %vm77, %v1259, 0
  %1277 = vmatprep.subr.mxu0 0.0
  %1278 = vmatpush1.msra.mxu0 0.0
  %1279 = vmatprep.subr.mxu0 0.0
  %1280 = vmatpush1.msra.mxu0 0.0
  %1281 = vmatprep.subr.mxu0 0.0
  %1282 = vmatpush1.msra.mxu0 0.0
  %1283 = vmatprep.subr.mxu0 0.0
  %1284 = vmatpush1.msra.mxu0 0.0
  %1285 = vmatprep.subr.mxu0 0.0
  %1286 = vmatpush1.msra.mxu0 0.0
  %1287 = vmatprep.subr.mxu0 0.0
  %1288 = vmatpush1.msra.mxu0 0.0
  %1289 = vmatprep.subr.mxu0 0.0
  %1290 = vmatpush1.msra.mxu0 0.0
  %1291 = vmatprep.subr.mxu0 0.0
  %1292 = vmatpush1.msra.mxu0 0.0
  %1293 = vmatprep.subr.mxu0 0.0
  %1294 = vmatpush1.msra.mxu0 0.0
  %1295 = vmatprep.subr.mxu0 0.0
  %1296 = vmatpush1.msra.mxu0 0.0
  %1297 = vmatprep.subr.mxu0 0.0
  %1298 = vmatpush1.msra.mxu0 0.0
  %1299 = vmatprep.subr.mxu0 0.0
  %1300 = vmatpush1.msra.mxu0 0.0
  %1301 = vmatprep.subr.mxu0 0.0
  %1302 = vmatpush1.msra.mxu0 %v1263
  %1303 = vmatprep.subr.mxu0 0.0
  %1304 = vmatpush1.msra.mxu0 %v1262
  %1305 = vmatprep.subr.mxu0 0.0
  %1306 = vmatpush1.msra.mxu0 %v1261
  %1307 = vmatprep.subr.mxu0 0.0
  %1308 = vmatpush1.msra.mxu0 %v1260
  %1309 = vmatprep.subr.mxu0 0.0
  %1310 = vmatpush2.msra.mxu0 0.0
  %1311 = vmatprep.subr.mxu0 0.0
  %1312 = vmatpush2.msra.mxu0 0.0
  %1313 = vmatprep.subr.mxu0 0.0
  %1314 = vmatpush2.msra.mxu0 0.0
  %1315 = vmatprep.subr.mxu0 0.0
  %1316 = vmatpush2.msra.mxu0 0.0
  %1317 = vmatprep.subr.mxu0 0.0
  %1318 = vmatpush2.msra.mxu0 0.0
  %1319 = vmatprep.subr.mxu0 0.0
  %1320 = vmatpush2.msra.mxu0 0.0
  %1321 = vmatprep.subr.mxu0 0.0
  %1322 = vmatpush2.msra.mxu0 0.0
  %1323 = vmatprep.subr.mxu0 0.0
  %1324 = vmatpush2.msra.mxu0 0.0
  %1325 = vmatprep.subr.mxu0 0.0
  %1326 = vmatpush2.msra.mxu0 0.0
  %1327 = vmatprep.subr.mxu0 0.0
  %1328 = vmatpush2.msra.mxu0 0.0
  %1329 = vmatprep.subr.mxu0 0.0
  %1330 = vmatpush2.msra.mxu0 0.0
  %1331 = vmatprep.subr.mxu0 0.0
  %1332 = vmatpush2.msra.mxu0 0.0
  %1333 = vmatprep.subr.mxu0 0.0
  %1334 = vmatpush2.msra.mxu0 0.0
  %1335 = vmatprep.subr.mxu0 0.0
  %1336 = vmatpush2.msra.mxu0 0.0
  %1337 = vmatprep.subr.mxu0 0.0
  %1338 = vmatpush2.msra.mxu0 0.0
  %1339 = vmatprep.subr.mxu0 0.0
  %1340 = vmatpush2.msra.mxu0 0.0
  %1341 = vmatprep.mubr.f32.mxu0 0.0
  %1342 = vmatmul.mubr.f32.gmra.mxu0 %v1272
  %v1343 = vpop.f32.mrf.mxu0
  %v1344 = vadd.f32 %v1269, %v1343
  %v1345 = vpop.f32.mrf.mxu0
  %1346 = vmatprep.mubr.f32.mxu0 0.0
  %1347 = vmatmul.mubr.f32.gmra.mxu0 %v1275
  %v1348 = vpop.f32.mrf.mxu0
  %v1349 = vadd.f32 %v1269, %v1348
  %v1350 = vpop.f32.mrf.mxu0
  %1351 = vdwg.mxu0
  %v1352 = vmul.f32 %v1344, 0.5
  %v1353 = vmul.f32 %v1349, 0.5
  %v1354 = vmul.f32 %v1344, 0.044715
  %v1355 = vmul.f32 %v1349, 0.044715
  %v1356 = vmul.f32 %v1354, %v1344
  %v1357 = vmul.f32 %v1355, %v1349
  %v1358 = vmul.f32 %v1356, %v1344
  %v1359 = vmul.f32 %v1357, %v1349
  %v1360 = vadd.f32 %v1344, %v1358
  %v1361 = vadd.f32 %v1349, %v1359
  %v1362 = vmul.f32 %v1360, 0.7978846
  %v1363 = vmul.f32 %v1361, 0.7978846
  %v1364 = vtanh.pop %v1362
  %v1365 = vtanh.pop %v1363
  %v1366 = vadd.f32 %v1364, 1.0
  %v1367 = vadd.f32 %v1365, 1.0
  %v1368 = vmul.f32 %v1352, %v1366
  %v1369 = vmul.f32 %v1353, %v1367
  %v1370 = vld [vmem:[%s16] sm:$0xff]
  %v1371 = vld [vmem:[%s16 + $0x8] sm:$0xff]
  %v1372 = vld [vmem:[%s16 + $0x10] sm:$0xff]
  %v1373 = vld [vmem:[%s16 + $0x18] sm:$0xff]
  %v1374 = vld [vmem:[%s16 + $0x20] sm:$0xff]
  %v1375 = vld [vmem:[%s16 + $0x28] sm:$0xff]
  %v1376 = vld [vmem:[%s16 + $0x30] sm:$0xff]
  %v1377 = vld [vmem:[%s16 + $0x38] sm:$0xff]
  %v1378 = vld [vmem:[%s16 + $0x40] sm:$0xff]
  %v1379 = vld [vmem:[%s16 + $0x48] sm:$0xff]
  %v1380 = vld [vmem:[%s16 + $0x50] sm:$0xff]
  %v1381 = vld [vmem:[%s16 + $0x58] sm:$0xff]
  %v1382 = vld [vmem:[%s16 + $0x60] sm:$0xff]
  %v1383 = vld [vmem:[%s16 + $0x68] sm:$0xff]
  %v1384 = vld [vmem:[%s16 + $0x70] sm:$0xff]
  %v1385 = vld [vmem:[%s16 + $0x78] sm:$0xff]
  %v1386 = vld [vmem:[%s17] sm:$0x1]
  %v1388 = vlaneseq
  %v1389 = vshrl.u32 %v1388, 7
  %v1390 = vsub.s32 0, %v1389
  %v1391 = vrot.slane %v1386, %v1390
  %1393 = vmatprep.subr.mxu0 0.0
  %1394 = vmatpush1.msra.mxu0 %v1385
  %1395 = vmatprep.subr.mxu0 0.0
  %1396 = vmatpush1.msra.mxu0 %v1384
  %1397 = vmatprep.subr.mxu0 0.0
  %1398 = vmatpush1.msra.mxu0 %v1383
  %1399 = vmatprep.subr.mxu0 0.0
  %1400 = vmatpush1.msra.mxu0 %v1382
  %1401 = vmatprep.subr.mxu0 0.0
  %1402 = vmatpush1.msra.mxu0 %v1381
  %1403 = vmatprep.subr.mxu0 0.0
  %1404 = vmatpush1.msra.mxu0 %v1380
  %1405 = vmatprep.subr.mxu0 0.0
  %1406 = vmatpush1.msra.mxu0 %v1379
  %1407 = vmatprep.subr.mxu0 0.0
  %1408 = vmatpush1.msra.mxu0 %v1378
  %1409 = vmatprep.subr.mxu0 0.0
  %1410 = vmatpush1.msra.mxu0 %v1377
  %1411 = vmatprep.subr.mxu0 0.0
  %1412 = vmatpush1.msra.mxu0 %v1376
  %1413 = vmatprep.subr.mxu0 0.0
  %1414 = vmatpush1.msra.mxu0 %v1375
  %1415 = vmatprep.subr.mxu0 0.0
  %1416 = vmatpush1.msra.mxu0 %v1374
  %1417 = vmatprep.subr.mxu0 0.0
  %1418 = vmatpush1.msra.mxu0 %v1373
  %1419 = vmatprep.subr.mxu0 0.0
  %1420 = vmatpush1.msra.mxu0 %v1372
  %1421 = vmatprep.subr.mxu0 0.0
  %1422 = vmatpush1.msra.mxu0 %v1371
  %1423 = vmatprep.subr.mxu0 0.0
  %1424 = vmatpush1.msra.mxu0 %v1370
  %1425 = vmatprep.subr.mxu0 0.0
  %1426 = vmatpush2.msra.mxu0 0.0
  %1427 = vmatprep.subr.mxu0 0.0
  %1428 = vmatpush2.msra.mxu0 0.0
  %1429 = vmatprep.subr.mxu0 0.0
  %1430 = vmatpush2.msra.mxu0 0.0
  %1431 = vmatprep.subr.mxu0 0.0
  %1432 = vmatpush2.msra.mxu0 0.0
  %1433 = vmatprep.subr.mxu0 0.0
  %1434 = vmatpush2.msra.mxu0 0.0
  %1435 = vmatprep.subr.mxu0 0.0
  %1436 = vmatpush2.msra.mxu0 0.0
  %1437 = vmatprep.subr.mxu0 0.0
  %1438 = vmatpush2.msra.mxu0 0.0
  %1439 = vmatprep.subr.mxu0 0.0
  %1440 = vmatpush2.msra.mxu0 0.0
  %1441 = vmatprep.subr.mxu0 0.0
  %1442 = vmatpush2.msra.mxu0 0.0
  %1443 = vmatprep.subr.mxu0 0.0
  %1444 = vmatpush2.msra.mxu0 0.0
  %1445 = vmatprep.subr.mxu0 0.0
  %1446 = vmatpush2.msra.mxu0 0.0
  %1447 = vmatprep.subr.mxu0 0.0
  %1448 = vmatpush2.msra.mxu0 0.0
  %1449 = vmatprep.subr.mxu0 0.0
  %1450 = vmatpush2.msra.mxu0 0.0
  %1451 = vmatprep.subr.mxu0 0.0
  %1452 = vmatpush2.msra.mxu0 0.0
  %1453 = vmatprep.subr.mxu0 0.0
  %1454 = vmatpush2.msra.mxu0 0.0
  %1455 = vmatprep.subr.mxu0 0.0
  %1456 = vmatpush2.msra.mxu0 0.0
  %1457 = vmatprep.mubr.f32.mxu0 0.0
  %1458 = vmatmul.mubr.f32.gmra.mxu0 %v1368
  %v1459 = vpop.f32.mrf.mxu0
  %v1460 = vadd.f32 %v1391, %v1459
  %v1461 = vpop.f32.mrf.mxu0
  %1462 = vmatprep.mubr.f32.mxu0 0.0
  %1463 = vmatmul.mubr.f32.gmra.mxu0 %v1369
  %v1464 = vpop.f32.mrf.mxu0
  %v1465 = vadd.f32 %v1391, %v1464
  %v1466 = vpop.f32.mrf.mxu0
  %1467 = vdwg.mxu0
  %v1468 = vadd.f32 %v1460, %v1258
  %v1469 = vadd.f32 %v1465, %v1259
  %v1470 = vld [vmem:[%s18] sm:$0x1]
  %v1471 = vld [vmem:[%s19] sm:$0x1]
  %v1472 = vsel %vm77, %v1468, 0.0
  %1473 = vadd.xlane.f32.xlu0 %v1472
  %v1474 = vpop.xlane.xlu0 %1473
  %v1475 = vsel %vm77, %v1469, 0.0
  %1476 = vadd.xlane.f32.xlu0 %v1475
  %v1477 = vpop.xlane.xlu0 %1476
  %v1478 = vmul.f32 %v1474, %v84
  %v1479 = vmul.f32 %v1477, %v84
  %v1480 = vsub.f32 %v1468, %v1478
  %v1481 = vsub.f32 %v1469, %v1479
  %v1482 = vmul.f32 %v1480, %v1480
  %v1483 = vmul.f32 %v1481, %v1481
  %v1484 = vsel %vm77, %v1482, 0.0
  %1485 = vadd.xlane.f32.xlu0 %v1484
  %v1486 = vpop.xlane.xlu0 %1485
  %v1487 = vsel %vm77, %v1483, 0.0
  %1488 = vadd.xlane.f32.xlu0 %v1487
  %v1489 = vpop.xlane.xlu0 %1488
  %v1490 = vmul.f32 %v1486, %v84
  %v1491 = vmul.f32 %v1489, %v84
  %v1492 = vadd.f32 %v1490, 1e-12
  %v1493 = vadd.f32 %v1491, 1e-12
  %v1494 = vrsqrt.pop %v1492
  %v1495 = vrsqrt.pop %v1493
  %v1496 = vmul.f32 %v1480, %v1494
  %v1497 = vmul.f32 %v1481, %v1495
  %v1499 = vlaneseq
  %v1500 = vshrl.u32 %v1499, 7
  %v1501 = vsub.s32 0, %v1500
  %v1502 = vrot.slane %v1470, %v1501
  %v1504 = vmul.f32 %v1496, %v1502
  %v1505 = vmul.f32 %v1497, %v1502
  %v1507 = vlaneseq
  %v1508 = vshrl.u32 %v1507, 7
  %v1509 = vsub.s32 0, %v1508
  %v1510 = vrot.slane %v1471, %v1509
  %v1512 = vadd.f32 %v1504, %v1510
  %v1513 = vadd.f32 %v1505, %v1510
  %s1514 = scalar_lea.vmem %s4, 64
  %v1515 = vld [vmem:[%s1514] sm:$0xff]
  %v1516 = vld [vmem:[%s1514 + $0x8] sm:$0xff]
  %v1517 = vld [vmem:[%s1514 + $0x10] sm:$0xff]
  %v1518 = vld [vmem:[%s1514 + $0x18] sm:$0xff]
  %s1519 = scalar_lea.vmem %s5, 2
  %v1520 = vld [vmem:[%s1519] sm:$0x1]
  %v1522 = vlaneseq
  %v1523 = vshrl.u32 %v1522, 7
  %v1524 = vsub.s32 0, %v1523
  %v1525 = vrot.slane %v1520, %v1524
  %v1528 = vsel %vm77, %v1512, 0
  %v1531 = vsel %vm77, %v1513, 0
  %1533 = vmatprep.subr.mxu0 0.0
  %1534 = vmatpush1.msra.mxu0 0.0
  %1535 = vmatprep.subr.mxu0 0.0
  %1536 = vmatpush1.msra.mxu0 0.0
  %1537 = vmatprep.subr.mxu0 0.0
  %1538 = vmatpush1.msra.mxu0 0.0
  %1539 = vmatprep.subr.mxu0 0.0
  %1540 = vmatpush1.msra.mxu0 0.0
  %1541 = vmatprep.subr.mxu0 0.0
  %1542 = vmatpush1.msra.mxu0 0.0
  %1543 = vmatprep.subr.mxu0 0.0
  %1544 = vmatpush1.msra.mxu0 0.0
  %1545 = vmatprep.subr.mxu0 0.0
  %1546 = vmatpush1.msra.mxu0 0.0
  %1547 = vmatprep.subr.mxu0 0.0
  %1548 = vmatpush1.msra.mxu0 0.0
  %1549 = vmatprep.subr.mxu0 0.0
  %1550 = vmatpush1.msra.mxu0 0.0
  %1551 = vmatprep.subr.mxu0 0.0
  %1552 = vmatpush1.msra.mxu0 0.0
  %1553 = vmatprep.subr.mxu0 0.0
  %1554 = vmatpush1.msra.mxu0 0.0
  %1555 = vmatprep.subr.mxu0 0.0
  %1556 = vmatpush1.msra.mxu0 0.0
  %1557 = vmatprep.subr.mxu0 0.0
  %1558 = vmatpush1.msra.mxu0 %v1518
  %1559 = vmatprep.subr.mxu0 0.0
  %1560 = vmatpush1.msra.mxu0 %v1517
  %1561 = vmatprep.subr.mxu0 0.0
  %1562 = vmatpush1.msra.mxu0 %v1516
  %1563 = vmatprep.subr.mxu0 0.0
  %1564 = vmatpush1.msra.mxu0 %v1515
  %1565 = vmatprep.subr.mxu0 0.0
  %1566 = vmatpush2.msra.mxu0 0.0
  %1567 = vmatprep.subr.mxu0 0.0
  %1568 = vmatpush2.msra.mxu0 0.0
  %1569 = vmatprep.subr.mxu0 0.0
  %1570 = vmatpush2.msra.mxu0 0.0
  %1571 = vmatprep.subr.mxu0 0.0
  %1572 = vmatpush2.msra.mxu0 0.0
  %1573 = vmatprep.subr.mxu0 0.0
  %1574 = vmatpush2.msra.mxu0 0.0
  %1575 = vmatprep.subr.mxu0 0.0
  %1576 = vmatpush2.msra.mxu0 0.0
  %1577 = vmatprep.subr.mxu0 0.0
  %1578 = vmatpush2.msra.mxu0 0.0
  %1579 = vmatprep.subr.mxu0 0.0
  %1580 = vmatpush2.msra.mxu0 0.0
  %1581 = vmatprep.subr.mxu0 0.0
  %1582 = vmatpush2.msra.mxu0 0.0
  %1583 = vmatprep.subr.mxu0 0.0
  %1584 = vmatpush2.msra.mxu0 0.0
  %1585 = vmatprep.subr.mxu0 0.0
  %1586 = vmatpush2.msra.mxu0 0.0
  %1587 = vmatprep.subr.mxu0 0.0
  %1588 = vmatpush2.msra.mxu0 0.0
  %1589 = vmatprep.subr.mxu0 0.0
  %1590 = vmatpush2.msra.mxu0 0.0
  %1591 = vmatprep.subr.mxu0 0.0
  %1592 = vmatpush2.msra.mxu0 0.0
  %1593 = vmatprep.subr.mxu0 0.0
  %1594 = vmatpush2.msra.mxu0 0.0
  %1595 = vmatprep.subr.mxu0 0.0
  %1596 = vmatpush2.msra.mxu0 0.0
  %1597 = vmatprep.mubr.f32.mxu0 0.0
  %1598 = vmatmul.mubr.f32.gmra.mxu0 %v1528
  %v1599 = vpop.f32.mrf.mxu0
  %v1600 = vadd.f32 %v1525, %v1599
  %v1601 = vpop.f32.mrf.mxu0
  %1602 = vmatprep.mubr.f32.mxu0 0.0
  %1603 = vmatmul.mubr.f32.gmra.mxu0 %v1531
  %v1604 = vpop.f32.mrf.mxu0
  %v1605 = vadd.f32 %v1525, %v1604
  %v1606 = vpop.f32.mrf.mxu0
  %1607 = vdwg.mxu0
  %s1608 = scalar_lea.vmem %s6, 64
  %v1609 = vld [vmem:[%s1608] sm:$0xff]
  %v1610 = vld [vmem:[%s1608 + $0x8] sm:$0xff]
  %v1611 = vld [vmem:[%s1608 + $0x10] sm:$0xff]
  %v1612 = vld [vmem:[%s1608 + $0x18] sm:$0xff]
  %s1613 = scalar_lea.vmem %s7, 2
  %v1614 = vld [vmem:[%s1613] sm:$0x1]
  %v1616 = vlaneseq
  %v1617 = vshrl.u32 %v1616, 7
  %v1618 = vsub.s32 0, %v1617
  %v1619 = vrot.slane %v1614, %v1618
  %1621 = vmatprep.subr.mxu0 0.0
  %1622 = vmatpush1.msra.mxu0 0.0
  %1623 = vmatprep.subr.mxu0 0.0
  %1624 = vmatpush1.msra.mxu0 0.0
  %1625 = vmatprep.subr.mxu0 0.0
  %1626 = vmatpush1.msra.mxu0 0.0
  %1627 = vmatprep.subr.mxu0 0.0
  %1628 = vmatpush1.msra.mxu0 0.0
  %1629 = vmatprep.subr.mxu0 0.0
  %1630 = vmatpush1.msra.mxu0 0.0
  %1631 = vmatprep.subr.mxu0 0.0
  %1632 = vmatpush1.msra.mxu0 0.0
  %1633 = vmatprep.subr.mxu0 0.0
  %1634 = vmatpush1.msra.mxu0 0.0
  %1635 = vmatprep.subr.mxu0 0.0
  %1636 = vmatpush1.msra.mxu0 0.0
  %1637 = vmatprep.subr.mxu0 0.0
  %1638 = vmatpush1.msra.mxu0 0.0
  %1639 = vmatprep.subr.mxu0 0.0
  %1640 = vmatpush1.msra.mxu0 0.0
  %1641 = vmatprep.subr.mxu0 0.0
  %1642 = vmatpush1.msra.mxu0 0.0
  %1643 = vmatprep.subr.mxu0 0.0
  %1644 = vmatpush1.msra.mxu0 0.0
  %1645 = vmatprep.subr.mxu0 0.0
  %1646 = vmatpush1.msra.mxu0 %v1612
  %1647 = vmatprep.subr.mxu0 0.0
  %1648 = vmatpush1.msra.mxu0 %v1611
  %1649 = vmatprep.subr.mxu0 0.0
  %1650 = vmatpush1.msra.mxu0 %v1610
  %1651 = vmatprep.subr.mxu0 0.0
  %1652 = vmatpush1.msra.mxu0 %v1609
  %1653 = vmatprep.subr.mxu0 0.0
  %1654 = vmatpush2.msra.mxu0 0.0
  %1655 = vmatprep.subr.mxu0 0.0
  %1656 = vmatpush2.msra.mxu0 0.0
  %1657 = vmatprep.subr.mxu0 0.0
  %1658 = vmatpush2.msra.mxu0 0.0
  %1659 = vmatprep.subr.mxu0 0.0
  %1660 = vmatpush2.msra.mxu0 0.0
  %1661 = vmatprep.subr.mxu0 0.0
  %1662 = vmatpush2.msra.mxu0 0.0
  %1663 = vmatprep.subr.mxu0 0.0
  %1664 = vmatpush2.msra.mxu0 0.0
  %1665 = vmatprep.subr.mxu0 0.0
  %1666 = vmatpush2.msra.mxu0 0.0
  %1667 = vmatprep.subr.mxu0 0.0
  %1668 = vmatpush2.msra.mxu0 0.0
  %1669 = vmatprep.subr.mxu0 0.0
  %1670 = vmatpush2.msra.mxu0 0.0
  %1671 = vmatprep.subr.mxu0 0.0
  %1672 = vmatpush2.msra.mxu0 0.0
  %1673 = vmatprep.subr.mxu0 0.0
  %1674 = vmatpush2.msra.mxu0 0.0
  %1675 = vmatprep.subr.mxu0 0.0
  %1676 = vmatpush2.msra.mxu0 0.0
  %1677 = vmatprep.subr.mxu0 0.0
  %1678 = vmatpush2.msra.mxu0 0.0
  %1679 = vmatprep.subr.mxu0 0.0
  %1680 = vmatpush2.msra.mxu0 0.0
  %1681 = vmatprep.subr.mxu0 0.0
  %1682 = vmatpush2.msra.mxu0 0.0
  %1683 = vmatprep.subr.mxu0 0.0
  %1684 = vmatpush2.msra.mxu0 0.0
  %1685 = vmatprep.mubr.f32.mxu0 0.0
  %1686 = vmatmul.mubr.f32.gmra.mxu0 %v1528
  %v1687 = vpop.f32.mrf.mxu0
  %v1688 = vadd.f32 %v1619, %v1687
  %v1689 = vpop.f32.mrf.mxu0
  %1690 = vmatprep.mubr.f32.mxu0 0.0
  %1691 = vmatmul.mubr.f32.gmra.mxu0 %v1531
  %v1692 = vpop.f32.mrf.mxu0
  %v1693 = vadd.f32 %v1619, %v1692
  %v1694 = vpop.f32.mrf.mxu0
  %1695 = vdwg.mxu0
  %s1696 = scalar_lea.vmem %s8, 64
  %v1697 = vld [vmem:[%s1696] sm:$0xff]
  %v1698 = vld [vmem:[%s1696 + $0x8] sm:$0xff]
  %v1699 = vld [vmem:[%s1696 + $0x10] sm:$0xff]
  %v1700 = vld [vmem:[%s1696 + $0x18] sm:$0xff]
  %s1701 = scalar_lea.vmem %s9, 2
  %v1702 = vld [vmem:[%s1701] sm:$0x1]
  %v1704 = vlaneseq
  %v1705 = vshrl.u32 %v1704, 7
  %v1706 = vsub.s32 0, %v1705
  %v1707 = vrot.slane %v1702, %v1706
  %1709 = vmatprep.subr.mxu0 0.0
  %1710 = vmatpush1.msra.mxu0 0.0
  %1711 = vmatprep.subr.mxu0 0.0
  %1712 = vmatpush1.msra.mxu0 0.0
  %1713 = vmatprep.subr.mxu0 0.0
  %1714 = vmatpush1.msra.mxu0 0.0
  %1715 = vmatprep.subr.mxu0 0.0
  %1716 = vmatpush1.msra.mxu0 0.0
  %1717 = vmatprep.subr.mxu0 0.0
  %1718 = vmatpush1.msra.mxu0 0.0
  %1719 = vmatprep.subr.mxu0 0.0
  %1720 = vmatpush1.msra.mxu0 0.0
  %1721 = vmatprep.subr.mxu0 0.0
  %1722 = vmatpush1.msra.mxu0 0.0
  %1723 = vmatprep.subr.mxu0 0.0
  %1724 = vmatpush1.msra.mxu0 0.0
  %1725 = vmatprep.subr.mxu0 0.0
  %1726 = vmatpush1.msra.mxu0 0.0
  %1727 = vmatprep.subr.mxu0 0.0
  %1728 = vmatpush1.msra.mxu0 0.0
  %1729 = vmatprep.subr.mxu0 0.0
  %1730 = vmatpush1.msra.mxu0 0.0
  %1731 = vmatprep.subr.mxu0 0.0
  %1732 = vmatpush1.msra.mxu0 0.0
  %1733 = vmatprep.subr.mxu0 0.0
  %1734 = vmatpush1.msra.mxu0 %v1700
  %1735 = vmatprep.subr.mxu0 0.0
  %1736 = vmatpush1.msra.mxu0 %v1699
  %1737 = vmatprep.subr.mxu0 0.0
  %1738 = vmatpush1.msra.mxu0 %v1698
  %1739 = vmatprep.subr.mxu0 0.0
  %1740 = vmatpush1.msra.mxu0 %v1697
  %1741 = vmatprep.subr.mxu0 0.0
  %1742 = vmatpush2.msra.mxu0 0.0
  %1743 = vmatprep.subr.mxu0 0.0
  %1744 = vmatpush2.msra.mxu0 0.0
  %1745 = vmatprep.subr.mxu0 0.0
  %1746 = vmatpush2.msra.mxu0 0.0
  %1747 = vmatprep.subr.mxu0 0.0
  %1748 = vmatpush2.msra.mxu0 0.0
  %1749 = vmatprep.subr.mxu0 0.0
  %1750 = vmatpush2.msra.mxu0 0.0
  %1751 = vmatprep.subr.mxu0 0.0
  %1752 = vmatpush2.msra.mxu0 0.0
  %1753 = vmatprep.subr.mxu0 0.0
  %1754 = vmatpush2.msra.mxu0 0.0
  %1755 = vmatprep.subr.mxu0 0.0
  %1756 = vmatpush2.msra.mxu0 0.0
  %1757 = vmatprep.subr.mxu0 0.0
  %1758 = vmatpush2.msra.mxu0 0.0
  %1759 = vmatprep.subr.mxu0 0.0
  %1760 = vmatpush2.msra.mxu0 0.0
  %1761 = vmatprep.subr.mxu0 0.0
  %1762 = vmatpush2.msra.mxu0 0.0
  %1763 = vmatprep.subr.mxu0 0.0
  %1764 = vmatpush2.msra.mxu0 0.0
  %1765 = vmatprep.subr.mxu0 0.0
  %1766 = vmatpush2.msra.mxu0 0.0
  %1767 = vmatprep.subr.mxu0 0.0
  %1768 = vmatpush2.msra.mxu0 0.0
  %1769 = vmatprep.subr.mxu0 0.0
  %1770 = vmatpush2.msra.mxu0 0.0
  %1771 = vmatprep.subr.mxu0 0.0
  %1772 = vmatpush2.msra.mxu0 0.0
  %1773 = vmatprep.mubr.f32.mxu0 0.0
  %1774 = vmatmul.mubr.f32.gmra.mxu0 %v1528
  %v1775 = vpop.f32.mrf.mxu0
  %v1776 = vadd.f32 %v1707, %v1775
  %v1777 = vpop.f32.mrf.mxu0
  %1778 = vmatprep.mubr.f32.mxu0 0.0
  %1779 = vmatmul.mubr.f32.gmra.mxu0 %v1531
  %v1780 = vpop.f32.mrf.mxu0
  %v1781 = vadd.f32 %v1707, %v1780
  %v1782 = vpop.f32.mrf.mxu0
  %1783 = vdwg.mxu0
  %v1785 = vsel %vm385, %v1600, 0
  %v1788 = vsel %vm385, %v1605, 0
  %v1791 = vsel %vm385, %v1688, 0
  %v1794 = vsel %vm385, %v1693, 0
  %1796 = vmatprep.subr.mxu0 0.0
  %1797 = vmatpush1.xpose.msra.mxu0 0.0
  %1798 = vmatprep.subr.mxu0 0.0
  %1799 = vmatpush1.xpose.msra.mxu0 0.0
  %1800 = vmatprep.subr.mxu0 0.0
  %1801 = vmatpush1.xpose.msra.mxu0 0.0
  %1802 = vmatprep.subr.mxu0 0.0
  %1803 = vmatpush1.xpose.msra.mxu0 0.0
  %1804 = vmatprep.subr.mxu0 0.0
  %1805 = vmatpush1.xpose.msra.mxu0 0.0
  %1806 = vmatprep.subr.mxu0 0.0
  %1807 = vmatpush1.xpose.msra.mxu0 0.0
  %1808 = vmatprep.subr.mxu0 0.0
  %1809 = vmatpush1.xpose.msra.mxu0 0.0
  %1810 = vmatprep.subr.mxu0 0.0
  %1811 = vmatpush1.xpose.msra.mxu0 0.0
  %1812 = vmatprep.subr.mxu0 0.0
  %1813 = vmatpush1.xpose.msra.mxu0 0.0
  %1814 = vmatprep.subr.mxu0 0.0
  %1815 = vmatpush1.xpose.msra.mxu0 0.0
  %1816 = vmatprep.subr.mxu0 0.0
  %1817 = vmatpush1.xpose.msra.mxu0 0.0
  %1818 = vmatprep.subr.mxu0 0.0
  %1819 = vmatpush1.xpose.msra.mxu0 0.0
  %1820 = vmatprep.subr.mxu0 0.0
  %1821 = vmatpush1.xpose.msra.mxu0 0.0
  %1822 = vmatprep.subr.mxu0 0.0
  %1823 = vmatpush1.xpose.msra.mxu0 0.0
  %1824 = vmatprep.subr.mxu0 0.0
  %1825 = vmatpush1.xpose.msra.mxu0 %v1794
  %1826 = vmatprep.subr.mxu0 0.0
  %1827 = vmatpush1.xpose.msra.mxu0 %v1791
  %1828 = vmatprep.subr.mxu0 0.0
  %1829 = vmatpush2.xpose.msra.mxu0 0.0
  %1830 = vmatprep.subr.mxu0 0.0
  %1831 = vmatpush2.xpose.msra.mxu0 0.0
  %1832 = vmatprep.subr.mxu0 0.0
  %1833 = vmatpush2.xpose.msra.mxu0 0.0
  %1834 = vmatprep.subr.mxu0 0.0
  %1835 = vmatpush2.xpose.msra.mxu0 0.0
  %1836 = vmatprep.subr.mxu0 0.0
  %1837 = vmatpush2.xpose.msra.mxu0 0.0
  %1838 = vmatprep.subr.mxu0 0.0
  %1839 = vmatpush2.xpose.msra.mxu0 0.0
  %1840 = vmatprep.subr.mxu0 0.0
  %1841 = vmatpush2.xpose.msra.mxu0 0.0
  %1842 = vmatprep.subr.mxu0 0.0
  %1843 = vmatpush2.xpose.msra.mxu0 0.0
  %1844 = vmatprep.subr.mxu0 0.0
  %1845 = vmatpush2.xpose.msra.mxu0 0.0
  %1846 = vmatprep.subr.mxu0 0.0
  %1847 = vmatpush2.xpose.msra.mxu0 0.0
  %1848 = vmatprep.subr.mxu0 0.0
  %1849 = vmatpush2.xpose.msra.mxu0 0.0
  %1850 = vmatprep.subr.mxu0 0.0
  %1851 = vmatpush2.xpose.msra.mxu0 0.0
  %1852 = vmatprep.subr.mxu0 0.0
  %1853 = vmatpush2.xpose.msra.mxu0 0.0
  %1854 = vmatprep.subr.mxu0 0.0
  %1855 = vmatpush2.xpose.msra.mxu0 0.0
  %1856 = vmatprep.subr.mxu0 0.0
  %1857 = vmatpush2.xpose.msra.mxu0 0.0
  %1858 = vmatprep.subr.mxu0 0.0
  %1859 = vmatpush2.xpose.msra.mxu0 0.0
  %1860 = vmatprep.mubr.f32.mxu0 0.0
  %1861 = vmatmul.mubr.f32.gmra.mxu0 %v1785
  %v1862 = vpop.f32.mrf.mxu0
  %v1863 = vadd.f32 0.0, %v1862
  %v1864 = vpop.f32.mrf.mxu0
  %1865 = vmatprep.mubr.f32.mxu0 0.0
  %1866 = vmatmul.mubr.f32.gmra.mxu0 %v1788
  %v1867 = vpop.f32.mrf.mxu0
  %v1868 = vadd.f32 0.0, %v1867
  %v1869 = vpop.f32.mrf.mxu0
  %1870 = vdwg.mxu0
  %v1871 = vmul.f32 %v1863, 0.25
  %v1872 = vmul.f32 %v1868, 0.25
  %v1873 = vadd.f32 %v1871, %v71
  %v1874 = vadd.f32 %v1872, %v72
  %v1875 = vsel %vm385, %v1873, -inf
  %1876 = vmax.xlane.f32.xlu0 %v1875
  %v1877 = vpop.xlane.xlu0 %1876
  %v1878 = vsel %vm385, %v1874, -inf
  %1879 = vmax.xlane.f32.xlu0 %v1878
  %v1880 = vpop.xlane.xlu0 %1879
  %v1881 = vsub.f32 %v1873, %v1877
  %v1882 = vsub.f32 %v1874, %v1880
  %v1883 = vmul.f32 %v1881, 1.442695
  %v1884 = vpow.pop %v1883
  %v1885 = vmul.f32 %v1882, 1.442695
  %v1886 = vpow.pop %v1885
  %v1887 = vsel %vm385, %v1884, 0.0
  %1888 = vadd.xlane.f32.xlu0 %v1887
  %v1889 = vpop.xlane.xlu0 %1888
  %v1890 = vsel %vm385, %v1886, 0.0
  %1891 = vadd.xlane.f32.xlu0 %v1890
  %v1892 = vpop.xlane.xlu0 %1891
  %v1893 = vrcp.pop %v1889
  %v1894 = vrcp.pop %v1892
  %v1895 = vmul.f32 %v1884, %v1893
  %v1896 = vmul.f32 %v1886, %v1894
  %v1898 = vsel %vm385, %v1895, 0
  %v1901 = vsel %vm385, %v1896, 0
  %1903 = vmatprep.subr.mxu0 0.0
  %1904 = vmatpush1.msra.mxu0 0.0
  %1905 = vmatprep.subr.mxu0 0.0
  %1906 = vmatpush1.msra.mxu0 0.0
  %1907 = vmatprep.subr.mxu0 0.0
  %1908 = vmatpush1.msra.mxu0 0.0
  %1909 = vmatprep.subr.mxu0 0.0
  %1910 = vmatpush1.msra.mxu0 0.0
  %1911 = vmatprep.subr.mxu0 0.0
  %1912 = vmatpush1.msra.mxu0 0.0
  %1913 = vmatprep.subr.mxu0 0.0
  %1914 = vmatpush1.msra.mxu0 0.0
  %1915 = vmatprep.subr.mxu0 0.0
  %1916 = vmatpush1.msra.mxu0 0.0
  %1917 = vmatprep.subr.mxu0 0.0
  %1918 = vmatpush1.msra.mxu0 0.0
  %1919 = vmatprep.subr.mxu0 0.0
  %1920 = vmatpush1.msra.mxu0 0.0
  %1921 = vmatprep.subr.mxu0 0.0
  %1922 = vmatpush1.msra.mxu0 0.0
  %1923 = vmatprep.subr.mxu0 0.0
  %1924 = vmatpush1.msra.mxu0 0.0
  %1925 = vmatprep.subr.mxu0 0.0
  %1926 = vmatpush1.msra.mxu0 0.0
  %1927 = vmatprep.subr.mxu0 0.0
  %1928 = vmatpush1.msra.mxu0 0.0
  %1929 = vmatprep.subr.mxu0 0.0
  %1930 = vmatpush1.msra.mxu0 0.0
  %1931 = vmatprep.subr.mxu0 0.0
  %1932 = vmatpush1.msra.mxu0 %v1781
  %1933 = vmatprep.subr.mxu0 0.0
  %1934 = vmatpush1.msra.mxu0 %v1776
  %1935 = vmatprep.subr.mxu0 0.0
  %1936 = vmatpush2.msra.mxu0 0.0
  %1937 = vmatprep.subr.mxu0 0.0
  %1938 = vmatpush2.msra.mxu0 0.0
  %1939 = vmatprep.subr.mxu0 0.0
  %1940 = vmatpush2.msra.mxu0 0.0
  %1941 = vmatprep.subr.mxu0 0.0
  %1942 = vmatpush2.msra.mxu0 0.0
  %1943 = vmatprep.subr.mxu0 0.0
  %1944 = vmatpush2.msra.mxu0 0.0
  %1945 = vmatprep.subr.mxu0 0.0
  %1946 = vmatpush2.msra.mxu0 0.0
  %1947 = vmatprep.subr.mxu0 0.0
  %1948 = vmatpush2.msra.mxu0 0.0
  %1949 = vmatprep.subr.mxu0 0.0
  %1950 = vmatpush2.msra.mxu0 0.0
  %1951 = vmatprep.subr.mxu0 0.0
  %1952 = vmatpush2.msra.mxu0 0.0
  %1953 = vmatprep.subr.mxu0 0.0
  %1954 = vmatpush2.msra.mxu0 0.0
  %1955 = vmatprep.subr.mxu0 0.0
  %1956 = vmatpush2.msra.mxu0 0.0
  %1957 = vmatprep.subr.mxu0 0.0
  %1958 = vmatpush2.msra.mxu0 0.0
  %1959 = vmatprep.subr.mxu0 0.0
  %1960 = vmatpush2.msra.mxu0 0.0
  %1961 = vmatprep.subr.mxu0 0.0
  %1962 = vmatpush2.msra.mxu0 0.0
  %1963 = vmatprep.subr.mxu0 0.0
  %1964 = vmatpush2.msra.mxu0 0.0
  %1965 = vmatprep.subr.mxu0 0.0
  %1966 = vmatpush2.msra.mxu0 0.0
  %1967 = vmatprep.mubr.f32.mxu0 0.0
  %1968 = vmatmul.mubr.f32.gmra.mxu0 %v1898
  %v1969 = vpop.f32.mrf.mxu0
  %v1970 = vadd.f32 0.0, %v1969
  %v1971 = vpop.f32.mrf.mxu0
  %1972 = vmatprep.mubr.f32.mxu0 0.0
  %1973 = vmatmul.mubr.f32.gmra.mxu0 %v1901
  %v1974 = vpop.f32.mrf.mxu0
  %v1975 = vadd.f32 0.0, %v1974
  %v1976 = vpop.f32.mrf.mxu0
  %1977 = vdwg.mxu0
  %s1978 = scalar_lea.vmem %s10, 32
  %v1979 = vld [vmem:[%s1978] sm:$0xff]
  %v1980 = vld [vmem:[%s1978 + $0x8] sm:$0xff]
  %s1981 = scalar_lea.vmem %s4, 96
  %v1982 = vld [vmem:[%s1981] sm:$0xff]
  %v1983 = vld [vmem:[%s1981 + $0x8] sm:$0xff]
  %v1984 = vld [vmem:[%s1981 + $0x10] sm:$0xff]
  %v1985 = vld [vmem:[%s1981 + $0x18] sm:$0xff]
  %s1986 = scalar_lea.vmem %s5, 3
  %v1987 = vld [vmem:[%s1986] sm:$0x1]
  %v1989 = vlaneseq
  %v1990 = vshrl.u32 %v1989, 7
  %v1991 = vsub.s32 0, %v1990
  %v1992 = vrot.slane %v1987, %v1991
  %1994 = vmatprep.subr.mxu0 0.0
  %1995 = vmatpush1.msra.mxu0 0.0
  %1996 = vmatprep.subr.mxu0 0.0
  %1997 = vmatpush1.msra.mxu0 0.0
  %1998 = vmatprep.subr.mxu0 0.0
  %1999 = vmatpush1.msra.mxu0 0.0
  %2000 = vmatprep.subr.mxu0 0.0
  %2001 = vmatpush1.msra.mxu0 0.0
  %2002 = vmatprep.subr.mxu0 0.0
  %2003 = vmatpush1.msra.mxu0 0.0
  %2004 = vmatprep.subr.mxu0 0.0
  %2005 = vmatpush1.msra.mxu0 0.0
  %2006 = vmatprep.subr.mxu0 0.0
  %2007 = vmatpush1.msra.mxu0 0.0
  %2008 = vmatprep.subr.mxu0 0.0
  %2009 = vmatpush1.msra.mxu0 0.0
  %2010 = vmatprep.subr.mxu0 0.0
  %2011 = vmatpush1.msra.mxu0 0.0
  %2012 = vmatprep.subr.mxu0 0.0
  %2013 = vmatpush1.msra.mxu0 0.0
  %2014 = vmatprep.subr.mxu0 0.0
  %2015 = vmatpush1.msra.mxu0 0.0
  %2016 = vmatprep.subr.mxu0 0.0
  %2017 = vmatpush1.msra.mxu0 0.0
  %2018 = vmatprep.subr.mxu0 0.0
  %2019 = vmatpush1.msra.mxu0 %v1985
  %2020 = vmatprep.subr.mxu0 0.0
  %2021 = vmatpush1.msra.mxu0 %v1984
  %2022 = vmatprep.subr.mxu0 0.0
  %2023 = vmatpush1.msra.mxu0 %v1983
  %2024 = vmatprep.subr.mxu0 0.0
  %2025 = vmatpush1.msra.mxu0 %v1982
  %2026 = vmatprep.subr.mxu0 0.0
  %2027 = vmatpush2.msra.mxu0 0.0
  %2028 = vmatprep.subr.mxu0 0.0
  %2029 = vmatpush2.msra.mxu0 0.0
  %2030 = vmatprep.subr.mxu0 0.0
  %2031 = vmatpush2.msra.mxu0 0.0
  %2032 = vmatprep.subr.mxu0 0.0
  %2033 = vmatpush2.msra.mxu0 0.0
  %2034 = vmatprep.subr.mxu0 0.0
  %2035 = vmatpush2.msra.mxu0 0.0
  %2036 = vmatprep.subr.mxu0 0.0
  %2037 = vmatpush2.msra.mxu0 0.0
  %2038 = vmatprep.subr.mxu0 0.0
  %2039 = vmatpush2.msra.mxu0 0.0
  %2040 = vmatprep.subr.mxu0 0.0
  %2041 = vmatpush2.msra.mxu0 0.0
  %2042 = vmatprep.subr.mxu0 0.0
  %2043 = vmatpush2.msra.mxu0 0.0
  %2044 = vmatprep.subr.mxu0 0.0
  %2045 = vmatpush2.msra.mxu0 0.0
  %2046 = vmatprep.subr.mxu0 0.0
  %2047 = vmatpush2.msra.mxu0 0.0
  %2048 = vmatprep.subr.mxu0 0.0
  %2049 = vmatpush2.msra.mxu0 0.0
  %2050 = vmatprep.subr.mxu0 0.0
  %2051 = vmatpush2.msra.mxu0 0.0
  %2052 = vmatprep.subr.mxu0 0.0
  %2053 = vmatpush2.msra.mxu0 0.0
  %2054 = vmatprep.subr.mxu0 0.0
  %2055 = vmatpush2.msra.mxu0 0.0
  %2056 = vmatprep.subr.mxu0 0.0
  %2057 = vmatpush2.msra.mxu0 0.0
  %2058 = vmatprep.mubr.f32.mxu0 0.0
  %2059 = vmatmul.mubr.f32.gmra.mxu0 %v1528
  %v2060 = vpop.f32.mrf.mxu0
  %v2061 = vadd.f32 %v1992, %v2060
  %v2062 = vpop.f32.mrf.mxu0
  %2063 = vmatprep.mubr.f32.mxu0 0.0
  %2064 = vmatmul.mubr.f32.gmra.mxu0 %v1531
  %v2065 = vpop.f32.mrf.mxu0
  %v2066 = vadd.f32 %v1992, %v2065
  %v2067 = vpop.f32.mrf.mxu0
  %2068 = vdwg.mxu0
  %s2069 = scalar_lea.vmem %s6, 96
  %v2070 = vld [vmem:[%s2069] sm:$0xff]
  %v2071 = vld [vmem:[%s2069 + $0x8] sm:$0xff]
  %v2072 = vld [vmem:[%s2069 + $0x10] sm:$0xff]
  %v2073 = vld [vmem:[%s2069 + $0x18] sm:$0xff]
  %s2074 = scalar_lea.vmem %s7, 3
  %v2075 = vld [vmem:[%s2074] sm:$0x1]
  %v2077 = vlaneseq
  %v2078 = vshrl.u32 %v2077, 7
  %v2079 = vsub.s32 0, %v2078
  %v2080 = vrot.slane %v2075, %v2079
  %2082 = vmatprep.subr.mxu0 0.0
  %2083 = vmatpush1.msra.mxu0 0.0
  %2084 = vmatprep.subr.mxu0 0.0
  %2085 = vmatpush1.msra.mxu0 0.0
  %2086 = vmatprep.subr.mxu0 0.0
  %2087 = vmatpush1.msra.mxu0 0.0
  %2088 = vmatprep.subr.mxu0 0.0
  %2089 = vmatpush1.msra.mxu0 0.0
  %2090 = vmatprep.subr.mxu0 0.0
  %2091 = vmatpush1.msra.mxu0 0.0
  %2092 = vmatprep.subr.mxu0 0.0
  %2093 = vmatpush1.msra.mxu0 0.0
  %2094 = vmatprep.subr.mxu0 0.0
  %2095 = vmatpush1.msra.mxu0 0.0
  %2096 = vmatprep.subr.mxu0 0.0
  %2097 = vmatpush1.msra.mxu0 0.0
  %2098 = vmatprep.subr.mxu0 0.0
  %2099 = vmatpush1.msra.mxu0 0.0
  %2100 = vmatprep.subr.mxu0 0.0
  %2101 = vmatpush1.msra.mxu0 0.0
  %2102 = vmatprep.subr.mxu0 0.0
  %2103 = vmatpush1.msra.mxu0 0.0
  %2104 = vmatprep.subr.mxu0 0.0
  %2105 = vmatpush1.msra.mxu0 0.0
  %2106 = vmatprep.subr.mxu0 0.0
  %2107 = vmatpush1.msra.mxu0 %v2073
  %2108 = vmatprep.subr.mxu0 0.0
  %2109 = vmatpush1.msra.mxu0 %v2072
  %2110 = vmatprep.subr.mxu0 0.0
  %2111 = vmatpush1.msra.mxu0 %v2071
  %2112 = vmatprep.subr.mxu0 0.0
  %2113 = vmatpush1.msra.mxu0 %v2070
  %2114 = vmatprep.subr.mxu0 0.0
  %2115 = vmatpush2.msra.mxu0 0.0
  %2116 = vmatprep.subr.mxu0 0.0
  %2117 = vmatpush2.msra.mxu0 0.0
  %2118 = vmatprep.subr.mxu0 0.0
  %2119 = vmatpush2.msra.mxu0 0.0
  %2120 = vmatprep.subr.mxu0 0.0
  %2121 = vmatpush2.msra.mxu0 0.0
  %2122 = vmatprep.subr.mxu0 0.0
  %2123 = vmatpush2.msra.mxu0 0.0
  %2124 = vmatprep.subr.mxu0 0.0
  %2125 = vmatpush2.msra.mxu0 0.0
  %2126 = vmatprep.subr.mxu0 0.0
  %2127 = vmatpush2.msra.mxu0 0.0
  %2128 = vmatprep.subr.mxu0 0.0
  %2129 = vmatpush2.msra.mxu0 0.0
  %2130 = vmatprep.subr.mxu0 0.0
  %2131 = vmatpush2.msra.mxu0 0.0
  %2132 = vmatprep.subr.mxu0 0.0
  %2133 = vmatpush2.msra.mxu0 0.0
  %2134 = vmatprep.subr.mxu0 0.0
  %2135 = vmatpush2.msra.mxu0 0.0
  %2136 = vmatprep.subr.mxu0 0.0
  %2137 = vmatpush2.msra.mxu0 0.0
  %2138 = vmatprep.subr.mxu0 0.0
  %2139 = vmatpush2.msra.mxu0 0.0
  %2140 = vmatprep.subr.mxu0 0.0
  %2141 = vmatpush2.msra.mxu0 0.0
  %2142 = vmatprep.subr.mxu0 0.0
  %2143 = vmatpush2.msra.mxu0 0.0
  %2144 = vmatprep.subr.mxu0 0.0
  %2145 = vmatpush2.msra.mxu0 0.0
  %2146 = vmatprep.mubr.f32.mxu0 0.0
  %2147 = vmatmul.mubr.f32.gmra.mxu0 %v1528
  %v2148 = vpop.f32.mrf.mxu0
  %v2149 = vadd.f32 %v2080, %v2148
  %v2150 = vpop.f32.mrf.mxu0
  %2151 = vmatprep.mubr.f32.mxu0 0.0
  %2152 = vmatmul.mubr.f32.gmra.mxu0 %v1531
  %v2153 = vpop.f32.mrf.mxu0
  %v2154 = vadd.f32 %v2080, %v2153
  %v2155 = vpop.f32.mrf.mxu0
  %2156 = vdwg.mxu0
  %s2157 = scalar_lea.vmem %s8, 96
  %v2158 = vld [vmem:[%s2157] sm:$0xff]
  %v2159 = vld [vmem:[%s2157 + $0x8] sm:$0xff]
  %v2160 = vld [vmem:[%s2157 + $0x10] sm:$0xff]
  %v2161 = vld [vmem:[%s2157 + $0x18] sm:$0xff]
  %s2162 = scalar_lea.vmem %s9, 3
  %v2163 = vld [vmem:[%s2162] sm:$0x1]
  %v2165 = vlaneseq
  %v2166 = vshrl.u32 %v2165, 7
  %v2167 = vsub.s32 0, %v2166
  %v2168 = vrot.slane %v2163, %v2167
  %2170 = vmatprep.subr.mxu0 0.0
  %2171 = vmatpush1.msra.mxu0 0.0
  %2172 = vmatprep.subr.mxu0 0.0
  %2173 = vmatpush1.msra.mxu0 0.0
  %2174 = vmatprep.subr.mxu0 0.0
  %2175 = vmatpush1.msra.mxu0 0.0
  %2176 = vmatprep.subr.mxu0 0.0
  %2177 = vmatpush1.msra.mxu0 0.0
  %2178 = vmatprep.subr.mxu0 0.0
  %2179 = vmatpush1.msra.mxu0 0.0
  %2180 = vmatprep.subr.mxu0 0.0
  %2181 = vmatpush1.msra.mxu0 0.0
  %2182 = vmatprep.subr.mxu0 0.0
  %2183 = vmatpush1.msra.mxu0 0.0
  %2184 = vmatprep.subr.mxu0 0.0
  %2185 = vmatpush1.msra.mxu0 0.0
  %2186 = vmatprep.subr.mxu0 0.0
  %2187 = vmatpush1.msra.mxu0 0.0
  %2188 = vmatprep.subr.mxu0 0.0
  %2189 = vmatpush1.msra.mxu0 0.0
  %2190 = vmatprep.subr.mxu0 0.0
  %2191 = vmatpush1.msra.mxu0 0.0
  %2192 = vmatprep.subr.mxu0 0.0
  %2193 = vmatpush1.msra.mxu0 0.0
  %2194 = vmatprep.subr.mxu0 0.0
  %2195 = vmatpush1.msra.mxu0 %v2161
  %2196 = vmatprep.subr.mxu0 0.0
  %2197 = vmatpush1.msra.mxu0 %v2160
  %2198 = vmatprep.subr.mxu0 0.0
  %2199 = vmatpush1.msra.mxu0 %v2159
  %2200 = vmatprep.subr.mxu0 0.0
  %2201 = vmatpush1.msra.mxu0 %v2158
  %2202 = vmatprep.subr.mxu0 0.0
  %2203 = vmatpush2.msra.mxu0 0.0
  %2204 = vmatprep.subr.mxu0 0.0
  %2205 = vmatpush2.msra.mxu0 0.0
  %2206 = vmatprep.subr.mxu0 0.0
  %2207 = vmatpush2.msra.mxu0 0.0
  %2208 = vmatprep.subr.mxu0 0.0
  %2209 = vmatpush2.msra.mxu0 0.0
  %2210 = vmatprep.subr.mxu0 0.0
  %2211 = vmatpush2.msra.mxu0 0.0
  %2212 = vmatprep.subr.mxu0 0.0
  %2213 = vmatpush2.msra.mxu0 0.0
  %2214 = vmatprep.subr.mxu0 0.0
  %2215 = vmatpush2.msra.mxu0 0.0
  %2216 = vmatprep.subr.mxu0 0.0
  %2217 = vmatpush2.msra.mxu0 0.0
  %2218 = vmatprep.subr.mxu0 0.0
  %2219 = vmatpush2.msra.mxu0 0.0
  %2220 = vmatprep.subr.mxu0 0.0
  %2221 = vmatpush2.msra.mxu0 0.0
  %2222 = vmatprep.subr.mxu0 0.0
  %2223 = vmatpush2.msra.mxu0 0.0
  %2224 = vmatprep.subr.mxu0 0.0
  %2225 = vmatpush2.msra.mxu0 0.0
  %2226 = vmatprep.subr.mxu0 0.0
  %2227 = vmatpush2.msra.mxu0 0.0
  %2228 = vmatprep.subr.mxu0 0.0
  %2229 = vmatpush2.msra.mxu0 0.0
  %2230 = vmatprep.subr.mxu0 0.0
  %2231 = vmatpush2.msra.mxu0 0.0
  %2232 = vmatprep.subr.mxu0 0.0
  %2233 = vmatpush2.msra.mxu0 0.0
  %2234 = vmatprep.mubr.f32.mxu0 0.0
  %2235 = vmatmul.mubr.f32.gmra.mxu0 %v1528
  %v2236 = vpop.f32.mrf.mxu0
  %v2237 = vadd.f32 %v2168, %v2236
  %v2238 = vpop.f32.mrf.mxu0
  %2239 = vmatprep.mubr.f32.mxu0 0.0
  %2240 = vmatmul.mubr.f32.gmra.mxu0 %v1531
  %v2241 = vpop.f32.mrf.mxu0
  %v2242 = vadd.f32 %v2168, %v2241
  %v2243 = vpop.f32.mrf.mxu0
  %2244 = vdwg.mxu0
  %v2246 = vsel %vm385, %v2061, 0
  %v2249 = vsel %vm385, %v2066, 0
  %v2252 = vsel %vm385, %v2149, 0
  %v2255 = vsel %vm385, %v2154, 0
  %2257 = vmatprep.subr.mxu0 0.0
  %2258 = vmatpush1.xpose.msra.mxu0 0.0
  %2259 = vmatprep.subr.mxu0 0.0
  %2260 = vmatpush1.xpose.msra.mxu0 0.0
  %2261 = vmatprep.subr.mxu0 0.0
  %2262 = vmatpush1.xpose.msra.mxu0 0.0
  %2263 = vmatprep.subr.mxu0 0.0
  %2264 = vmatpush1.xpose.msra.mxu0 0.0
  %2265 = vmatprep.subr.mxu0 0.0
  %2266 = vmatpush1.xpose.msra.mxu0 0.0
  %2267 = vmatprep.subr.mxu0 0.0
  %2268 = vmatpush1.xpose.msra.mxu0 0.0
  %2269 = vmatprep.subr.mxu0 0.0
  %2270 = vmatpush1.xpose.msra.mxu0 0.0
  %2271 = vmatprep.subr.mxu0 0.0
  %2272 = vmatpush1.xpose.msra.mxu0 0.0
  %2273 = vmatprep.subr.mxu0 0.0
  %2274 = vmatpush1.xpose.msra.mxu0 0.0
  %2275 = vmatprep.subr.mxu0 0.0
  %2276 = vmatpush1.xpose.msra.mxu0 0.0
  %2277 = vmatprep.subr.mxu0 0.0
  %2278 = vmatpush1.xpose.msra.mxu0 0.0
  %2279 = vmatprep.subr.mxu0 0.0
  %2280 = vmatpush1.xpose.msra.mxu0 0.0
  %2281 = vmatprep.subr.mxu0 0.0
  %2282 = vmatpush1.xpose.msra.mxu0 0.0
  %2283 = vmatprep.subr.mxu0 0.0
  %2284 = vmatpush1.xpose.msra.mxu0 0.0
  %2285 = vmatprep.subr.mxu0 0.0
  %2286 = vmatpush1.xpose.msra.mxu0 %v2255
  %2287 = vmatprep.subr.mxu0 0.0
  %2288 = vmatpush1.xpose.msra.mxu0 %v2252
  %2289 = vmatprep.subr.mxu0 0.0
  %2290 = vmatpush2.xpose.msra.mxu0 0.0
  %2291 = vmatprep.subr.mxu0 0.0
  %2292 = vmatpush2.xpose.msra.mxu0 0.0
  %2293 = vmatprep.subr.mxu0 0.0
  %2294 = vmatpush2.xpose.msra.mxu0 0.0
  %2295 = vmatprep.subr.mxu0 0.0
  %2296 = vmatpush2.xpose.msra.mxu0 0.0
  %2297 = vmatprep.subr.mxu0 0.0
  %2298 = vmatpush2.xpose.msra.mxu0 0.0
  %2299 = vmatprep.subr.mxu0 0.0
  %2300 = vmatpush2.xpose.msra.mxu0 0.0
  %2301 = vmatprep.subr.mxu0 0.0
  %2302 = vmatpush2.xpose.msra.mxu0 0.0
  %2303 = vmatprep.subr.mxu0 0.0
  %2304 = vmatpush2.xpose.msra.mxu0 0.0
  %2305 = vmatprep.subr.mxu0 0.0
  %2306 = vmatpush2.xpose.msra.mxu0 0.0
  %2307 = vmatprep.subr.mxu0 0.0
  %2308 = vmatpush2.xpose.msra.mxu0 0.0
  %2309 = vmatprep.subr.mxu0 0.0
  %2310 = vmatpush2.xpose.msra.mxu0 0.0
  %2311 = vmatprep.subr.mxu0 0.0
  %2312 = vmatpush2.xpose.msra.mxu0 0.0
  %2313 = vmatprep.subr.mxu0 0.0
  %2314 = vmatpush2.xpose.msra.mxu0 0.0
  %2315 = vmatprep.subr.mxu0 0.0
  %2316 = vmatpush2.xpose.msra.mxu0 0.0
  %2317 = vmatprep.subr.mxu0 0.0
  %2318 = vmatpush2.xpose.msra.mxu0 0.0
  %2319 = vmatprep.subr.mxu0 0.0
  %2320 = vmatpush2.xpose.msra.mxu0 0.0
  %2321 = vmatprep.mubr.f32.mxu0 0.0
  %2322 = vmatmul.mubr.f32.gmra.mxu0 %v2246
  %v2323 = vpop.f32.mrf.mxu0
  %v2324 = vadd.f32 0.0, %v2323
  %v2325 = vpop.f32.mrf.mxu0
  %2326 = vmatprep.mubr.f32.mxu0 0.0
  %2327 = vmatmul.mubr.f32.gmra.mxu0 %v2249
  %v2328 = vpop.f32.mrf.mxu0
  %v2329 = vadd.f32 0.0, %v2328
  %v2330 = vpop.f32.mrf.mxu0
  %2331 = vdwg.mxu0
  %v2332 = vmul.f32 %v2324, 0.25
  %v2333 = vmul.f32 %v2329, 0.25
  %v2334 = vadd.f32 %v2332, %v71
  %v2335 = vadd.f32 %v2333, %v72
  %v2336 = vsel %vm385, %v2334, -inf
  %2337 = vmax.xlane.f32.xlu0 %v2336
  %v2338 = vpop.xlane.xlu0 %2337
  %v2339 = vsel %vm385, %v2335, -inf
  %2340 = vmax.xlane.f32.xlu0 %v2339
  %v2341 = vpop.xlane.xlu0 %2340
  %v2342 = vsub.f32 %v2334, %v2338
  %v2343 = vsub.f32 %v2335, %v2341
  %v2344 = vmul.f32 %v2342, 1.442695
  %v2345 = vpow.pop %v2344
  %v2346 = vmul.f32 %v2343, 1.442695
  %v2347 = vpow.pop %v2346
  %v2348 = vsel %vm385, %v2345, 0.0
  %2349 = vadd.xlane.f32.xlu0 %v2348
  %v2350 = vpop.xlane.xlu0 %2349
  %v2351 = vsel %vm385, %v2347, 0.0
  %2352 = vadd.xlane.f32.xlu0 %v2351
  %v2353 = vpop.xlane.xlu0 %2352
  %v2354 = vrcp.pop %v2350
  %v2355 = vrcp.pop %v2353
  %v2356 = vmul.f32 %v2345, %v2354
  %v2357 = vmul.f32 %v2347, %v2355
  %v2359 = vsel %vm385, %v2356, 0
  %v2362 = vsel %vm385, %v2357, 0
  %2364 = vmatprep.subr.mxu0 0.0
  %2365 = vmatpush1.msra.mxu0 0.0
  %2366 = vmatprep.subr.mxu0 0.0
  %2367 = vmatpush1.msra.mxu0 0.0
  %2368 = vmatprep.subr.mxu0 0.0
  %2369 = vmatpush1.msra.mxu0 0.0
  %2370 = vmatprep.subr.mxu0 0.0
  %2371 = vmatpush1.msra.mxu0 0.0
  %2372 = vmatprep.subr.mxu0 0.0
  %2373 = vmatpush1.msra.mxu0 0.0
  %2374 = vmatprep.subr.mxu0 0.0
  %2375 = vmatpush1.msra.mxu0 0.0
  %2376 = vmatprep.subr.mxu0 0.0
  %2377 = vmatpush1.msra.mxu0 0.0
  %2378 = vmatprep.subr.mxu0 0.0
  %2379 = vmatpush1.msra.mxu0 0.0
  %2380 = vmatprep.subr.mxu0 0.0
  %2381 = vmatpush1.msra.mxu0 0.0
  %2382 = vmatprep.subr.mxu0 0.0
  %2383 = vmatpush1.msra.mxu0 0.0
  %2384 = vmatprep.subr.mxu0 0.0
  %2385 = vmatpush1.msra.mxu0 0.0
  %2386 = vmatprep.subr.mxu0 0.0
  %2387 = vmatpush1.msra.mxu0 0.0
  %2388 = vmatprep.subr.mxu0 0.0
  %2389 = vmatpush1.msra.mxu0 0.0
  %2390 = vmatprep.subr.mxu0 0.0
  %2391 = vmatpush1.msra.mxu0 0.0
  %2392 = vmatprep.subr.mxu0 0.0
  %2393 = vmatpush1.msra.mxu0 %v2242
  %2394 = vmatprep.subr.mxu0 0.0
  %2395 = vmatpush1.msra.mxu0 %v2237
  %2396 = vmatprep.subr.mxu0 0.0
  %2397 = vmatpush2.msra.mxu0 0.0
  %2398 = vmatprep.subr.mxu0 0.0
  %2399 = vmatpush2.msra.mxu0 0.0
  %2400 = vmatprep.subr.mxu0 0.0
  %2401 = vmatpush2.msra.mxu0 0.0
  %2402 = vmatprep.subr.mxu0 0.0
  %2403 = vmatpush2.msra.mxu0 0.0
  %2404 = vmatprep.subr.mxu0 0.0
  %2405 = vmatpush2.msra.mxu0 0.0
  %2406 = vmatprep.subr.mxu0 0.0
  %2407 = vmatpush2.msra.mxu0 0.0
  %2408 = vmatprep.subr.mxu0 0.0
  %2409 = vmatpush2.msra.mxu0 0.0
  %2410 = vmatprep.subr.mxu0 0.0
  %2411 = vmatpush2.msra.mxu0 0.0
  %2412 = vmatprep.subr.mxu0 0.0
  %2413 = vmatpush2.msra.mxu0 0.0
  %2414 = vmatprep.subr.mxu0 0.0
  %2415 = vmatpush2.msra.mxu0 0.0
  %2416 = vmatprep.subr.mxu0 0.0
  %2417 = vmatpush2.msra.mxu0 0.0
  %2418 = vmatprep.subr.mxu0 0.0
  %2419 = vmatpush2.msra.mxu0 0.0
  %2420 = vmatprep.subr.mxu0 0.0
  %2421 = vmatpush2.msra.mxu0 0.0
  %2422 = vmatprep.subr.mxu0 0.0
  %2423 = vmatpush2.msra.mxu0 0.0
  %2424 = vmatprep.subr.mxu0 0.0
  %2425 = vmatpush2.msra.mxu0 0.0
  %2426 = vmatprep.subr.mxu0 0.0
  %2427 = vmatpush2.msra.mxu0 0.0
  %2428 = vmatprep.mubr.f32.mxu0 0.0
  %2429 = vmatmul.mubr.f32.gmra.mxu0 %v2359
  %v2430 = vpop.f32.mrf.mxu0
  %v2431 = vadd.f32 0.0, %v2430
  %v2432 = vpop.f32.mrf.mxu0
  %2433 = vmatprep.mubr.f32.mxu0 0.0
  %2434 = vmatmul.mubr.f32.gmra.mxu0 %v2362
  %v2435 = vpop.f32.mrf.mxu0
  %v2436 = vadd.f32 0.0, %v2435
  %v2437 = vpop.f32.mrf.mxu0
  %2438 = vdwg.mxu0
  %s2439 = scalar_lea.vmem %s10, 48
  %v2440 = vld [vmem:[%s2439] sm:$0xff]
  %v2441 = vld [vmem:[%s2439 + $0x8] sm:$0xff]
  %v2443 = vsel %vm385, %v2431, 0
  %v2446 = vsel %vm385, %v2436, 0
  %2448 = vmatprep.subr.mxu0 0.0
  %2449 = vmatpush1.msra.mxu0 0.0
  %2450 = vmatprep.subr.mxu0 0.0
  %2451 = vmatpush1.msra.mxu0 0.0
  %2452 = vmatprep.subr.mxu0 0.0
  %2453 = vmatpush1.msra.mxu0 0.0
  %2454 = vmatprep.subr.mxu0 0.0
  %2455 = vmatpush1.msra.mxu0 0.0
  %2456 = vmatprep.subr.mxu0 0.0
  %2457 = vmatpush1.msra.mxu0 0.0
  %2458 = vmatprep.subr.mxu0 0.0
  %2459 = vmatpush1.msra.mxu0 0.0
  %2460 = vmatprep.subr.mxu0 0.0
  %2461 = vmatpush1.msra.mxu0 0.0
  %2462 = vmatprep.subr.mxu0 0.0
  %2463 = vmatpush1.msra.mxu0 0.0
  %2464 = vmatprep.subr.mxu0 0.0
  %2465 = vmatpush1.msra.mxu0 0.0
  %2466 = vmatprep.subr.mxu0 0.0
  %2467 = vmatpush1.msra.mxu0 0.0
  %2468 = vmatprep.subr.mxu0 0.0
  %2469 = vmatpush1.msra.mxu0 0.0
  %2470 = vmatprep.subr.mxu0 0.0
  %2471 = vmatpush1.msra.mxu0 0.0
  %2472 = vmatprep.subr.mxu0 0.0
  %2473 = vmatpush1.msra.mxu0 0.0
  %2474 = vmatprep.subr.mxu0 0.0
  %2475 = vmatpush1.msra.mxu0 0.0
  %2476 = vmatprep.subr.mxu0 0.0
  %2477 = vmatpush1.msra.mxu0 %v2441
  %2478 = vmatprep.subr.mxu0 0.0
  %2479 = vmatpush1.msra.mxu0 %v2440
  %2480 = vmatprep.subr.mxu0 0.0
  %2481 = vmatpush2.msra.mxu0 0.0
  %2482 = vmatprep.subr.mxu0 0.0
  %2483 = vmatpush2.msra.mxu0 0.0
  %2484 = vmatprep.subr.mxu0 0.0
  %2485 = vmatpush2.msra.mxu0 0.0
  %2486 = vmatprep.subr.mxu0 0.0
  %2487 = vmatpush2.msra.mxu0 0.0
  %2488 = vmatprep.subr.mxu0 0.0
  %2489 = vmatpush2.msra.mxu0 0.0
  %2490 = vmatprep.subr.mxu0 0.0
  %2491 = vmatpush2.msra.mxu0 0.0
  %2492 = vmatprep.subr.mxu0 0.0
  %2493 = vmatpush2.msra.mxu0 0.0
  %2494 = vmatprep.subr.mxu0 0.0
  %2495 = vmatpush2.msra.mxu0 0.0
  %2496 = vmatprep.subr.mxu0 0.0
  %2497 = vmatpush2.msra.mxu0 0.0
  %2498 = vmatprep.subr.mxu0 0.0
  %2499 = vmatpush2.msra.mxu0 0.0
  %2500 = vmatprep.subr.mxu0 0.0
  %2501 = vmatpush2.msra.mxu0 0.0
  %2502 = vmatprep.subr.mxu0 0.0
  %2503 = vmatpush2.msra.mxu0 0.0
  %2504 = vmatprep.subr.mxu0 0.0
  %2505 = vmatpush2.msra.mxu0 0.0
  %2506 = vmatprep.subr.mxu0 0.0
  %2507 = vmatpush2.msra.mxu0 0.0
  %2508 = vmatprep.subr.mxu0 0.0
  %2509 = vmatpush2.msra.mxu0 0.0
  %2510 = vmatprep.subr.mxu0 0.0
  %2511 = vmatpush2.msra.mxu0 0.0
  %2512 = vmatprep.mubr.f32.mxu0 0.0
  %2513 = vmatmul.mubr.f32.gmra.mxu0 %v2443
  %v2514 = vpop.f32.mrf.mxu0
  %v2515 = vadd.f32 0.0, %v2514
  %v2516 = vpop.f32.mrf.mxu0
  %2517 = vmatprep.mubr.f32.mxu0 0.0
  %2518 = vmatmul.mubr.f32.gmra.mxu0 %v2446
  %v2519 = vpop.f32.mrf.mxu0
  %v2520 = vadd.f32 0.0, %v2519
  %v2521 = vpop.f32.mrf.mxu0
  %2522 = vdwg.mxu0
  %v2524 = vsel %vm385, %v1970, 0
  %v2527 = vsel %vm385, %v1975, 0
  %2529 = vmatprep.subr.mxu0 0.0
  %2530 = vmatpush1.msra.mxu0 0.0
  %2531 = vmatprep.subr.mxu0 0.0
  %2532 = vmatpush1.msra.mxu0 0.0
  %2533 = vmatprep.subr.mxu0 0.0
  %2534 = vmatpush1.msra.mxu0 0.0
  %2535 = vmatprep.subr.mxu0 0.0
  %2536 = vmatpush1.msra.mxu0 0.0
  %2537 = vmatprep.subr.mxu0 0.0
  %2538 = vmatpush1.msra.mxu0 0.0
  %2539 = vmatprep.subr.mxu0 0.0
  %2540 = vmatpush1.msra.mxu0 0.0
  %2541 = vmatprep.subr.mxu0 0.0
  %2542 = vmatpush1.msra.mxu0 0.0
  %2543 = vmatprep.subr.mxu0 0.0
  %2544 = vmatpush1.msra.mxu0 0.0
  %2545 = vmatprep.subr.mxu0 0.0
  %2546 = vmatpush1.msra.mxu0 0.0
  %2547 = vmatprep.subr.mxu0 0.0
  %2548 = vmatpush1.msra.mxu0 0.0
  %2549 = vmatprep.subr.mxu0 0.0
  %2550 = vmatpush1.msra.mxu0 0.0
  %2551 = vmatprep.subr.mxu0 0.0
  %2552 = vmatpush1.msra.mxu0 0.0
  %2553 = vmatprep.subr.mxu0 0.0
  %2554 = vmatpush1.msra.mxu0 0.0
  %2555 = vmatprep.subr.mxu0 0.0
  %2556 = vmatpush1.msra.mxu0 0.0
  %2557 = vmatprep.subr.mxu0 0.0
  %2558 = vmatpush1.msra.mxu0 %v1980
  %2559 = vmatprep.subr.mxu0 0.0
  %2560 = vmatpush1.msra.mxu0 %v1979
  %2561 = vmatprep.subr.mxu0 0.0
  %2562 = vmatpush2.msra.mxu0 0.0
  %2563 = vmatprep.subr.mxu0 0.0
  %2564 = vmatpush2.msra.mxu0 0.0
  %2565 = vmatprep.subr.mxu0 0.0
  %2566 = vmatpush2.msra.mxu0 0.0
  %2567 = vmatprep.subr.mxu0 0.0
  %2568 = vmatpush2.msra.mxu0 0.0
  %2569 = vmatprep.subr.mxu0 0.0
  %2570 = vmatpush2.msra.mxu0 0.0
  %2571 = vmatprep.subr.mxu0 0.0
  %2572 = vmatpush2.msra.mxu0 0.0
  %2573 = vmatprep.subr.mxu0 0.0
  %2574 = vmatpush2.msra.mxu0 0.0
  %2575 = vmatprep.subr.mxu0 0.0
  %2576 = vmatpush2.msra.mxu0 0.0
  %2577 = vmatprep.subr.mxu0 0.0
  %2578 = vmatpush2.msra.mxu0 0.0
  %2579 = vmatprep.subr.mxu0 0.0
  %2580 = vmatpush2.msra.mxu0 0.0
  %2581 = vmatprep.subr.mxu0 0.0
  %2582 = vmatpush2.msra.mxu0 0.0
  %2583 = vmatprep.subr.mxu0 0.0
  %2584 = vmatpush2.msra.mxu0 0.0
  %2585 = vmatprep.subr.mxu0 0.0
  %2586 = vmatpush2.msra.mxu0 0.0
  %2587 = vmatprep.subr.mxu0 0.0
  %2588 = vmatpush2.msra.mxu0 0.0
  %2589 = vmatprep.subr.mxu0 0.0
  %2590 = vmatpush2.msra.mxu0 0.0
  %2591 = vmatprep.subr.mxu0 0.0
  %2592 = vmatpush2.msra.mxu0 0.0
  %2593 = vmatprep.mubr.f32.mxu0 0.0
  %2594 = vmatmul.mubr.f32.gmra.mxu0 %v2524
  %v2595 = vpop.f32.mrf.mxu0
  %v2596 = vadd.f32 %v2515, %v2595
  %v2597 = vpop.f32.mrf.mxu0
  %2598 = vmatprep.mubr.f32.mxu0 0.0
  %2599 = vmatmul.mubr.f32.gmra.mxu0 %v2527
  %v2600 = vpop.f32.mrf.mxu0
  %v2601 = vadd.f32 %v2520, %v2600
  %v2602 = vpop.f32.mrf.mxu0
  %2603 = vdwg.mxu0
  %s2604 = scalar_lea.vmem %s11, 1
  %v2605 = vld [vmem:[%s2604] sm:$0x1]
  %v2607 = vlaneseq
  %v2608 = vshrl.u32 %v2607, 7
  %v2609 = vsub.s32 0, %v2608
  %v2610 = vrot.slane %v2605, %v2609
  %v2612 = vadd.f32 %v2596, %v2610
  %v2613 = vadd.f32 %v2601, %v2610
  %v2614 = vadd.f32 %v2612, %v1512
  %v2615 = vadd.f32 %v2613, %v1513
  %s2616 = scalar_lea.vmem %s12, 1
  %v2617 = vld [vmem:[%s2616] sm:$0x1]
  %s2618 = scalar_lea.vmem %s13, 1
  %v2619 = vld [vmem:[%s2618] sm:$0x1]
  %v2620 = vsel %vm77, %v2614, 0.0
  %2621 = vadd.xlane.f32.xlu0 %v2620
  %v2622 = vpop.xlane.xlu0 %2621
  %v2623 = vsel %vm77, %v2615, 0.0
  %2624 = vadd.xlane.f32.xlu0 %v2623
  %v2625 = vpop.xlane.xlu0 %2624
  %v2626 = vmul.f32 %v2622, %v84
  %v2627 = vmul.f32 %v2625, %v84
  %v2628 = vsub.f32 %v2614, %v2626
  %v2629 = vsub.f32 %v2615, %v2627
  %v2630 = vmul.f32 %v2628, %v2628
  %v2631 = vmul.f32 %v2629, %v2629
  %v2632 = vsel %vm77, %v2630, 0.0
  %2633 = vadd.xlane.f32.xlu0 %v2632
  %v2634 = vpop.xlane.xlu0 %2633
  %v2635 = vsel %vm77, %v2631, 0.0
  %2636 = vadd.xlane.f32.xlu0 %v2635
  %v2637 = vpop.xlane.xlu0 %2636
  %v2638 = vmul.f32 %v2634, %v84
  %v2639 = vmul.f32 %v2637, %v84
  %v2640 = vadd.f32 %v2638, 1e-12
  %v2641 = vadd.f32 %v2639, 1e-12
  %v2642 = vrsqrt.pop %v2640
  %v2643 = vrsqrt.pop %v2641
  %v2644 = vmul.f32 %v2628, %v2642
  %v2645 = vmul.f32 %v2629, %v2643
  %v2647 = vlaneseq
  %v2648 = vshrl.u32 %v2647, 7
  %v2649 = vsub.s32 0, %v2648
  %v2650 = vrot.slane %v2617, %v2649
  %v2652 = vmul.f32 %v2644, %v2650
  %v2653 = vmul.f32 %v2645, %v2650
  %v2655 = vlaneseq
  %v2656 = vshrl.u32 %v2655, 7
  %v2657 = vsub.s32 0, %v2656
  %v2658 = vrot.slane %v2619, %v2657
  %v2660 = vadd.f32 %v2652, %v2658
  %v2661 = vadd.f32 %v2653, %v2658
  %s2662 = scalar_lea.vmem %s14, 32
  %v2663 = vld [vmem:[%s2662] sm:$0xff]
  %v2664 = vld [vmem:[%s2662 + $0x8] sm:$0xff]
  %v2665 = vld [vmem:[%s2662 + $0x10] sm:$0xff]
  %v2666 = vld [vmem:[%s2662 + $0x18] sm:$0xff]
  %s2667 = scalar_lea.vmem %s15, 1
  %v2668 = vld [vmem:[%s2667] sm:$0x1]
  %v2670 = vlaneseq
  %v2671 = vshrl.u32 %v2670, 7
  %v2672 = vsub.s32 0, %v2671
  %v2673 = vrot.slane %v2668, %v2672
  %v2676 = vsel %vm77, %v2660, 0
  %v2679 = vsel %vm77, %v2661, 0
  %2681 = vmatprep.subr.mxu0 0.0
  %2682 = vmatpush1.msra.mxu0 0.0
  %2683 = vmatprep.subr.mxu0 0.0
  %2684 = vmatpush1.msra.mxu0 0.0
  %2685 = vmatprep.subr.mxu0 0.0
  %2686 = vmatpush1.msra.mxu0 0.0
  %2687 = vmatprep.subr.mxu0 0.0
  %2688 = vmatpush1.msra.mxu0 0.0
  %2689 = vmatprep.subr.mxu0 0.0
  %2690 = vmatpush1.msra.mxu0 0.0
  %2691 = vmatprep.subr.mxu0 0.0
  %2692 = vmatpush1.msra.mxu0 0.0
  %2693 = vmatprep.subr.mxu0 0.0
  %2694 = vmatpush1.msra.mxu0 0.0
  %2695 = vmatprep.subr.mxu0 0.0
  %2696 = vmatpush1.msra.mxu0 0.0
  %2697 = vmatprep.subr.mxu0 0.0
  %2698 = vmatpush1.msra.mxu0 0.0
  %2699 = vmatprep.subr.mxu0 0.0
  %2700 = vmatpush1.msra.mxu0 0.0
  %2701 = vmatprep.subr.mxu0 0.0
  %2702 = vmatpush1.msra.mxu0 0.0
  %2703 = vmatprep.subr.mxu0 0.0
  %2704 = vmatpush1.msra.mxu0 0.0
  %2705 = vmatprep.subr.mxu0 0.0
  %2706 = vmatpush1.msra.mxu0 %v2666
  %2707 = vmatprep.subr.mxu0 0.0
  %2708 = vmatpush1.msra.mxu0 %v2665
  %2709 = vmatprep.subr.mxu0 0.0
  %2710 = vmatpush1.msra.mxu0 %v2664
  %2711 = vmatprep.subr.mxu0 0.0
  %2712 = vmatpush1.msra.mxu0 %v2663
  %2713 = vmatprep.subr.mxu0 0.0
  %2714 = vmatpush2.msra.mxu0 0.0
  %2715 = vmatprep.subr.mxu0 0.0
  %2716 = vmatpush2.msra.mxu0 0.0
  %2717 = vmatprep.subr.mxu0 0.0
  %2718 = vmatpush2.msra.mxu0 0.0
  %2719 = vmatprep.subr.mxu0 0.0
  %2720 = vmatpush2.msra.mxu0 0.0
  %2721 = vmatprep.subr.mxu0 0.0
  %2722 = vmatpush2.msra.mxu0 0.0
  %2723 = vmatprep.subr.mxu0 0.0
  %2724 = vmatpush2.msra.mxu0 0.0
  %2725 = vmatprep.subr.mxu0 0.0
  %2726 = vmatpush2.msra.mxu0 0.0
  %2727 = vmatprep.subr.mxu0 0.0
  %2728 = vmatpush2.msra.mxu0 0.0
  %2729 = vmatprep.subr.mxu0 0.0
  %2730 = vmatpush2.msra.mxu0 0.0
  %2731 = vmatprep.subr.mxu0 0.0
  %2732 = vmatpush2.msra.mxu0 0.0
  %2733 = vmatprep.subr.mxu0 0.0
  %2734 = vmatpush2.msra.mxu0 0.0
  %2735 = vmatprep.subr.mxu0 0.0
  %2736 = vmatpush2.msra.mxu0 0.0
  %2737 = vmatprep.subr.mxu0 0.0
  %2738 = vmatpush2.msra.mxu0 0.0
  %2739 = vmatprep.subr.mxu0 0.0
  %2740 = vmatpush2.msra.mxu0 0.0
  %2741 = vmatprep.subr.mxu0 0.0
  %2742 = vmatpush2.msra.mxu0 0.0
  %2743 = vmatprep.subr.mxu0 0.0
  %2744 = vmatpush2.msra.mxu0 0.0
  %2745 = vmatprep.mubr.f32.mxu0 0.0
  %2746 = vmatmul.mubr.f32.gmra.mxu0 %v2676
  %v2747 = vpop.f32.mrf.mxu0
  %v2748 = vadd.f32 %v2673, %v2747
  %v2749 = vpop.f32.mrf.mxu0
  %2750 = vmatprep.mubr.f32.mxu0 0.0
  %2751 = vmatmul.mubr.f32.gmra.mxu0 %v2679
  %v2752 = vpop.f32.mrf.mxu0
  %v2753 = vadd.f32 %v2673, %v2752
  %v2754 = vpop.f32.mrf.mxu0
  %2755 = vdwg.mxu0
  %v2756 = vmul.f32 %v2748, 0.5
  %v2757 = vmul.f32 %v2753, 0.5
  %v2758 = vmul.f32 %v2748, 0.044715
  %v2759 = vmul.f32 %v2753, 0.044715
  %v2760 = vmul.f32 %v2758, %v2748
  %v2761 = vmul.f32 %v2759, %v2753
  %v2762 = vmul.f32 %v2760, %v2748
  %v2763 = vmul.f32 %v2761, %v2753
  %v2764 = vadd.f32 %v2748, %v2762
  %v2765 = vadd.f32 %v2753, %v2763
  %v2766 = vmul.f32 %v2764, 0.7978846
  %v2767 = vmul.f32 %v2765, 0.7978846
  %v2768 = vtanh.pop %v2766
  %v2769 = vtanh.pop %v2767
  %v2770 = vadd.f32 %v2768, 1.0
  %v2771 = vadd.f32 %v2769, 1.0
  %v2772 = vmul.f32 %v2756, %v2770
  %v2773 = vmul.f32 %v2757, %v2771
  %s2774 = scalar_lea.vmem %s16, 128
  %v2775 = vld [vmem:[%s2774] sm:$0xff]
  %v2776 = vld [vmem:[%s2774 + $0x8] sm:$0xff]
  %v2777 = vld [vmem:[%s2774 + $0x10] sm:$0xff]
  %v2778 = vld [vmem:[%s2774 + $0x18] sm:$0xff]
  %v2779 = vld [vmem:[%s2774 + $0x20] sm:$0xff]
  %v2780 = vld [vmem:[%s2774 + $0x28] sm:$0xff]
  %v2781 = vld [vmem:[%s2774 + $0x30] sm:$0xff]
  %v2782 = vld [vmem:[%s2774 + $0x38] sm:$0xff]
  %v2783 = vld [vmem:[%s2774 + $0x40] sm:$0xff]
  %v2784 = vld [vmem:[%s2774 + $0x48] sm:$0xff]
  %v2785 = vld [vmem:[%s2774 + $0x50] sm:$0xff]
  %v2786 = vld [vmem:[%s2774 + $0x58] sm:$0xff]
  %v2787 = vld [vmem:[%s2774 + $0x60] sm:$0xff]
  %v2788 = vld [vmem:[%s2774 + $0x68] sm:$0xff]
  %v2789 = vld [vmem:[%s2774 + $0x70] sm:$0xff]
  %v2790 = vld [vmem:[%s2774 + $0x78] sm:$0xff]
  %s2791 = scalar_lea.vmem %s17, 1
  %v2792 = vld [vmem:[%s2791] sm:$0x1]
  %v2794 = vlaneseq
  %v2795 = vshrl.u32 %v2794, 7
  %v2796 = vsub.s32 0, %v2795
  %v2797 = vrot.slane %v2792, %v2796
  %2799 = vmatprep.subr.mxu0 0.0
  %2800 = vmatpush1.msra.mxu0 %v2790
  %2801 = vmatprep.subr.mxu0 0.0
  %2802 = vmatpush1.msra.mxu0 %v2789
  %2803 = vmatprep.subr.mxu0 0.0
  %2804 = vmatpush1.msra.mxu0 %v2788
  %2805 = vmatprep.subr.mxu0 0.0
  %2806 = vmatpush1.msra.mxu0 %v2787
  %2807 = vmatprep.subr.mxu0 0.0
  %2808 = vmatpush1.msra.mxu0 %v2786
  %2809 = vmatprep.subr.mxu0 0.0
  %2810 = vmatpush1.msra.mxu0 %v2785
  %2811 = vmatprep.subr.mxu0 0.0
  %2812 = vmatpush1.msra.mxu0 %v2784
  %2813 = vmatprep.subr.mxu0 0.0
  %2814 = vmatpush1.msra.mxu0 %v2783
  %2815 = vmatprep.subr.mxu0 0.0
  %2816 = vmatpush1.msra.mxu0 %v2782
  %2817 = vmatprep.subr.mxu0 0.0
  %2818 = vmatpush1.msra.mxu0 %v2781
  %2819 = vmatprep.subr.mxu0 0.0
  %2820 = vmatpush1.msra.mxu0 %v2780
  %2821 = vmatprep.subr.mxu0 0.0
  %2822 = vmatpush1.msra.mxu0 %v2779
  %2823 = vmatprep.subr.mxu0 0.0
  %2824 = vmatpush1.msra.mxu0 %v2778
  %2825 = vmatprep.subr.mxu0 0.0
  %2826 = vmatpush1.msra.mxu0 %v2777
  %2827 = vmatprep.subr.mxu0 0.0
  %2828 = vmatpush1.msra.mxu0 %v2776
  %2829 = vmatprep.subr.mxu0 0.0
  %2830 = vmatpush1.msra.mxu0 %v2775
  %2831 = vmatprep.subr.mxu0 0.0
  %2832 = vmatpush2.msra.mxu0 0.0
  %2833 = vmatprep.subr.mxu0 0.0
  %2834 = vmatpush2.msra.mxu0 0.0
  %2835 = vmatprep.subr.mxu0 0.0
  %2836 = vmatpush2.msra.mxu0 0.0
  %2837 = vmatprep.subr.mxu0 0.0
  %2838 = vmatpush2.msra.mxu0 0.0
  %2839 = vmatprep.subr.mxu0 0.0
  %2840 = vmatpush2.msra.mxu0 0.0
  %2841 = vmatprep.subr.mxu0 0.0
  %2842 = vmatpush2.msra.mxu0 0.0
  %2843 = vmatprep.subr.mxu0 0.0
  %2844 = vmatpush2.msra.mxu0 0.0
  %2845 = vmatprep.subr.mxu0 0.0
  %2846 = vmatpush2.msra.mxu0 0.0
  %2847 = vmatprep.subr.mxu0 0.0
  %2848 = vmatpush2.msra.mxu0 0.0
  %2849 = vmatprep.subr.mxu0 0.0
  %2850 = vmatpush2.msra.mxu0 0.0
  %2851 = vmatprep.subr.mxu0 0.0
  %2852 = vmatpush2.msra.mxu0 0.0
  %2853 = vmatprep.subr.mxu0 0.0
  %2854 = vmatpush2.msra.mxu0 0.0
  %2855 = vmatprep.subr.mxu0 0.0
  %2856 = vmatpush2.msra.mxu0 0.0
  %2857 = vmatprep.subr.mxu0 0.0
  %2858 = vmatpush2.msra.mxu0 0.0
  %2859 = vmatprep.subr.mxu0 0.0
  %2860 = vmatpush2.msra.mxu0 0.0
  %2861 = vmatprep.subr.mxu0 0.0
  %2862 = vmatpush2.msra.mxu0 0.0
  %2863 = vmatprep.mubr.f32.mxu0 0.0
  %2864 = vmatmul.mubr.f32.gmra.mxu0 %v2772
  %v2865 = vpop.f32.mrf.mxu0
  %v2866 = vadd.f32 %v2797, %v2865
  %v2867 = vpop.f32.mrf.mxu0
  %2868 = vmatprep.mubr.f32.mxu0 0.0
  %2869 = vmatmul.mubr.f32.gmra.mxu0 %v2773
  %v2870 = vpop.f32.mrf.mxu0
  %v2871 = vadd.f32 %v2797, %v2870
  %v2872 = vpop.f32.mrf.mxu0
  %2873 = vdwg.mxu0
  %v2874 = vadd.f32 %v2866, %v2660
  %v2875 = vadd.f32 %v2871, %v2661
  %s2876 = scalar_lea.vmem %s18, 1
  %v2877 = vld [vmem:[%s2876] sm:$0x1]
  %s2878 = scalar_lea.vmem %s19, 1
  %v2879 = vld [vmem:[%s2878] sm:$0x1]
  %v2880 = vsel %vm77, %v2874, 0.0
  %2881 = vadd.xlane.f32.xlu0 %v2880
  %v2882 = vpop.xlane.xlu0 %2881
  %v2883 = vsel %vm77, %v2875, 0.0
  %2884 = vadd.xlane.f32.xlu0 %v2883
  %v2885 = vpop.xlane.xlu0 %2884
  %v2886 = vmul.f32 %v2882, %v84
  %v2887 = vmul.f32 %v2885, %v84
  %v2888 = vsub.f32 %v2874, %v2886
  %v2889 = vsub.f32 %v2875, %v2887
  %v2890 = vmul.f32 %v2888, %v2888
  %v2891 = vmul.f32 %v2889, %v2889
  %v2892 = vsel %vm77, %v2890, 0.0
  %2893 = vadd.xlane.f32.xlu0 %v2892
  %v2894 = vpop.xlane.xlu0 %2893
  %v2895 = vsel %vm77, %v2891, 0.0
  %2896 = vadd.xlane.f32.xlu0 %v2895
  %v2897 = vpop.xlane.xlu0 %2896
  %v2898 = vmul.f32 %v2894, %v84
  %v2899 = vmul.f32 %v2897, %v84
  %v2900 = vadd.f32 %v2898, 1e-12
  %v2901 = vadd.f32 %v2899, 1e-12
  %v2902 = vrsqrt.pop %v2900
  %v2903 = vrsqrt.pop %v2901
  %v2904 = vmul.f32 %v2888, %v2902
  %v2905 = vmul.f32 %v2889, %v2903
  %v2907 = vlaneseq
  %v2908 = vshrl.u32 %v2907, 7
  %v2909 = vsub.s32 0, %v2908
  %v2910 = vrot.slane %v2877, %v2909
  %v2912 = vmul.f32 %v2904, %v2910
  %v2913 = vmul.f32 %v2905, %v2910
  %v2915 = vlaneseq
  %v2916 = vshrl.u32 %v2915, 7
  %v2917 = vsub.s32 0, %v2916
  %v2918 = vrot.slane %v2879, %v2917
  %v2920 = vadd.f32 %v2912, %v2918
  %v2921 = vadd.f32 %v2913, %v2918
  %v2922 = vld [vmem:[%s20] sm:$0xff]
  %v2923 = vld [vmem:[%s20 + $0x8] sm:$0xff]
  %v2924 = vld [vmem:[%s20 + $0x10] sm:$0xff]
  %v2925 = vld [vmem:[%s20 + $0x18] sm:$0xff]
  %v2926 = vld [vmem:[%s21] sm:$0x1]
  %v2928 = vlaneseq
  %v2929 = vshrl.u32 %v2928, 7
  %v2930 = vsub.s32 0, %v2929
  %v2931 = vrot.slane %v2926, %v2930
  %v2934 = vsel %vm77, %v2920, 0
  %v2937 = vsel %vm77, %v2921, 0
  %2939 = vmatprep.subr.mxu0 0.0
  %2940 = vmatpush1.msra.mxu0 0.0
  %2941 = vmatprep.subr.mxu0 0.0
  %2942 = vmatpush1.msra.mxu0 0.0
  %2943 = vmatprep.subr.mxu0 0.0
  %2944 = vmatpush1.msra.mxu0 0.0
  %2945 = vmatprep.subr.mxu0 0.0
  %2946 = vmatpush1.msra.mxu0 0.0
  %2947 = vmatprep.subr.mxu0 0.0
  %2948 = vmatpush1.msra.mxu0 0.0
  %2949 = vmatprep.subr.mxu0 0.0
  %2950 = vmatpush1.msra.mxu0 0.0
  %2951 = vmatprep.subr.mxu0 0.0
  %2952 = vmatpush1.msra.mxu0 0.0
  %2953 = vmatprep.subr.mxu0 0.0
  %2954 = vmatpush1.msra.mxu0 0.0
  %2955 = vmatprep.subr.mxu0 0.0
  %2956 = vmatpush1.msra.mxu0 0.0
  %2957 = vmatprep.subr.mxu0 0.0
  %2958 = vmatpush1.msra.mxu0 0.0
  %2959 = vmatprep.subr.mxu0 0.0
  %2960 = vmatpush1.msra.mxu0 0.0
  %2961 = vmatprep.subr.mxu0 0.0
  %2962 = vmatpush1.msra.mxu0 0.0
  %2963 = vmatprep.subr.mxu0 0.0
  %2964 = vmatpush1.msra.mxu0 %v2925
  %2965 = vmatprep.subr.mxu0 0.0
  %2966 = vmatpush1.msra.mxu0 %v2924
  %2967 = vmatprep.subr.mxu0 0.0
  %2968 = vmatpush1.msra.mxu0 %v2923
  %2969 = vmatprep.subr.mxu0 0.0
  %2970 = vmatpush1.msra.mxu0 %v2922
  %2971 = vmatprep.subr.mxu0 0.0
  %2972 = vmatpush2.msra.mxu0 0.0
  %2973 = vmatprep.subr.mxu0 0.0
  %2974 = vmatpush2.msra.mxu0 0.0
  %2975 = vmatprep.subr.mxu0 0.0
  %2976 = vmatpush2.msra.mxu0 0.0
  %2977 = vmatprep.subr.mxu0 0.0
  %2978 = vmatpush2.msra.mxu0 0.0
  %2979 = vmatprep.subr.mxu0 0.0
  %2980 = vmatpush2.msra.mxu0 0.0
  %2981 = vmatprep.subr.mxu0 0.0
  %2982 = vmatpush2.msra.mxu0 0.0
  %2983 = vmatprep.subr.mxu0 0.0
  %2984 = vmatpush2.msra.mxu0 0.0
  %2985 = vmatprep.subr.mxu0 0.0
  %2986 = vmatpush2.msra.mxu0 0.0
  %2987 = vmatprep.subr.mxu0 0.0
  %2988 = vmatpush2.msra.mxu0 0.0
  %2989 = vmatprep.subr.mxu0 0.0
  %2990 = vmatpush2.msra.mxu0 0.0
  %2991 = vmatprep.subr.mxu0 0.0
  %2992 = vmatpush2.msra.mxu0 0.0
  %2993 = vmatprep.subr.mxu0 0.0
  %2994 = vmatpush2.msra.mxu0 0.0
  %2995 = vmatprep.subr.mxu0 0.0
  %2996 = vmatpush2.msra.mxu0 0.0
  %2997 = vmatprep.subr.mxu0 0.0
  %2998 = vmatpush2.msra.mxu0 0.0
  %2999 = vmatprep.subr.mxu0 0.0
  %3000 = vmatpush2.msra.mxu0 0.0
  %3001 = vmatprep.subr.mxu0 0.0
  %3002 = vmatpush2.msra.mxu0 0.0
  %3003 = vmatprep.mubr.f32.mxu0 0.0
  %3004 = vmatmul.mubr.f32.gmra.mxu0 %v2934
  %v3005 = vpop.f32.mrf.mxu0
  %v3006 = vadd.f32 %v2931, %v3005
  %v3007 = vpop.f32.mrf.mxu0
  %3008 = vmatprep.mubr.f32.mxu0 0.0
  %3009 = vmatmul.mubr.f32.gmra.mxu0 %v2937
  %v3010 = vpop.f32.mrf.mxu0
  %v3011 = vadd.f32 %v2931, %v3010
  %v3012 = vpop.f32.mrf.mxu0
  %3013 = vdwg.mxu0
  %3014 = vst [vmem:[%s22] sm:$0xff] %v3006
  %3015 = vst [vmem:[%s22 + $0x8] sm:$0xff] %v3011
  // Predicated region
  $region90: #{bert_classification_forward.1} parent=0 // pred_check
    _
  $region91: #{bert_classification_forward.1} parent=0 // pred_check_branch
    %3017 = sbr.rel (0) target = $region93
  $region92: #{bert_classification_forward.1} parent=0 // pred_region
    _
  $region93: #{bert_classification_forward.1} parent=0 // pred_fallthru
    _
  // Predicated region
  $region94: #{bert_classification_forward.1} parent=0 // pred_check
    _
  $region95: #{bert_classification_forward.1} parent=0 // pred_check_branch
    %3019 = sbr.rel (0) target = $region97
  $region96: #{bert_classification_forward.1} parent=0 // pred_region
    _
  $region97: #{bert_classification_forward.1} parent=0 // pred_fallthru
    _

</llo_original>
